<compile_context>
chip_gen: v5e
topology: v5e:2x2
jax: 0.10.0
libtpu: 0.0.40
codegen_flags: <defaults>
</compile_context>

<pallas_src>
import numpy as np

import jax
import jax.numpy as jnp
from jax import lax
from jax.experimental import pallas as pl
from jax.experimental.pallas import tpu as pltpu


# ---------------------------------------------------------------------------
# Constant 0/1 "plumbing" matrices / masks, built once with numpy at trace time.
#
# A conv layer's output lives in a "wide" flattened form of length
# lw = (ho-1)*wp + wo (row stride = padded input width wp); valid positions are
# p = h*wp + w with 0<=h<ho, 0<=w<wo, the rest are junk columns (finite, never
# selected downstream, masked out of BN statistics).
# ---------------------------------------------------------------------------
def _valid_mask(ho, wo, wp):
    lw = (ho - 1) * wp + wo
    idx = np.arange(lw)
    return ((idx % wp) < wo).astype(np.float32)


def _maxpool_pad_select_cat(ho, wo, wp, kh, kw, sh, sw, pad, lane_pad):
    """(lw, kh*kw*lane_pad) 0/1 matrix: pooling tap t's pooled + re-padded
    selection placed at lane offset t*lane_pad (128-aligned -> the slice-max
    over tap blocks needs no relayout)."""
    lw = (ho - 1) * wp + wo
    hpo = (ho - kh) // sh + 1 + 2 * pad
    wpo = (wo - kw) // sw + 1 + 2 * pad
    assert hpo * wpo <= lane_pad
    m = np.zeros((lw, kh * kw * lane_pad), np.float32)
    for pi in range(kh):
        for pj in range(kw):
            t = pi * kw + pj
            for po in range(hpo - 2 * pad):
                for qo in range(wpo - 2 * pad):
                    src = (po * sh + pi) * wp + (qo * sw + pj)
                    m[src, t * lane_pad + (po + pad) * wpo + (qo + pad)] = 1.0
    return m


def _avgpool_sum_select(ho, wo, wp, k, s):
    lw = (ho - 1) * wp + wo
    hoo, woo = (ho - k) // s + 1, (wo - k) // s + 1
    m = np.zeros((lw, hoo * woo), np.float32)
    for po in range(hoo):
        for qo in range(woo):
            for pi in range(k):
                for pj in range(k):
                    m[(po * s + pi) * wp + (qo * s + pj), po * woo + qo] += 1.0
    return m


# ---------------------------------------------------------------------------
# Fused forward builder
# ---------------------------------------------------------------------------
def make_conv2d_base_forward(B, H, W, inch=4, outch=8, ks=3):
    # ---- static shape derivation (all convs: stride 1, padding 1) -----------
    c0, c1, c2 = outch, outch * 2, outch * 3

    hp0, wp0 = H + 2, W + 2                               # layer0 conv (ks,ks)
    ho0, wo0 = hp0 - ks + 1, wp0 - ks + 1
    lw0, k0 = (ho0 - 1) * wp0 + wo0, ks * ks * inch

    hp1, wp1 = ho0 + 2, wo0 + 2                           # layer1 conv (3,6)
    ho1, wo1 = hp1 - 3 + 1, wp1 - 6 + 1
    lw1, k1 = (ho1 - 1) * wp1 + wo1, 3 * 6 * c0
    hm1, wm1 = (ho1 - 2) // 2 + 1, (wo1 - 4) // 2 + 1     # MaxPool [2,4] / 2

    hp2, wp2 = hm1 + 2, wm1 + 2                           # layer2 conv (2,4)
    ho2, wo2 = hp2 - 2 + 1, wp2 - 4 + 1
    lw2, k2 = (ho2 - 1) * wp2 + wo2, 2 * 4 * c1
    ha2, wa2 = (ho2 - 3) // 2 + 1, (wo2 - 3) // 2 + 1     # AvgPool 3 / 2

    kmax = max(k0, k1, k2)
    nmax = B * max(lw0, lw1, lw2)

    # ---- static guards for the hard-coded stride=1/pad=1 config -------------
    assert wp1 == wp0, "layer0->layer1 shifted-copy re-pad requires wp1 == wp0"
    assert wp0 + 1 + lw0 <= hp1 * wp1
    MPAD = 128                                            # lane-aligned tap blocks
    assert hp2 * wp2 <= MPAD
    NPOOL = 2 * 4                                         # MaxPool taps

    # ---- constant plumbing matrices / masks (0/1 -> exact in bf16) ----------
    s1cat = jnp.asarray(
        _maxpool_pad_select_cat(ho1, wo1, wp1, 2, 4, 2, 2, 1, MPAD), jnp.bfloat16)
    a2np = _avgpool_sum_select(ho2, wo2, wp2, 3, 2)       # (lw2, ha2*wa2)
    a2bd_np = np.zeros((B * lw2, B * ha2 * wa2), np.float32)
    for b in range(B):
        a2bd_np[b * lw2:(b + 1) * lw2,
                b * ha2 * wa2:(b + 1) * ha2 * wa2] = a2np
    a2bd = jnp.asarray(a2bd_np, jnp.bfloat16)

    masks_np = np.zeros((3, nmax), np.float32)
    masks_np[0, :B * lw0] = np.tile(_valid_mask(ho0, wo0, wp0), B)
    masks_np[1, :B * lw1] = np.tile(_valid_mask(ho1, wo1, wp1), B)
    masks_np[2, :B * lw2] = np.tile(_valid_mask(ho2, wo2, wp2), B)
    masks = jnp.asarray(masks_np, jnp.float32)

    # ---- the fused kernel ----------------------------------------------------
    def kernel(x_ref, w0_ref, w1_ref, w2_ref, p_ref, m_ref, s1_ref, a2_ref,
               out_ref, im_ref, act1_ref, act2_ref):

        def conv_bn_relu(src_ref, w_ref, l, cin, cout, kh, kw, hp, wp):
            """Conv (padding already in src layout) + training-mode BN + ReLU.

            src_ref: (cin, B*hp*wp) bf16 zero-padded, batch-folded, row-flat.
            Returns ((cout, B*lw) f32 wide activations, (1, B*lw) valid mask).
            """
            ho, wo = hp - kh + 1, wp - kw + 1
            lw = (ho - 1) * wp + wo
            kdim = kh * kw * cin
            n = B * lw
            offs = [i * wp + j for i in range(kh) for j in range(kw)]

            # Batch-folded in-VMEM im2col: one bf16 slice copy per (batch, tap),
            # no casts (scratch and activations are already bf16).
            for b in range(B):
                base = b * hp * wp
                for t, off in enumerate(offs):
                    im_ref[t * cin:(t + 1) * cin, b * lw:(b + 1) * lw] = \
                        src_ref[:, base + off:base + off + lw]

            bias = p_ref[:cout, 3 * l + 0:3 * l + 1]      # (cout, 1) f32
            gamma = p_ref[:cout, 3 * l + 1:3 * l + 2]
            beta = p_ref[:cout, 3 * l + 2:3 * l + 3]
            mask = m_ref[l:l + 1, :n]                      # (1, n) f32

            # ONE lane-dense GEMM per layer: (cout, kdim) @ (kdim, B*lw), f32 acc
            y = jnp.dot(w_ref[...], im_ref[:kdim, :n],
                        preferred_element_type=jnp.float32) + bias

            # One-pass BatchNorm2d (training mode: biased batch var, eps=1e-5),
            # junk wide-columns excluded from the statistics via mask.
            count = float(B * ho * wo)
            ym = y * mask
            mean = jnp.sum(ym, axis=-1, keepdims=True) * (1.0 / count)
            var = jnp.maximum(
                jnp.sum(ym * y, axis=-1, keepdims=True) * (1.0 / count)
                - mean * mean, 0.0)
            scale = gamma * lax.rsqrt(var + 1e-5)
            shift = beta - mean * scale
            return jnp.maximum(y * scale + shift, 0.0), mask

        # ----- layer0: Conv(ks,ks) + BN + ReLU -------------------------------
        a0, msk0 = conv_bn_relu(x_ref, w0_ref, 0, inch, c0, ks, ks, hp0, wp0)
        # Re-pad for layer1 WITHOUT a matmul: junk-masked, shifted lane copy
        # into a zeroed padded buffer (wide column p -> padded column p+wp0+1).
        a0 = (a0 * msk0).astype(jnp.bfloat16)
        act1_ref[...] = jnp.zeros_like(act1_ref)
        for b in range(B):
            dst = b * hp1 * wp1 + wp0 + 1
            act1_ref[:, dst:dst + lw0] = a0[:, b * lw0:(b + 1) * lw0]

        # ----- layer1: Conv(3,6) + BN + ReLU + MaxPool([2,4], 2) -------------
        a1, _ = conv_bn_relu(act1_ref, w1_ref, 1, c0, c1, 3, 6, hp1, wp1)
        a1 = a1.astype(jnp.bfloat16)
        s1c = s1_ref[...]
        for b in range(B):
            # One selection GEMM for all 8 pooling taps (lane-aligned blocks);
            # the 8-way max runs on the VPU; result is already re-padded for
            # layer2 (border columns select nothing -> 0).
            r = jnp.dot(a1[:, b * lw1:(b + 1) * lw1], s1c,
                        preferred_element_type=jnp.float32)      # (c1, 8*128)
            mp = r[:, 0:MPAD]
            for t in range(1, NPOOL):
                mp = jnp.maximum(mp, r[:, t * MPAD:(t + 1) * MPAD])
            act2_ref[:, b * hp2 * wp2:(b + 1) * hp2 * wp2] = \
                mp[:, :hp2 * wp2].astype(jnp.bfloat16)

        # ----- layer2: Conv(2,4) + BN + ReLU + AvgPool(3, 2) -----------------
        a2v, _ = conv_bn_relu(act2_ref, w2_ref, 2, c1, c2, 2, 4, hp2, wp2)
        # Batch-block-diagonal summed selection: one GEMM, one dense store.
        out_ref[...] = jnp.dot(a2v.astype(jnp.bfloat16), a2_ref[...],
                               preferred_element_type=jnp.float32) * (1.0 / 9.0)

    def vmem():
        return pl.BlockSpec(memory_space=pltpu.MemorySpace.VMEM)

    pcall = pl.pallas_call(
        kernel,
        out_shape=jax.ShapeDtypeStruct((c2, B * ha2 * wa2), jnp.float32),
        in_specs=[vmem() for _ in range(8)],
        out_specs=vmem(),
        scratch_shapes=[
            pltpu.VMEM((kmax, nmax), jnp.bfloat16),           # shared im2col stage
            pltpu.VMEM((c0, B * hp1 * wp1), jnp.bfloat16),    # layer1 padded input
            pltpu.VMEM((c1, B * hp2 * wp2), jnp.bfloat16),    # layer2 padded input
        ],
        compiler_params=pltpu.CompilerParams(vmem_limit_bytes=32 * 1024 * 1024),
    )

    @jax.jit
    def forward(x_nchw, params):
        p0, p1, p2 = params

        # NCHW -> (Cin, B*Hp*Wp): zero-pad + batch-fold + row-flatten, bf16.
        # Tiny layout glue (~1.3x the input), NOT a kh*kw im2col materialization.
        xc = jnp.transpose(x_nchw, (1, 0, 2, 3))
        xc = jnp.pad(xc, ((0, 0), (0, 0), (1, 1), (1, 1)))
        xc = xc.reshape(inch, B * hp0 * wp0).astype(jnp.bfloat16)

        def wmat(w):          # (Cout,Cin,kh,kw) -> (Cout, kh*kw*Cin) bf16, tap-major
            return jnp.transpose(w, (0, 2, 3, 1)).reshape(w.shape[0], -1) \
                      .astype(jnp.bfloat16)

        # Pack conv bias / BN gamma / BN beta of all 3 layers into one (cmax, 9).
        pm = jnp.zeros((c2, 9), jnp.float32)
        for l, p in enumerate((p0, p1, p2)):
            co = p["b"].shape[0]
            pm = pm.at[:co, 3 * l + 0].set(p["b"])
            pm = pm.at[:co, 3 * l + 1].set(p["gamma"])
            pm = pm.at[:co, 3 * l + 2].set(p["beta"])

        out = pcall(xc, wmat(p0["w"]), wmat(p1["w"]), wmat(p2["w"]),
                    pm, masks, s1cat, a2bd)                  # (c2, B*ha2*wa2)
        # torch.flatten(NCHW, 1): channel outermost, then spatial.
        out = jnp.transpose(out.reshape(c2, B, ha2 * wa2), (1, 0, 2))
        return out.reshape(B, -1)

    return forward


# ---------------------------------------------------------------------------
# Deterministic parameter init (matches a fresh nn.Module: BN gamma=1, beta=0)
# ---------------------------------------------------------------------------
def init_params(key, inch=4, outch=8, ks=3):
    shapes = [
        (outch, inch, ks, ks),          # layer0 conv
        (outch * 2, outch, 3, 6),       # layer1 conv
        (outch * 3, outch * 2, 2, 4),   # layer2 conv
    ]
    params = []
    for shp in shapes:
        key, k_w, k_b = jax.random.split(key, 3)
        cout = shp[0]
        fan_in = shp[1] * shp[2] * shp[3]
        params.append(dict(
            w=jax.random.normal(k_w, shp, jnp.float32) * (1.0 / fan_in) ** 0.5,
            b=jax.random.normal(k_b, (cout,), jnp.float32) * 0.1,
            gamma=jnp.ones((cout,), jnp.float32),
            beta=jnp.zeros((cout,), jnp.float32),
        ))
    return params


if __name__ == "__main__":
    key = jax.random.PRNGKey(0)
    k_x, k_p = jax.random.split(key)

    B, C, H, W = 2, 4, 16, 16
    x = jax.random.normal(k_x, (B, C, H, W), jnp.float32)
    params = init_params(k_p, inch=C, outch=8, ks=3)

    forward = make_conv2d_base_forward(B, H, W, inch=C, outch=8, ks=3)
    y = forward(x, params)
    jax.block_until_ready(y)

    # layer0 -> (2,8,16,16); layer1 -> (2,16,16,13) -> maxpool (2,16,8,5)
    # layer2 -> (2,24,9,4)  -> avgpool (2,24,4,1)  -> flatten (2, 96)
    assert y.shape == (2, 96), y.shape
    assert bool(jnp.all(jnp.isfinite(y)))
    print("KERNEL_OK")
</pallas_src>

<mosaic_0001>
module attributes {stable_mosaic.version = 11 : i64} {
  func.func @kernel(%arg0: memref<4x648xbf16, #tpu.memory_space<vmem>>, %arg1: memref<8x36xbf16, #tpu.memory_space<vmem>>, %arg2: memref<16x144xbf16, #tpu.memory_space<vmem>>, %arg3: memref<24x128xbf16, #tpu.memory_space<vmem>>, %arg4: memref<24x9xf32, #tpu.memory_space<vmem>>, %arg5: memref<3x572xf32, #tpu.memory_space<vmem>>, %arg6: memref<283x1024xbf16, #tpu.memory_space<vmem>>, %arg7: memref<120x8xbf16, #tpu.memory_space<vmem>>, %arg8: memref<24x8xf32, #tpu.memory_space<vmem>>, %arg9: memref<144x572xbf16, #tpu.memory_space<vmem>>, %arg10: memref<8x648xbf16, #tpu.memory_space<vmem>>, %arg11: memref<16x140xbf16, #tpu.memory_space<vmem>>) attributes {dimension_semantics = [], scalar_prefetch = 0 : i64, scratch_operands = 3 : i64, tpu.core_type = #tpu.core_type<tc>} {
    %c0 = arith.constant 0 : index
    %c0_0 = arith.constant 0 : index
    %0 = vector.load %arg0[%c0, %c0_0] : memref<4x648xbf16, #tpu.memory_space<vmem>>, vector<4x286xbf16>
    %c0_1 = arith.constant 0 : index
    %c0_2 = arith.constant 0 : index
    %1 = vector.load %arg9[%c0_1, %c0_2] : memref<144x572xbf16, #tpu.memory_space<vmem>>, vector<4x286xbf16>
    tpu.vector_store %arg9[%c0_1, %c0_2], %0 {strides = array<i32>} : memref<144x572xbf16, #tpu.memory_space<vmem>>, vector<4x286xbf16>,
    %c0_3 = arith.constant 0 : index
    %c1 = arith.constant 1 : index
    %2 = vector.load %arg0[%c0_3, %c1] : memref<4x648xbf16, #tpu.memory_space<vmem>>, vector<4x286xbf16>
    %c4 = arith.constant 4 : index
    %c0_4 = arith.constant 0 : index
    %3 = vector.load %arg9[%c4, %c0_4] : memref<144x572xbf16, #tpu.memory_space<vmem>>, vector<4x286xbf16>
    tpu.vector_store %arg9[%c4, %c0_4], %2 {strides = array<i32>} : memref<144x572xbf16, #tpu.memory_space<vmem>>, vector<4x286xbf16>,
    %c0_5 = arith.constant 0 : index
    %c2 = arith.constant 2 : index
    %4 = vector.load %arg0[%c0_5, %c2] : memref<4x648xbf16, #tpu.memory_space<vmem>>, vector<4x286xbf16>
    %c8 = arith.constant 8 : index
    %c0_6 = arith.constant 0 : index
    %5 = vector.load %arg9[%c8, %c0_6] : memref<144x572xbf16, #tpu.memory_space<vmem>>, vector<4x286xbf16>
    tpu.vector_store %arg9[%c8, %c0_6], %4 {strides = array<i32>} : memref<144x572xbf16, #tpu.memory_space<vmem>>, vector<4x286xbf16>,
    %c0_7 = arith.constant 0 : index
    %c18 = arith.constant 18 : index
    %6 = vector.load %arg0[%c0_7, %c18] : memref<4x648xbf16, #tpu.memory_space<vmem>>, vector<4x286xbf16>
    %c12 = arith.constant 12 : index
    %c0_8 = arith.constant 0 : index
    %7 = vector.load %arg9[%c12, %c0_8] : memref<144x572xbf16, #tpu.memory_space<vmem>>, vector<4x286xbf16>
    tpu.vector_store %arg9[%c12, %c0_8], %6 {strides = array<i32>} : memref<144x572xbf16, #tpu.memory_space<vmem>>, vector<4x286xbf16>,
    %c0_9 = arith.constant 0 : index
    %c19 = arith.constant 19 : index
    %8 = vector.load %arg0[%c0_9, %c19] : memref<4x648xbf16, #tpu.memory_space<vmem>>, vector<4x286xbf16>
    %c16 = arith.constant 16 : index
    %c0_10 = arith.constant 0 : index
    %9 = vector.load %arg9[%c16, %c0_10] : memref<144x572xbf16, #tpu.memory_space<vmem>>, vector<4x286xbf16>
    tpu.vector_store %arg9[%c16, %c0_10], %8 {strides = array<i32>} : memref<144x572xbf16, #tpu.memory_space<vmem>>, vector<4x286xbf16>,
    %c0_11 = arith.constant 0 : index
    %c20 = arith.constant 20 : index
    %10 = vector.load %arg0[%c0_11, %c20] : memref<4x648xbf16, #tpu.memory_space<vmem>>, vector<4x286xbf16>
    %c20_12 = arith.constant 20 : index
    %c0_13 = arith.constant 0 : index
    %11 = vector.load %arg9[%c20_12, %c0_13] : memref<144x572xbf16, #tpu.memory_space<vmem>>, vector<4x286xbf16>
    tpu.vector_store %arg9[%c20_12, %c0_13], %10 {strides = array<i32>} : memref<144x572xbf16, #tpu.memory_space<vmem>>, vector<4x286xbf16>,
    %c0_14 = arith.constant 0 : index
    %c36 = arith.constant 36 : index
    %12 = vector.load %arg0[%c0_14, %c36] : memref<4x648xbf16, #tpu.memory_space<vmem>>, vector<4x286xbf16>
    %c24 = arith.constant 24 : index
    %c0_15 = arith.constant 0 : index
    %13 = vector.load %arg9[%c24, %c0_15] : memref<144x572xbf16, #tpu.memory_space<vmem>>, vector<4x286xbf16>
    tpu.vector_store %arg9[%c24, %c0_15], %12 {strides = array<i32>} : memref<144x572xbf16, #tpu.memory_space<vmem>>, vector<4x286xbf16>,
    %c0_16 = arith.constant 0 : index
    %c37 = arith.constant 37 : index
    %14 = vector.load %arg0[%c0_16, %c37] : memref<4x648xbf16, #tpu.memory_space<vmem>>, vector<4x286xbf16>
    %c28 = arith.constant 28 : index
    %c0_17 = arith.constant 0 : index
    %15 = vector.load %arg9[%c28, %c0_17] : memref<144x572xbf16, #tpu.memory_space<vmem>>, vector<4x286xbf16>
    tpu.vector_store %arg9[%c28, %c0_17], %14 {strides = array<i32>} : memref<144x572xbf16, #tpu.memory_space<vmem>>, vector<4x286xbf16>,
    %c0_18 = arith.constant 0 : index
    %c38 = arith.constant 38 : index
    %16 = vector.load %arg0[%c0_18, %c38] : memref<4x648xbf16, #tpu.memory_space<vmem>>, vector<4x286xbf16>
    %c32 = arith.constant 32 : index
    %c0_19 = arith.constant 0 : index
    %17 = vector.load %arg9[%c32, %c0_19] : memref<144x572xbf16, #tpu.memory_space<vmem>>, vector<4x286xbf16>
    tpu.vector_store %arg9[%c32, %c0_19], %16 {strides = array<i32>} : memref<144x572xbf16, #tpu.memory_space<vmem>>, vector<4x286xbf16>,
    %c0_20 = arith.constant 0 : index
    %c324 = arith.constant 324 : index
    %18 = vector.load %arg0[%c0_20, %c324] : memref<4x648xbf16, #tpu.memory_space<vmem>>, vector<4x286xbf16>
    %c0_21 = arith.constant 0 : index
    %c286 = arith.constant 286 : index
    %19 = vector.load %arg9[%c0_21, %c286] : memref<144x572xbf16, #tpu.memory_space<vmem>>, vector<4x286xbf16>
    tpu.vector_store %arg9[%c0_21, %c286], %18 {strides = array<i32>} : memref<144x572xbf16, #tpu.memory_space<vmem>>, vector<4x286xbf16>,
    %c0_22 = arith.constant 0 : index
    %c325 = arith.constant 325 : index
    %20 = vector.load %arg0[%c0_22, %c325] : memref<4x648xbf16, #tpu.memory_space<vmem>>, vector<4x286xbf16>
    %c4_23 = arith.constant 4 : index
    %c286_24 = arith.constant 286 : index
    %21 = vector.load %arg9[%c4_23, %c286_24] : memref<144x572xbf16, #tpu.memory_space<vmem>>, vector<4x286xbf16>
    tpu.vector_store %arg9[%c4_23, %c286_24], %20 {strides = array<i32>} : memref<144x572xbf16, #tpu.memory_space<vmem>>, vector<4x286xbf16>,
    %c0_25 = arith.constant 0 : index
    %c326 = arith.constant 326 : index
    %22 = vector.load %arg0[%c0_25, %c326] : memref<4x648xbf16, #tpu.memory_space<vmem>>, vector<4x286xbf16>
    %c8_26 = arith.constant 8 : index
    %c286_27 = arith.constant 286 : index
    %23 = vector.load %arg9[%c8_26, %c286_27] : memref<144x572xbf16, #tpu.memory_space<vmem>>, vector<4x286xbf16>
    tpu.vector_store %arg9[%c8_26, %c286_27], %22 {strides = array<i32>} : memref<144x572xbf16, #tpu.memory_space<vmem>>, vector<4x286xbf16>,
    %c0_28 = arith.constant 0 : index
    %c342 = arith.constant 342 : index
    %24 = vector.load %arg0[%c0_28, %c342] : memref<4x648xbf16, #tpu.memory_space<vmem>>, vector<4x286xbf16>
    %c12_29 = arith.constant 12 : index
    %c286_30 = arith.constant 286 : index
    %25 = vector.load %arg9[%c12_29, %c286_30] : memref<144x572xbf16, #tpu.memory_space<vmem>>, vector<4x286xbf16>
    tpu.vector_store %arg9[%c12_29, %c286_30], %24 {strides = array<i32>} : memref<144x572xbf16, #tpu.memory_space<vmem>>, vector<4x286xbf16>,
    %c0_31 = arith.constant 0 : index
    %c343 = arith.constant 343 : index
    %26 = vector.load %arg0[%c0_31, %c343] : memref<4x648xbf16, #tpu.memory_space<vmem>>, vector<4x286xbf16>
    %c16_32 = arith.constant 16 : index
    %c286_33 = arith.constant 286 : index
    %27 = vector.load %arg9[%c16_32, %c286_33] : memref<144x572xbf16, #tpu.memory_space<vmem>>, vector<4x286xbf16>
    tpu.vector_store %arg9[%c16_32, %c286_33], %26 {strides = array<i32>} : memref<144x572xbf16, #tpu.memory_space<vmem>>, vector<4x286xbf16>,
    %c0_34 = arith.constant 0 : index
    %c344 = arith.constant 344 : index
    %28 = vector.load %arg0[%c0_34, %c344] : memref<4x648xbf16, #tpu.memory_space<vmem>>, vector<4x286xbf16>
    %c20_35 = arith.constant 20 : index
    %c286_36 = arith.constant 286 : index
    %29 = vector.load %arg9[%c20_35, %c286_36] : memref<144x572xbf16, #tpu.memory_space<vmem>>, vector<4x286xbf16>
    tpu.vector_store %arg9[%c20_35, %c286_36], %28 {strides = array<i32>} : memref<144x572xbf16, #tpu.memory_space<vmem>>, vector<4x286xbf16>,
    %c0_37 = arith.constant 0 : index
    %c360 = arith.constant 360 : index
    %30 = vector.load %arg0[%c0_37, %c360] : memref<4x648xbf16, #tpu.memory_space<vmem>>, vector<4x286xbf16>
    %c24_38 = arith.constant 24 : index
    %c286_39 = arith.constant 286 : index
    %31 = vector.load %arg9[%c24_38, %c286_39] : memref<144x572xbf16, #tpu.memory_space<vmem>>, vector<4x286xbf16>
    tpu.vector_store %arg9[%c24_38, %c286_39], %30 {strides = array<i32>} : memref<144x572xbf16, #tpu.memory_space<vmem>>, vector<4x286xbf16>,
    %c0_40 = arith.constant 0 : index
    %c361 = arith.constant 361 : index
    %32 = vector.load %arg0[%c0_40, %c361] : memref<4x648xbf16, #tpu.memory_space<vmem>>, vector<4x286xbf16>
    %c28_41 = arith.constant 28 : index
    %c286_42 = arith.constant 286 : index
    %33 = vector.load %arg9[%c28_41, %c286_42] : memref<144x572xbf16, #tpu.memory_space<vmem>>, vector<4x286xbf16>
    tpu.vector_store %arg9[%c28_41, %c286_42], %32 {strides = array<i32>} : memref<144x572xbf16, #tpu.memory_space<vmem>>, vector<4x286xbf16>,
    %c0_43 = arith.constant 0 : index
    %c362 = arith.constant 362 : index
    %34 = vector.load %arg0[%c0_43, %c362] : memref<4x648xbf16, #tpu.memory_space<vmem>>, vector<4x286xbf16>
    %c32_44 = arith.constant 32 : index
    %c286_45 = arith.constant 286 : index
    %35 = vector.load %arg9[%c32_44, %c286_45] : memref<144x572xbf16, #tpu.memory_space<vmem>>, vector<4x286xbf16>
    tpu.vector_store %arg9[%c32_44, %c286_45], %34 {strides = array<i32>} : memref<144x572xbf16, #tpu.memory_space<vmem>>, vector<4x286xbf16>,
    %c0_46 = arith.constant 0 : index
    %c0_47 = arith.constant 0 : index
    %36 = vector.load %arg4[%c0_46, %c0_47] : memref<24x9xf32, #tpu.memory_space<vmem>>, vector<8x1xf32>
    %c0_48 = arith.constant 0 : index
    %c1_49 = arith.constant 1 : index
    %37 = vector.load %arg4[%c0_48, %c1_49] : memref<24x9xf32, #tpu.memory_space<vmem>>, vector<8x1xf32>
    %c0_50 = arith.constant 0 : index
    %c2_51 = arith.constant 2 : index
    %38 = vector.load %arg4[%c0_50, %c2_51] : memref<24x9xf32, #tpu.memory_space<vmem>>, vector<8x1xf32>
    %c0_52 = arith.constant 0 : index
    %c0_53 = arith.constant 0 : index
    %39 = vector.load %arg5[%c0_52, %c0_53] : memref<3x572xf32, #tpu.memory_space<vmem>>, vector<1x572xf32>
    %c0_54 = arith.constant 0 : index
    %c0_55 = arith.constant 0 : index
    %40 = vector.load %arg1[%c0_54, %c0_55] : memref<8x36xbf16, #tpu.memory_space<vmem>>, vector<8x36xbf16>
    %c0_56 = arith.constant 0 : index
    %c0_57 = arith.constant 0 : index
    %41 = vector.load %arg9[%c0_56, %c0_57] : memref<144x572xbf16, #tpu.memory_space<vmem>>, vector<36x572xbf16>
    %cst = arith.constant dense<0.000000e+00> : vector<8x572xf32>
    %42 = tpu.matmul %40, %41, %cst {dimension_numbers = #tpu.dot_dimension_numbers<[1], [0], [0], [1], [0, 0, 1, 1], [], []>} : vector<8x36xbf16>, vector<36x572xbf16>, vector<8x572xf32> -> vector<8x572xf32>
    %43 = vector.broadcast %36 : vector<8x1xf32> to vector<8x572xf32>
    %44 = arith.addf %42, %43 : vector<8x572xf32>
    %45 = vector.broadcast %39 : vector<1x572xf32> to vector<8x572xf32>
    %46 = arith.mulf %44, %45 : vector<8x572xf32>
    %cst_58 = arith.constant dense<0.000000e+00> : vector<8xf32>
    %47 = vector.multi_reduction <add>, %46, %cst_58 [1] : vector<8x572xf32> to vector<8xf32>
    %48 = vector.shape_cast %47 : vector<8xf32> to vector<8x1xf32>
    %cst_59 = arith.constant 0.001953125 : f32
    %49 = vector.broadcast %cst_59 : f32 to vector<8x1xf32>
    %50 = arith.mulf %48, %49 : vector<8x1xf32>
    %51 = arith.mulf %46, %44 : vector<8x572xf32>
    %cst_60 = arith.constant dense<0.000000e+00> : vector<8xf32>
    %52 = vector.multi_reduction <add>, %51, %cst_60 [1] : vector<8x572xf32> to vector<8xf32>
    %53 = vector.shape_cast %52 : vector<8xf32> to vector<8x1xf32>
    %cst_61 = arith.constant 0.001953125 : f32
    %54 = vector.broadcast %cst_61 : f32 to vector<8x1xf32>
    %55 = arith.mulf %53, %54 : vector<8x1xf32>
    %56 = arith.mulf %50, %50 : vector<8x1xf32>
    %57 = arith.subf %55, %56 : vector<8x1xf32>
    %cst_62 = arith.constant 0.000000e+00 : f32
    %58 = vector.broadcast %cst_62 : f32 to vector<8x1xf32>
    %59 = arith.maximumf %57, %58 : vector<8x1xf32>
    %cst_63 = arith.constant 9.99999974E-6 : f32
    %60 = vector.broadcast %cst_63 : f32 to vector<8x1xf32>
    %61 = arith.addf %59, %60 : vector<8x1xf32>
    %62 = math.rsqrt %61 : vector<8x1xf32>
    %63 = arith.mulf %37, %62 : vector<8x1xf32>
    %64 = arith.mulf %50, %63 : vector<8x1xf32>
    %65 = arith.subf %38, %64 : vector<8x1xf32>
    %66 = vector.broadcast %63 : vector<8x1xf32> to vector<8x572xf32>
    %67 = arith.mulf %44, %66 : vector<8x572xf32>
    %68 = vector.broadcast %65 : vector<8x1xf32> to vector<8x572xf32>
    %69 = arith.addf %67, %68 : vector<8x572xf32>
    %cst_64 = arith.constant 0.000000e+00 : f32
    %70 = vector.broadcast %cst_64 : f32 to vector<8x572xf32>
    %71 = arith.maximumf %69, %70 : vector<8x572xf32>
    %72 = vector.broadcast %39 : vector<1x572xf32> to vector<8x572xf32>
    %73 = arith.mulf %71, %72 : vector<8x572xf32>
    %74 = arith.truncf %73 : vector<8x572xf32> to vector<8x572xbf16>
    %cst_65 = arith.constant 0.000000e+00 : bf16
    %75 = vector.broadcast %cst_65 : bf16 to vector<8x648xbf16>
    %c0_66 = arith.constant 0 : index
    %c0_67 = arith.constant 0 : index
    %76 = vector.load %arg10[%c0_66, %c0_67] : memref<8x648xbf16, #tpu.memory_space<vmem>>, vector<8x648xbf16>
    tpu.vector_store %arg10[%c0_66, %c0_67], %75 {strides = array<i32>} : memref<8x648xbf16, #tpu.memory_space<vmem>>, vector<8x648xbf16>,
    %77 = vector.extract_strided_slice %74 {offsets = [0, 0], sizes = [8, 286], strides = [1, 1]} : vector<8x572xbf16> to vector<8x286xbf16>
    %c0_68 = arith.constant 0 : index
    %c19_69 = arith.constant 19 : index
    %78 = vector.load %arg10[%c0_68, %c19_69] : memref<8x648xbf16, #tpu.memory_space<vmem>>, vector<8x286xbf16>
    tpu.vector_store %arg10[%c0_68, %c19_69], %77 {strides = array<i32>} : memref<8x648xbf16, #tpu.memory_space<vmem>>, vector<8x286xbf16>,
    %79 = vector.extract_strided_slice %74 {offsets = [0, 286], sizes = [8, 286], strides = [1, 1]} : vector<8x572xbf16> to vector<8x286xbf16>
    %c0_70 = arith.constant 0 : index
    %c343_71 = arith.constant 343 : index
    %80 = vector.load %arg10[%c0_70, %c343_71] : memref<8x648xbf16, #tpu.memory_space<vmem>>, vector<8x286xbf16>
    tpu.vector_store %arg10[%c0_70, %c343_71], %79 {strides = array<i32>} : memref<8x648xbf16, #tpu.memory_space<vmem>>, vector<8x286xbf16>,
    %c0_72 = arith.constant 0 : index
    %c0_73 = arith.constant 0 : index
    %81 = vector.load %arg10[%c0_72, %c0_73] : memref<8x648xbf16, #tpu.memory_space<vmem>>, vector<8x283xbf16>
    %c0_74 = arith.constant 0 : index
    %c0_75 = arith.constant 0 : index
    %82 = vector.load %arg9[%c0_74, %c0_75] : memref<144x572xbf16, #tpu.memory_space<vmem>>, vector<8x283xbf16>
    tpu.vector_store %arg9[%c0_74, %c0_75], %81 {strides = array<i32>} : memref<144x572xbf16, #tpu.memory_space<vmem>>, vector<8x283xbf16>,
    %c0_76 = arith.constant 0 : index
    %c1_77 = arith.constant 1 : index
    %83 = vector.load %arg10[%c0_76, %c1_77] : memref<8x648xbf16, #tpu.memory_space<vmem>>, vector<8x283xbf16>
    %c8_78 = arith.constant 8 : index
    %c0_79 = arith.constant 0 : index
    %84 = vector.load %arg9[%c8_78, %c0_79] : memref<144x572xbf16, #tpu.memory_space<vmem>>, vector<8x283xbf16>
    tpu.vector_store %arg9[%c8_78, %c0_79], %83 {strides = array<i32>} : memref<144x572xbf16, #tpu.memory_space<vmem>>, vector<8x283xbf16>,
    %c0_80 = arith.constant 0 : index
    %c2_81 = arith.constant 2 : index
    %85 = vector.load %arg10[%c0_80, %c2_81] : memref<8x648xbf16, #tpu.memory_space<vmem>>, vector<8x283xbf16>
    %c16_82 = arith.constant 16 : index
    %c0_83 = arith.constant 0 : index
    %86 = vector.load %arg9[%c16_82, %c0_83] : memref<144x572xbf16, #tpu.memory_space<vmem>>, vector<8x283xbf16>
    tpu.vector_store %arg9[%c16_82, %c0_83], %85 {strides = array<i32>} : memref<144x572xbf16, #tpu.memory_space<vmem>>, vector<8x283xbf16>,
    %c0_84 = arith.constant 0 : index
    %c3 = arith.constant 3 : index
    %87 = vector.load %arg10[%c0_84, %c3] : memref<8x648xbf16, #tpu.memory_space<vmem>>, vector<8x283xbf16>
    %c24_85 = arith.constant 24 : index
    %c0_86 = arith.constant 0 : index
    %88 = vector.load %arg9[%c24_85, %c0_86] : memref<144x572xbf16, #tpu.memory_space<vmem>>, vector<8x283xbf16>
    tpu.vector_store %arg9[%c24_85, %c0_86], %87 {strides = array<i32>} : memref<144x572xbf16, #tpu.memory_space<vmem>>, vector<8x283xbf16>,
    %c0_87 = arith.constant 0 : index
    %c4_88 = arith.constant 4 : index
    %89 = vector.load %arg10[%c0_87, %c4_88] : memref<8x648xbf16, #tpu.memory_space<vmem>>, vector<8x283xbf16>
    %c32_89 = arith.constant 32 : index
    %c0_90 = arith.constant 0 : index
    %90 = vector.load %arg9[%c32_89, %c0_90] : memref<144x572xbf16, #tpu.memory_space<vmem>>, vector<8x283xbf16>
    tpu.vector_store %arg9[%c32_89, %c0_90], %89 {strides = array<i32>} : memref<144x572xbf16, #tpu.memory_space<vmem>>, vector<8x283xbf16>,
    %c0_91 = arith.constant 0 : index
    %c5 = arith.constant 5 : index
    %91 = vector.load %arg10[%c0_91, %c5] : memref<8x648xbf16, #tpu.memory_space<vmem>>, vector<8x283xbf16>
    %c40 = arith.constant 40 : index
    %c0_92 = arith.constant 0 : index
    %92 = vector.load %arg9[%c40, %c0_92] : memref<144x572xbf16, #tpu.memory_space<vmem>>, vector<8x283xbf16>
    tpu.vector_store %arg9[%c40, %c0_92], %91 {strides = array<i32>} : memref<144x572xbf16, #tpu.memory_space<vmem>>, vector<8x283xbf16>,
    %c0_93 = arith.constant 0 : index
    %c18_94 = arith.constant 18 : index
    %93 = vector.load %arg10[%c0_93, %c18_94] : memref<8x648xbf16, #tpu.memory_space<vmem>>, vector<8x283xbf16>
    %c48 = arith.constant 48 : index
    %c0_95 = arith.constant 0 : index
    %94 = vector.load %arg9[%c48, %c0_95] : memref<144x572xbf16, #tpu.memory_space<vmem>>, vector<8x283xbf16>
    tpu.vector_store %arg9[%c48, %c0_95], %93 {strides = array<i32>} : memref<144x572xbf16, #tpu.memory_space<vmem>>, vector<8x283xbf16>,
    %c0_96 = arith.constant 0 : index
    %c19_97 = arith.constant 19 : index
    %95 = vector.load %arg10[%c0_96, %c19_97] : memref<8x648xbf16, #tpu.memory_space<vmem>>, vector<8x283xbf16>
    %c56 = arith.constant 56 : index
    %c0_98 = arith.constant 0 : index
    %96 = vector.load %arg9[%c56, %c0_98] : memref<144x572xbf16, #tpu.memory_space<vmem>>, vector<8x283xbf16>
    tpu.vector_store %arg9[%c56, %c0_98], %95 {strides = array<i32>} : memref<144x572xbf16, #tpu.memory_space<vmem>>, vector<8x283xbf16>,
    %c0_99 = arith.constant 0 : index
    %c20_100 = arith.constant 20 : index
    %97 = vector.load %arg10[%c0_99, %c20_100] : memref<8x648xbf16, #tpu.memory_space<vmem>>, vector<8x283xbf16>
    %c64 = arith.constant 64 : index
    %c0_101 = arith.constant 0 : index
    %98 = vector.load %arg9[%c64, %c0_101] : memref<144x572xbf16, #tpu.memory_space<vmem>>, vector<8x283xbf16>
    tpu.vector_store %arg9[%c64, %c0_101], %97 {strides = array<i32>} : memref<144x572xbf16, #tpu.memory_space<vmem>>, vector<8x283xbf16>,
    %c0_102 = arith.constant 0 : index
    %c21 = arith.constant 21 : index
    %99 = vector.load %arg10[%c0_102, %c21] : memref<8x648xbf16, #tpu.memory_space<vmem>>, vector<8x283xbf16>
    %c72 = arith.constant 72 : index
    %c0_103 = arith.constant 0 : index
    %100 = vector.load %arg9[%c72, %c0_103] : memref<144x572xbf16, #tpu.memory_space<vmem>>, vector<8x283xbf16>
    tpu.vector_store %arg9[%c72, %c0_103], %99 {strides = array<i32>} : memref<144x572xbf16, #tpu.memory_space<vmem>>, vector<8x283xbf16>,
    %c0_104 = arith.constant 0 : index
    %c22 = arith.constant 22 : index
    %101 = vector.load %arg10[%c0_104, %c22] : memref<8x648xbf16, #tpu.memory_space<vmem>>, vector<8x283xbf16>
    %c80 = arith.constant 80 : index
    %c0_105 = arith.constant 0 : index
    %102 = vector.load %arg9[%c80, %c0_105] : memref<144x572xbf16, #tpu.memory_space<vmem>>, vector<8x283xbf16>
    tpu.vector_store %arg9[%c80, %c0_105], %101 {strides = array<i32>} : memref<144x572xbf16, #tpu.memory_space<vmem>>, vector<8x283xbf16>,
    %c0_106 = arith.constant 0 : index
    %c23 = arith.constant 23 : index
    %103 = vector.load %arg10[%c0_106, %c23] : memref<8x648xbf16, #tpu.memory_space<vmem>>, vector<8x283xbf16>
    %c88 = arith.constant 88 : index
    %c0_107 = arith.constant 0 : index
    %104 = vector.load %arg9[%c88, %c0_107] : memref<144x572xbf16, #tpu.memory_space<vmem>>, vector<8x283xbf16>
    tpu.vector_store %arg9[%c88, %c0_107], %103 {strides = array<i32>} : memref<144x572xbf16, #tpu.memory_space<vmem>>, vector<8x283xbf16>,
    %c0_108 = arith.constant 0 : index
    %c36_109 = arith.constant 36 : index
    %105 = vector.load %arg10[%c0_108, %c36_109] : memref<8x648xbf16, #tpu.memory_space<vmem>>, vector<8x283xbf16>
    %c96 = arith.constant 96 : index
    %c0_110 = arith.constant 0 : index
    %106 = vector.load %arg9[%c96, %c0_110] : memref<144x572xbf16, #tpu.memory_space<vmem>>, vector<8x283xbf16>
    tpu.vector_store %arg9[%c96, %c0_110], %105 {strides = array<i32>} : memref<144x572xbf16, #tpu.memory_space<vmem>>, vector<8x283xbf16>,
    %c0_111 = arith.constant 0 : index
    %c37_112 = arith.constant 37 : index
    %107 = vector.load %arg10[%c0_111, %c37_112] : memref<8x648xbf16, #tpu.memory_space<vmem>>, vector<8x283xbf16>
    %c104 = arith.constant 104 : index
    %c0_113 = arith.constant 0 : index
    %108 = vector.load %arg9[%c104, %c0_113] : memref<144x572xbf16, #tpu.memory_space<vmem>>, vector<8x283xbf16>
    tpu.vector_store %arg9[%c104, %c0_113], %107 {strides = array<i32>} : memref<144x572xbf16, #tpu.memory_space<vmem>>, vector<8x283xbf16>,
    %c0_114 = arith.constant 0 : index
    %c38_115 = arith.constant 38 : index
    %109 = vector.load %arg10[%c0_114, %c38_115] : memref<8x648xbf16, #tpu.memory_space<vmem>>, vector<8x283xbf16>
    %c112 = arith.constant 112 : index
    %c0_116 = arith.constant 0 : index
    %110 = vector.load %arg9[%c112, %c0_116] : memref<144x572xbf16, #tpu.memory_space<vmem>>, vector<8x283xbf16>
    tpu.vector_store %arg9[%c112, %c0_116], %109 {strides = array<i32>} : memref<144x572xbf16, #tpu.memory_space<vmem>>, vector<8x283xbf16>,
    %c0_117 = arith.constant 0 : index
    %c39 = arith.constant 39 : index
    %111 = vector.load %arg10[%c0_117, %c39] : memref<8x648xbf16, #tpu.memory_space<vmem>>, vector<8x283xbf16>
    %c120 = arith.constant 120 : index
    %c0_118 = arith.constant 0 : index
    %112 = vector.load %arg9[%c120, %c0_118] : memref<144x572xbf16, #tpu.memory_space<vmem>>, vector<8x283xbf16>
    tpu.vector_store %arg9[%c120, %c0_118], %111 {strides = array<i32>} : memref<144x572xbf16, #tpu.memory_space<vmem>>, vector<8x283xbf16>,
    %c0_119 = arith.constant 0 : index
    %c40_120 = arith.constant 40 : index
    %113 = vector.load %arg10[%c0_119, %c40_120] : memref<8x648xbf16, #tpu.memory_space<vmem>>, vector<8x283xbf16>
    %c128 = arith.constant 128 : index
    %c0_121 = arith.constant 0 : index
    %114 = vector.load %arg9[%c128, %c0_121] : memref<144x572xbf16, #tpu.memory_space<vmem>>, vector<8x283xbf16>
    tpu.vector_store %arg9[%c128, %c0_121], %113 {strides = array<i32>} : memref<144x572xbf16, #tpu.memory_space<vmem>>, vector<8x283xbf16>,
    %c0_122 = arith.constant 0 : index
    %c41 = arith.constant 41 : index
    %115 = vector.load %arg10[%c0_122, %c41] : memref<8x648xbf16, #tpu.memory_space<vmem>>, vector<8x283xbf16>
    %c136 = arith.constant 136 : index
    %c0_123 = arith.constant 0 : index
    %116 = vector.load %arg9[%c136, %c0_123] : memref<144x572xbf16, #tpu.memory_space<vmem>>, vector<8x283xbf16>
    tpu.vector_store %arg9[%c136, %c0_123], %115 {strides = array<i32>} : memref<144x572xbf16, #tpu.memory_space<vmem>>, vector<8x283xbf16>,
    %c0_124 = arith.constant 0 : index
    %c324_125 = arith.constant 324 : index
    %117 = vector.load %arg10[%c0_124, %c324_125] : memref<8x648xbf16, #tpu.memory_space<vmem>>, vector<8x283xbf16>
    %c0_126 = arith.constant 0 : index
    %c283 = arith.constant 283 : index
    %118 = vector.load %arg9[%c0_126, %c283] : memref<144x572xbf16, #tpu.memory_space<vmem>>, vector<8x283xbf16>
    tpu.vector_store %arg9[%c0_126, %c283], %117 {strides = array<i32>} : memref<144x572xbf16, #tpu.memory_space<vmem>>, vector<8x283xbf16>,
    %c0_127 = arith.constant 0 : index
    %c325_128 = arith.constant 325 : index
    %119 = vector.load %arg10[%c0_127, %c325_128] : memref<8x648xbf16, #tpu.memory_space<vmem>>, vector<8x283xbf16>
    %c8_129 = arith.constant 8 : index
    %c283_130 = arith.constant 283 : index
    %120 = vector.load %arg9[%c8_129, %c283_130] : memref<144x572xbf16, #tpu.memory_space<vmem>>, vector<8x283xbf16>
    tpu.vector_store %arg9[%c8_129, %c283_130], %119 {strides = array<i32>} : memref<144x572xbf16, #tpu.memory_space<vmem>>, vector<8x283xbf16>,
    %c0_131 = arith.constant 0 : index
    %c326_132 = arith.constant 326 : index
    %121 = vector.load %arg10[%c0_131, %c326_132] : memref<8x648xbf16, #tpu.memory_space<vmem>>, vector<8x283xbf16>
    %c16_133 = arith.constant 16 : index
    %c283_134 = arith.constant 283 : index
    %122 = vector.load %arg9[%c16_133, %c283_134] : memref<144x572xbf16, #tpu.memory_space<vmem>>, vector<8x283xbf16>
    tpu.vector_store %arg9[%c16_133, %c283_134], %121 {strides = array<i32>} : memref<144x572xbf16, #tpu.memory_space<vmem>>, vector<8x283xbf16>,
    %c0_135 = arith.constant 0 : index
    %c327 = arith.constant 327 : index
    %123 = vector.load %arg10[%c0_135, %c327] : memref<8x648xbf16, #tpu.memory_space<vmem>>, vector<8x283xbf16>
    %c24_136 = arith.constant 24 : index
    %c283_137 = arith.constant 283 : index
    %124 = vector.load %arg9[%c24_136, %c283_137] : memref<144x572xbf16, #tpu.memory_space<vmem>>, vector<8x283xbf16>
    tpu.vector_store %arg9[%c24_136, %c283_137], %123 {strides = array<i32>} : memref<144x572xbf16, #tpu.memory_space<vmem>>, vector<8x283xbf16>,
    %c0_138 = arith.constant 0 : index
    %c328 = arith.constant 328 : index
    %125 = vector.load %arg10[%c0_138, %c328] : memref<8x648xbf16, #tpu.memory_space<vmem>>, vector<8x283xbf16>
    %c32_139 = arith.constant 32 : index
    %c283_140 = arith.constant 283 : index
    %126 = vector.load %arg9[%c32_139, %c283_140] : memref<144x572xbf16, #tpu.memory_space<vmem>>, vector<8x283xbf16>
    tpu.vector_store %arg9[%c32_139, %c283_140], %125 {strides = array<i32>} : memref<144x572xbf16, #tpu.memory_space<vmem>>, vector<8x283xbf16>,
    %c0_141 = arith.constant 0 : index
    %c329 = arith.constant 329 : index
    %127 = vector.load %arg10[%c0_141, %c329] : memref<8x648xbf16, #tpu.memory_space<vmem>>, vector<8x283xbf16>
    %c40_142 = arith.constant 40 : index
    %c283_143 = arith.constant 283 : index
    %128 = vector.load %arg9[%c40_142, %c283_143] : memref<144x572xbf16, #tpu.memory_space<vmem>>, vector<8x283xbf16>
    tpu.vector_store %arg9[%c40_142, %c283_143], %127 {strides = array<i32>} : memref<144x572xbf16, #tpu.memory_space<vmem>>, vector<8x283xbf16>,
    %c0_144 = arith.constant 0 : index
    %c342_145 = arith.constant 342 : index
    %129 = vector.load %arg10[%c0_144, %c342_145] : memref<8x648xbf16, #tpu.memory_space<vmem>>, vector<8x283xbf16>
    %c48_146 = arith.constant 48 : index
    %c283_147 = arith.constant 283 : index
    %130 = vector.load %arg9[%c48_146, %c283_147] : memref<144x572xbf16, #tpu.memory_space<vmem>>, vector<8x283xbf16>
    tpu.vector_store %arg9[%c48_146, %c283_147], %129 {strides = array<i32>} : memref<144x572xbf16, #tpu.memory_space<vmem>>, vector<8x283xbf16>,
    %c0_148 = arith.constant 0 : index
    %c343_149 = arith.constant 343 : index
    %131 = vector.load %arg10[%c0_148, %c343_149] : memref<8x648xbf16, #tpu.memory_space<vmem>>, vector<8x283xbf16>
    %c56_150 = arith.constant 56 : index
    %c283_151 = arith.constant 283 : index
    %132 = vector.load %arg9[%c56_150, %c283_151] : memref<144x572xbf16, #tpu.memory_space<vmem>>, vector<8x283xbf16>
    tpu.vector_store %arg9[%c56_150, %c283_151], %131 {strides = array<i32>} : memref<144x572xbf16, #tpu.memory_space<vmem>>, vector<8x283xbf16>,
    %c0_152 = arith.constant 0 : index
    %c344_153 = arith.constant 344 : index
    %133 = vector.load %arg10[%c0_152, %c344_153] : memref<8x648xbf16, #tpu.memory_space<vmem>>, vector<8x283xbf16>
    %c64_154 = arith.constant 64 : index
    %c283_155 = arith.constant 283 : index
    %134 = vector.load %arg9[%c64_154, %c283_155] : memref<144x572xbf16, #tpu.memory_space<vmem>>, vector<8x283xbf16>
    tpu.vector_store %arg9[%c64_154, %c283_155], %133 {strides = array<i32>} : memref<144x572xbf16, #tpu.memory_space<vmem>>, vector<8x283xbf16>,
    %c0_156 = arith.constant 0 : index
    %c345 = arith.constant 345 : index
    %135 = vector.load %arg10[%c0_156, %c345] : memref<8x648xbf16, #tpu.memory_space<vmem>>, vector<8x283xbf16>
    %c72_157 = arith.constant 72 : index
    %c283_158 = arith.constant 283 : index
    %136 = vector.load %arg9[%c72_157, %c283_158] : memref<144x572xbf16, #tpu.memory_space<vmem>>, vector<8x283xbf16>
    tpu.vector_store %arg9[%c72_157, %c283_158], %135 {strides = array<i32>} : memref<144x572xbf16, #tpu.memory_space<vmem>>, vector<8x283xbf16>,
    %c0_159 = arith.constant 0 : index
    %c346 = arith.constant 346 : index
    %137 = vector.load %arg10[%c0_159, %c346] : memref<8x648xbf16, #tpu.memory_space<vmem>>, vector<8x283xbf16>
    %c80_160 = arith.constant 80 : index
    %c283_161 = arith.constant 283 : index
    %138 = vector.load %arg9[%c80_160, %c283_161] : memref<144x572xbf16, #tpu.memory_space<vmem>>, vector<8x283xbf16>
    tpu.vector_store %arg9[%c80_160, %c283_161], %137 {strides = array<i32>} : memref<144x572xbf16, #tpu.memory_space<vmem>>, vector<8x283xbf16>,
    %c0_162 = arith.constant 0 : index
    %c347 = arith.constant 347 : index
    %139 = vector.load %arg10[%c0_162, %c347] : memref<8x648xbf16, #tpu.memory_space<vmem>>, vector<8x283xbf16>
    %c88_163 = arith.constant 88 : index
    %c283_164 = arith.constant 283 : index
    %140 = vector.load %arg9[%c88_163, %c283_164] : memref<144x572xbf16, #tpu.memory_space<vmem>>, vector<8x283xbf16>
    tpu.vector_store %arg9[%c88_163, %c283_164], %139 {strides = array<i32>} : memref<144x572xbf16, #tpu.memory_space<vmem>>, vector<8x283xbf16>,
    %c0_165 = arith.constant 0 : index
    %c360_166 = arith.constant 360 : index
    %141 = vector.load %arg10[%c0_165, %c360_166] : memref<8x648xbf16, #tpu.memory_space<vmem>>, vector<8x283xbf16>
    %c96_167 = arith.constant 96 : index
    %c283_168 = arith.constant 283 : index
    %142 = vector.load %arg9[%c96_167, %c283_168] : memref<144x572xbf16, #tpu.memory_space<vmem>>, vector<8x283xbf16>
    tpu.vector_store %arg9[%c96_167, %c283_168], %141 {strides = array<i32>} : memref<144x572xbf16, #tpu.memory_space<vmem>>, vector<8x283xbf16>,
    %c0_169 = arith.constant 0 : index
    %c361_170 = arith.constant 361 : index
    %143 = vector.load %arg10[%c0_169, %c361_170] : memref<8x648xbf16, #tpu.memory_space<vmem>>, vector<8x283xbf16>
    %c104_171 = arith.constant 104 : index
    %c283_172 = arith.constant 283 : index
    %144 = vector.load %arg9[%c104_171, %c283_172] : memref<144x572xbf16, #tpu.memory_space<vmem>>, vector<8x283xbf16>
    tpu.vector_store %arg9[%c104_171, %c283_172], %143 {strides = array<i32>} : memref<144x572xbf16, #tpu.memory_space<vmem>>, vector<8x283xbf16>,
    %c0_173 = arith.constant 0 : index
    %c362_174 = arith.constant 362 : index
    %145 = vector.load %arg10[%c0_173, %c362_174] : memref<8x648xbf16, #tpu.memory_space<vmem>>, vector<8x283xbf16>
    %c112_175 = arith.constant 112 : index
    %c283_176 = arith.constant 283 : index
    %146 = vector.load %arg9[%c112_175, %c283_176] : memref<144x572xbf16, #tpu.memory_space<vmem>>, vector<8x283xbf16>
    tpu.vector_store %arg9[%c112_175, %c283_176], %145 {strides = array<i32>} : memref<144x572xbf16, #tpu.memory_space<vmem>>, vector<8x283xbf16>,
    %c0_177 = arith.constant 0 : index
    %c363 = arith.constant 363 : index
    %147 = vector.load %arg10[%c0_177, %c363] : memref<8x648xbf16, #tpu.memory_space<vmem>>, vector<8x283xbf16>
    %c120_178 = arith.constant 120 : index
    %c283_179 = arith.constant 283 : index
    %148 = vector.load %arg9[%c120_178, %c283_179] : memref<144x572xbf16, #tpu.memory_space<vmem>>, vector<8x283xbf16>
    tpu.vector_store %arg9[%c120_178, %c283_179], %147 {strides = array<i32>} : memref<144x572xbf16, #tpu.memory_space<vmem>>, vector<8x283xbf16>,
    %c0_180 = arith.constant 0 : index
    %c364 = arith.constant 364 : index
    %149 = vector.load %arg10[%c0_180, %c364] : memref<8x648xbf16, #tpu.memory_space<vmem>>, vector<8x283xbf16>
    %c128_181 = arith.constant 128 : index
    %c283_182 = arith.constant 283 : index
    %150 = vector.load %arg9[%c128_181, %c283_182] : memref<144x572xbf16, #tpu.memory_space<vmem>>, vector<8x283xbf16>
    tpu.vector_store %arg9[%c128_181, %c283_182], %149 {strides = array<i32>} : memref<144x572xbf16, #tpu.memory_space<vmem>>, vector<8x283xbf16>,
    %c0_183 = arith.constant 0 : index
    %c365 = arith.constant 365 : index
    %151 = vector.load %arg10[%c0_183, %c365] : memref<8x648xbf16, #tpu.memory_space<vmem>>, vector<8x283xbf16>
    %c136_184 = arith.constant 136 : index
    %c283_185 = arith.constant 283 : index
    %152 = vector.load %arg9[%c136_184, %c283_185] : memref<144x572xbf16, #tpu.memory_space<vmem>>, vector<8x283xbf16>
    tpu.vector_store %arg9[%c136_184, %c283_185], %151 {strides = array<i32>} : memref<144x572xbf16, #tpu.memory_space<vmem>>, vector<8x283xbf16>,
    %c0_186 = arith.constant 0 : index
    %c3_187 = arith.constant 3 : index
    %153 = vector.load %arg4[%c0_186, %c3_187] : memref<24x9xf32, #tpu.memory_space<vmem>>, vector<16x1xf32>
    %c0_188 = arith.constant 0 : index
    %c4_189 = arith.constant 4 : index
    %154 = vector.load %arg4[%c0_188, %c4_189] : memref<24x9xf32, #tpu.memory_space<vmem>>, vector<16x1xf32>
    %c0_190 = arith.constant 0 : index
    %c5_191 = arith.constant 5 : index
    %155 = vector.load %arg4[%c0_190, %c5_191] : memref<24x9xf32, #tpu.memory_space<vmem>>, vector<16x1xf32>
    %c1_192 = arith.constant 1 : index
    %c0_193 = arith.constant 0 : index
    %156 = vector.load %arg5[%c1_192, %c0_193] : memref<3x572xf32, #tpu.memory_space<vmem>>, vector<1x566xf32>
    %c0_194 = arith.constant 0 : index
    %c0_195 = arith.constant 0 : index
    %157 = vector.load %arg2[%c0_194, %c0_195] : memref<16x144xbf16, #tpu.memory_space<vmem>>, vector<16x144xbf16>
    %c0_196 = arith.constant 0 : index
    %c0_197 = arith.constant 0 : index
    %158 = vector.load %arg9[%c0_196, %c0_197] : memref<144x572xbf16, #tpu.memory_space<vmem>>, vector<144x566xbf16>
    %cst_198 = arith.constant dense<0.000000e+00> : vector<16x566xf32>
    %159 = tpu.matmul %157, %158, %cst_198 {dimension_numbers = #tpu.dot_dimension_numbers<[1], [0], [0], [1], [0, 0, 1, 1], [], []>} : vector<16x144xbf16>, vector<144x566xbf16>, vector<16x566xf32> -> vector<16x566xf32>
    %160 = vector.broadcast %153 : vector<16x1xf32> to vector<16x566xf32>
    %161 = arith.addf %159, %160 : vector<16x566xf32>
    %162 = vector.broadcast %156 : vector<1x566xf32> to vector<16x566xf32>
    %163 = arith.mulf %161, %162 : vector<16x566xf32>
    %cst_199 = arith.constant dense<0.000000e+00> : vector<16xf32>
    %164 = vector.multi_reduction <add>, %163, %cst_199 [1] : vector<16x566xf32> to vector<16xf32>
    %165 = vector.shape_cast %164 : vector<16xf32> to vector<16x1xf32>
    %cst_200 = arith.constant 0.00240384624 : f32
    %166 = vector.broadcast %cst_200 : f32 to vector<16x1xf32>
    %167 = arith.mulf %165, %166 : vector<16x1xf32>
    %168 = arith.mulf %163, %161 : vector<16x566xf32>
    %cst_201 = arith.constant dense<0.000000e+00> : vector<16xf32>
    %169 = vector.multi_reduction <add>, %168, %cst_201 [1] : vector<16x566xf32> to vector<16xf32>
    %170 = vector.shape_cast %169 : vector<16xf32> to vector<16x1xf32>
    %cst_202 = arith.constant 0.00240384624 : f32
    %171 = vector.broadcast %cst_202 : f32 to vector<16x1xf32>
    %172 = arith.mulf %170, %171 : vector<16x1xf32>
    %173 = arith.mulf %167, %167 : vector<16x1xf32>
    %174 = arith.subf %172, %173 : vector<16x1xf32>
    %cst_203 = arith.constant 0.000000e+00 : f32
    %175 = vector.broadcast %cst_203 : f32 to vector<16x1xf32>
    %176 = arith.maximumf %174, %175 : vector<16x1xf32>
    %cst_204 = arith.constant 9.99999974E-6 : f32
    %177 = vector.broadcast %cst_204 : f32 to vector<16x1xf32>
    %178 = arith.addf %176, %177 : vector<16x1xf32>
    %179 = math.rsqrt %178 : vector<16x1xf32>
    %180 = arith.mulf %154, %179 : vector<16x1xf32>
    %181 = arith.mulf %167, %180 : vector<16x1xf32>
    %182 = arith.subf %155, %181 : vector<16x1xf32>
    %183 = vector.broadcast %180 : vector<16x1xf32> to vector<16x566xf32>
    %184 = arith.mulf %161, %183 : vector<16x566xf32>
    %185 = vector.broadcast %182 : vector<16x1xf32> to vector<16x566xf32>
    %186 = arith.addf %184, %185 : vector<16x566xf32>
    %cst_205 = arith.constant 0.000000e+00 : f32
    %187 = vector.broadcast %cst_205 : f32 to vector<16x566xf32>
    %188 = arith.maximumf %186, %187 : vector<16x566xf32>
    %189 = arith.truncf %188 : vector<16x566xf32> to vector<16x566xbf16>
    %c0_206 = arith.constant 0 : index
    %c0_207 = arith.constant 0 : index
    %190 = vector.load %arg6[%c0_206, %c0_207] : memref<283x1024xbf16, #tpu.memory_space<vmem>>, vector<283x1024xbf16>
    %191 = vector.extract_strided_slice %189 {offsets = [0, 0], sizes = [16, 283], strides = [1, 1]} : vector<16x566xbf16> to vector<16x283xbf16>
    %cst_208 = arith.constant dense<0.000000e+00> : vector<16x1024xf32>
    %192 = tpu.matmul %191, %190, %cst_208 {dimension_numbers = #tpu.dot_dimension_numbers<[1], [0], [0], [1], [0, 0, 1, 1], [], []>} : vector<16x283xbf16>, vector<283x1024xbf16>, vector<16x1024xf32> -> vector<16x1024xf32>
    %193 = vector.extract_strided_slice %192 {offsets = [0, 0], sizes = [16, 128], strides = [1, 1]} : vector<16x1024xf32> to vector<16x128xf32>
    %194 = vector.extract_strided_slice %192 {offsets = [0, 128], sizes = [16, 128], strides = [1, 1]} : vector<16x1024xf32> to vector<16x128xf32>
    %195 = arith.maximumf %193, %194 : vector<16x128xf32>
    %196 = vector.extract_strided_slice %192 {offsets = [0, 256], sizes = [16, 128], strides = [1, 1]} : vector<16x1024xf32> to vector<16x128xf32>
    %197 = arith.maximumf %195, %196 : vector<16x128xf32>
    %198 = vector.extract_strided_slice %192 {offsets = [0, 384], sizes = [16, 128], strides = [1, 1]} : vector<16x1024xf32> to vector<16x128xf32>
    %199 = arith.maximumf %197, %198 : vector<16x128xf32>
    %200 = vector.extract_strided_slice %192 {offsets = [0, 512], sizes = [16, 128], strides = [1, 1]} : vector<16x1024xf32> to vector<16x128xf32>
    %201 = arith.maximumf %199, %200 : vector<16x128xf32>
    %202 = vector.extract_strided_slice %192 {offsets = [0, 640], sizes = [16, 128], strides = [1, 1]} : vector<16x1024xf32> to vector<16x128xf32>
    %203 = arith.maximumf %201, %202 : vector<16x128xf32>
    %204 = vector.extract_strided_slice %192 {offsets = [0, 768], sizes = [16, 128], strides = [1, 1]} : vector<16x1024xf32> to vector<16x128xf32>
    %205 = arith.maximumf %203, %204 : vector<16x128xf32>
    %206 = vector.extract_strided_slice %192 {offsets = [0, 896], sizes = [16, 128], strides = [1, 1]} : vector<16x1024xf32> to vector<16x128xf32>
    %207 = arith.maximumf %205, %206 : vector<16x128xf32>
    %208 = vector.extract_strided_slice %207 {offsets = [0, 0], sizes = [16, 70], strides = [1, 1]} : vector<16x128xf32> to vector<16x70xf32>
    %209 = arith.truncf %208 : vector<16x70xf32> to vector<16x70xbf16>
    %c0_209 = arith.constant 0 : index
    %c0_210 = arith.constant 0 : index
    %210 = vector.load %arg11[%c0_209, %c0_210] : memref<16x140xbf16, #tpu.memory_space<vmem>>, vector<16x70xbf16>
    tpu.vector_store %arg11[%c0_209, %c0_210], %209 {strides = array<i32>} : memref<16x140xbf16, #tpu.memory_space<vmem>>, vector<16x70xbf16>,
    %211 = vector.extract_strided_slice %189 {offsets = [0, 283], sizes = [16, 283], strides = [1, 1]} : vector<16x566xbf16> to vector<16x283xbf16>
    %cst_211 = arith.constant dense<0.000000e+00> : vector<16x1024xf32>
    %212 = tpu.matmul %211, %190, %cst_211 {dimension_numbers = #tpu.dot_dimension_numbers<[1], [0], [0], [1], [0, 0, 1, 1], [], []>} : vector<16x283xbf16>, vector<283x1024xbf16>, vector<16x1024xf32> -> vector<16x1024xf32>
    %213 = vector.extract_strided_slice %212 {offsets = [0, 0], sizes = [16, 128], strides = [1, 1]} : vector<16x1024xf32> to vector<16x128xf32>
    %214 = vector.extract_strided_slice %212 {offsets = [0, 128], sizes = [16, 128], strides = [1, 1]} : vector<16x1024xf32> to vector<16x128xf32>
    %215 = arith.maximumf %213, %214 : vector<16x128xf32>
    %216 = vector.extract_strided_slice %212 {offsets = [0, 256], sizes = [16, 128], strides = [1, 1]} : vector<16x1024xf32> to vector<16x128xf32>
    %217 = arith.maximumf %215, %216 : vector<16x128xf32>
    %218 = vector.extract_strided_slice %212 {offsets = [0, 384], sizes = [16, 128], strides = [1, 1]} : vector<16x1024xf32> to vector<16x128xf32>
    %219 = arith.maximumf %217, %218 : vector<16x128xf32>
    %220 = vector.extract_strided_slice %212 {offsets = [0, 512], sizes = [16, 128], strides = [1, 1]} : vector<16x1024xf32> to vector<16x128xf32>
    %221 = arith.maximumf %219, %220 : vector<16x128xf32>
    %222 = vector.extract_strided_slice %212 {offsets = [0, 640], sizes = [16, 128], strides = [1, 1]} : vector<16x1024xf32> to vector<16x128xf32>
    %223 = arith.maximumf %221, %222 : vector<16x128xf32>
    %224 = vector.extract_strided_slice %212 {offsets = [0, 768], sizes = [16, 128], strides = [1, 1]} : vector<16x1024xf32> to vector<16x128xf32>
    %225 = arith.maximumf %223, %224 : vector<16x128xf32>
    %226 = vector.extract_strided_slice %212 {offsets = [0, 896], sizes = [16, 128], strides = [1, 1]} : vector<16x1024xf32> to vector<16x128xf32>
    %227 = arith.maximumf %225, %226 : vector<16x128xf32>
    %228 = vector.extract_strided_slice %227 {offsets = [0, 0], sizes = [16, 70], strides = [1, 1]} : vector<16x128xf32> to vector<16x70xf32>
    %229 = arith.truncf %228 : vector<16x70xf32> to vector<16x70xbf16>
    %c0_212 = arith.constant 0 : index
    %c70 = arith.constant 70 : index
    %230 = vector.load %arg11[%c0_212, %c70] : memref<16x140xbf16, #tpu.memory_space<vmem>>, vector<16x70xbf16>
    tpu.vector_store %arg11[%c0_212, %c70], %229 {strides = array<i32>} : memref<16x140xbf16, #tpu.memory_space<vmem>>, vector<16x70xbf16>,
    %c0_213 = arith.constant 0 : index
    %c0_214 = arith.constant 0 : index
    %231 = vector.load %arg11[%c0_213, %c0_214] : memref<16x140xbf16, #tpu.memory_space<vmem>>, vector<16x60xbf16>
    %c0_215 = arith.constant 0 : index
    %c0_216 = arith.constant 0 : index
    %232 = vector.load %arg9[%c0_215, %c0_216] : memref<144x572xbf16, #tpu.memory_space<vmem>>, vector<16x60xbf16>
    tpu.vector_store %arg9[%c0_215, %c0_216], %231 {strides = array<i32>} : memref<144x572xbf16, #tpu.memory_space<vmem>>, vector<16x60xbf16>,
    %c0_217 = arith.constant 0 : index
    %c1_218 = arith.constant 1 : index
    %233 = vector.load %arg11[%c0_217, %c1_218] : memref<16x140xbf16, #tpu.memory_space<vmem>>, vector<16x60xbf16>
    %c16_219 = arith.constant 16 : index
    %c0_220 = arith.constant 0 : index
    %234 = vector.load %arg9[%c16_219, %c0_220] : memref<144x572xbf16, #tpu.memory_space<vmem>>, vector<16x60xbf16>
    tpu.vector_store %arg9[%c16_219, %c0_220], %233 {strides = array<i32>} : memref<144x572xbf16, #tpu.memory_space<vmem>>, vector<16x60xbf16>,
    %c0_221 = arith.constant 0 : index
    %c2_222 = arith.constant 2 : index
    %235 = vector.load %arg11[%c0_221, %c2_222] : memref<16x140xbf16, #tpu.memory_space<vmem>>, vector<16x60xbf16>
    %c32_223 = arith.constant 32 : index
    %c0_224 = arith.constant 0 : index
    %236 = vector.load %arg9[%c32_223, %c0_224] : memref<144x572xbf16, #tpu.memory_space<vmem>>, vector<16x60xbf16>
    tpu.vector_store %arg9[%c32_223, %c0_224], %235 {strides = array<i32>} : memref<144x572xbf16, #tpu.memory_space<vmem>>, vector<16x60xbf16>,
    %c0_225 = arith.constant 0 : index
    %c3_226 = arith.constant 3 : index
    %237 = vector.load %arg11[%c0_225, %c3_226] : memref<16x140xbf16, #tpu.memory_space<vmem>>, vector<16x60xbf16>
    %c48_227 = arith.constant 48 : index
    %c0_228 = arith.constant 0 : index
    %238 = vector.load %arg9[%c48_227, %c0_228] : memref<144x572xbf16, #tpu.memory_space<vmem>>, vector<16x60xbf16>
    tpu.vector_store %arg9[%c48_227, %c0_228], %237 {strides = array<i32>} : memref<144x572xbf16, #tpu.memory_space<vmem>>, vector<16x60xbf16>,
    %c0_229 = arith.constant 0 : index
    %c7 = arith.constant 7 : index
    %239 = vector.load %arg11[%c0_229, %c7] : memref<16x140xbf16, #tpu.memory_space<vmem>>, vector<16x60xbf16>
    %c64_230 = arith.constant 64 : index
    %c0_231 = arith.constant 0 : index
    %240 = vector.load %arg9[%c64_230, %c0_231] : memref<144x572xbf16, #tpu.memory_space<vmem>>, vector<16x60xbf16>
    tpu.vector_store %arg9[%c64_230, %c0_231], %239 {strides = array<i32>} : memref<144x572xbf16, #tpu.memory_space<vmem>>, vector<16x60xbf16>,
    %c0_232 = arith.constant 0 : index
    %c8_233 = arith.constant 8 : index
    %241 = vector.load %arg11[%c0_232, %c8_233] : memref<16x140xbf16, #tpu.memory_space<vmem>>, vector<16x60xbf16>
    %c80_234 = arith.constant 80 : index
    %c0_235 = arith.constant 0 : index
    %242 = vector.load %arg9[%c80_234, %c0_235] : memref<144x572xbf16, #tpu.memory_space<vmem>>, vector<16x60xbf16>
    tpu.vector_store %arg9[%c80_234, %c0_235], %241 {strides = array<i32>} : memref<144x572xbf16, #tpu.memory_space<vmem>>, vector<16x60xbf16>,
    %c0_236 = arith.constant 0 : index
    %c9 = arith.constant 9 : index
    %243 = vector.load %arg11[%c0_236, %c9] : memref<16x140xbf16, #tpu.memory_space<vmem>>, vector<16x60xbf16>
    %c96_237 = arith.constant 96 : index
    %c0_238 = arith.constant 0 : index
    %244 = vector.load %arg9[%c96_237, %c0_238] : memref<144x572xbf16, #tpu.memory_space<vmem>>, vector<16x60xbf16>
    tpu.vector_store %arg9[%c96_237, %c0_238], %243 {strides = array<i32>} : memref<144x572xbf16, #tpu.memory_space<vmem>>, vector<16x60xbf16>,
    %c0_239 = arith.constant 0 : index
    %c10 = arith.constant 10 : index
    %245 = vector.load %arg11[%c0_239, %c10] : memref<16x140xbf16, #tpu.memory_space<vmem>>, vector<16x60xbf16>
    %c112_240 = arith.constant 112 : index
    %c0_241 = arith.constant 0 : index
    %246 = vector.load %arg9[%c112_240, %c0_241] : memref<144x572xbf16, #tpu.memory_space<vmem>>, vector<16x60xbf16>
    tpu.vector_store %arg9[%c112_240, %c0_241], %245 {strides = array<i32>} : memref<144x572xbf16, #tpu.memory_space<vmem>>, vector<16x60xbf16>,
    %c0_242 = arith.constant 0 : index
    %c70_243 = arith.constant 70 : index
    %247 = vector.load %arg11[%c0_242, %c70_243] : memref<16x140xbf16, #tpu.memory_space<vmem>>, vector<16x60xbf16>
    %c0_244 = arith.constant 0 : index
    %c60 = arith.constant 60 : index
    %248 = vector.load %arg9[%c0_244, %c60] : memref<144x572xbf16, #tpu.memory_space<vmem>>, vector<16x60xbf16>
    tpu.vector_store %arg9[%c0_244, %c60], %247 {strides = array<i32>} : memref<144x572xbf16, #tpu.memory_space<vmem>>, vector<16x60xbf16>,
    %c0_245 = arith.constant 0 : index
    %c71 = arith.constant 71 : index
    %249 = vector.load %arg11[%c0_245, %c71] : memref<16x140xbf16, #tpu.memory_space<vmem>>, vector<16x60xbf16>
    %c16_246 = arith.constant 16 : index
    %c60_247 = arith.constant 60 : index
    %250 = vector.load %arg9[%c16_246, %c60_247] : memref<144x572xbf16, #tpu.memory_space<vmem>>, vector<16x60xbf16>
    tpu.vector_store %arg9[%c16_246, %c60_247], %249 {strides = array<i32>} : memref<144x572xbf16, #tpu.memory_space<vmem>>, vector<16x60xbf16>,
    %c0_248 = arith.constant 0 : index
    %c72_249 = arith.constant 72 : index
    %251 = vector.load %arg11[%c0_248, %c72_249] : memref<16x140xbf16, #tpu.memory_space<vmem>>, vector<16x60xbf16>
    %c32_250 = arith.constant 32 : index
    %c60_251 = arith.constant 60 : index
    %252 = vector.load %arg9[%c32_250, %c60_251] : memref<144x572xbf16, #tpu.memory_space<vmem>>, vector<16x60xbf16>
    tpu.vector_store %arg9[%c32_250, %c60_251], %251 {strides = array<i32>} : memref<144x572xbf16, #tpu.memory_space<vmem>>, vector<16x60xbf16>,
    %c0_252 = arith.constant 0 : index
    %c73 = arith.constant 73 : index
    %253 = vector.load %arg11[%c0_252, %c73] : memref<16x140xbf16, #tpu.memory_space<vmem>>, vector<16x60xbf16>
    %c48_253 = arith.constant 48 : index
    %c60_254 = arith.constant 60 : index
    %254 = vector.load %arg9[%c48_253, %c60_254] : memref<144x572xbf16, #tpu.memory_space<vmem>>, vector<16x60xbf16>
    tpu.vector_store %arg9[%c48_253, %c60_254], %253 {strides = array<i32>} : memref<144x572xbf16, #tpu.memory_space<vmem>>, vector<16x60xbf16>,
    %c0_255 = arith.constant 0 : index
    %c77 = arith.constant 77 : index
    %255 = vector.load %arg11[%c0_255, %c77] : memref<16x140xbf16, #tpu.memory_space<vmem>>, vector<16x60xbf16>
    %c64_256 = arith.constant 64 : index
    %c60_257 = arith.constant 60 : index
    %256 = vector.load %arg9[%c64_256, %c60_257] : memref<144x572xbf16, #tpu.memory_space<vmem>>, vector<16x60xbf16>
    tpu.vector_store %arg9[%c64_256, %c60_257], %255 {strides = array<i32>} : memref<144x572xbf16, #tpu.memory_space<vmem>>, vector<16x60xbf16>,
    %c0_258 = arith.constant 0 : index
    %c78 = arith.constant 78 : index
    %257 = vector.load %arg11[%c0_258, %c78] : memref<16x140xbf16, #tpu.memory_space<vmem>>, vector<16x60xbf16>
    %c80_259 = arith.constant 80 : index
    %c60_260 = arith.constant 60 : index
    %258 = vector.load %arg9[%c80_259, %c60_260] : memref<144x572xbf16, #tpu.memory_space<vmem>>, vector<16x60xbf16>
    tpu.vector_store %arg9[%c80_259, %c60_260], %257 {strides = array<i32>} : memref<144x572xbf16, #tpu.memory_space<vmem>>, vector<16x60xbf16>,
    %c0_261 = arith.constant 0 : index
    %c79 = arith.constant 79 : index
    %259 = vector.load %arg11[%c0_261, %c79] : memref<16x140xbf16, #tpu.memory_space<vmem>>, vector<16x60xbf16>
    %c96_262 = arith.constant 96 : index
    %c60_263 = arith.constant 60 : index
    %260 = vector.load %arg9[%c96_262, %c60_263] : memref<144x572xbf16, #tpu.memory_space<vmem>>, vector<16x60xbf16>
    tpu.vector_store %arg9[%c96_262, %c60_263], %259 {strides = array<i32>} : memref<144x572xbf16, #tpu.memory_space<vmem>>, vector<16x60xbf16>,
    %c0_264 = arith.constant 0 : index
    %c80_265 = arith.constant 80 : index
    %261 = vector.load %arg11[%c0_264, %c80_265] : memref<16x140xbf16, #tpu.memory_space<vmem>>, vector<16x60xbf16>
    %c112_266 = arith.constant 112 : index
    %c60_267 = arith.constant 60 : index
    %262 = vector.load %arg9[%c112_266, %c60_267] : memref<144x572xbf16, #tpu.memory_space<vmem>>, vector<16x60xbf16>
    tpu.vector_store %arg9[%c112_266, %c60_267], %261 {strides = array<i32>} : memref<144x572xbf16, #tpu.memory_space<vmem>>, vector<16x60xbf16>,
    %c0_268 = arith.constant 0 : index
    %c6 = arith.constant 6 : index
    %263 = vector.load %arg4[%c0_268, %c6] : memref<24x9xf32, #tpu.memory_space<vmem>>, vector<24x1xf32>
    %c0_269 = arith.constant 0 : index
    %c7_270 = arith.constant 7 : index
    %264 = vector.load %arg4[%c0_269, %c7_270] : memref<24x9xf32, #tpu.memory_space<vmem>>, vector<24x1xf32>
    %c0_271 = arith.constant 0 : index
    %c8_272 = arith.constant 8 : index
    %265 = vector.load %arg4[%c0_271, %c8_272] : memref<24x9xf32, #tpu.memory_space<vmem>>, vector<24x1xf32>
    %c2_273 = arith.constant 2 : index
    %c0_274 = arith.constant 0 : index
    %266 = vector.load %arg5[%c2_273, %c0_274] : memref<3x572xf32, #tpu.memory_space<vmem>>, vector<1x120xf32>
    %c0_275 = arith.constant 0 : index
    %c0_276 = arith.constant 0 : index
    %267 = vector.load %arg3[%c0_275, %c0_276] : memref<24x128xbf16, #tpu.memory_space<vmem>>, vector<24x128xbf16>
    %c0_277 = arith.constant 0 : index
    %c0_278 = arith.constant 0 : index
    %268 = vector.load %arg9[%c0_277, %c0_278] : memref<144x572xbf16, #tpu.memory_space<vmem>>, vector<128x120xbf16>
    %cst_279 = arith.constant dense<0.000000e+00> : vector<24x120xf32>
    %269 = tpu.matmul %267, %268, %cst_279 {dimension_numbers = #tpu.dot_dimension_numbers<[1], [0], [0], [1], [0, 0, 1, 1], [], []>} : vector<24x128xbf16>, vector<128x120xbf16>, vector<24x120xf32> -> vector<24x120xf32>
    %270 = vector.broadcast %263 : vector<24x1xf32> to vector<24x120xf32>
    %271 = arith.addf %269, %270 : vector<24x120xf32>
    %272 = vector.broadcast %266 : vector<1x120xf32> to vector<24x120xf32>
    %273 = arith.mulf %271, %272 : vector<24x120xf32>
    %cst_280 = arith.constant dense<0.000000e+00> : vector<24xf32>
    %274 = vector.multi_reduction <add>, %273, %cst_280 [1] : vector<24x120xf32> to vector<24xf32>
    %275 = vector.shape_cast %274 : vector<24xf32> to vector<24x1xf32>
    %cst_281 = arith.constant 0.013888889 : f32
    %276 = vector.broadcast %cst_281 : f32 to vector<24x1xf32>
    %277 = arith.mulf %275, %276 : vector<24x1xf32>
    %278 = arith.mulf %273, %271 : vector<24x120xf32>
    %cst_282 = arith.constant dense<0.000000e+00> : vector<24xf32>
    %279 = vector.multi_reduction <add>, %278, %cst_282 [1] : vector<24x120xf32> to vector<24xf32>
    %280 = vector.shape_cast %279 : vector<24xf32> to vector<24x1xf32>
    %cst_283 = arith.constant 0.013888889 : f32
    %281 = vector.broadcast %cst_283 : f32 to vector<24x1xf32>
    %282 = arith.mulf %280, %281 : vector<24x1xf32>
    %283 = arith.mulf %277, %277 : vector<24x1xf32>
    %284 = arith.subf %282, %283 : vector<24x1xf32>
    %cst_284 = arith.constant 0.000000e+00 : f32
    %285 = vector.broadcast %cst_284 : f32 to vector<24x1xf32>
    %286 = arith.maximumf %284, %285 : vector<24x1xf32>
    %cst_285 = arith.constant 9.99999974E-6 : f32
    %287 = vector.broadcast %cst_285 : f32 to vector<24x1xf32>
    %288 = arith.addf %286, %287 : vector<24x1xf32>
    %289 = math.rsqrt %288 : vector<24x1xf32>
    %290 = arith.mulf %264, %289 : vector<24x1xf32>
    %291 = arith.mulf %277, %290 : vector<24x1xf32>
    %292 = arith.subf %265, %291 : vector<24x1xf32>
    %293 = vector.broadcast %290 : vector<24x1xf32> to vector<24x120xf32>
    %294 = arith.mulf %271, %293 : vector<24x120xf32>
    %295 = vector.broadcast %292 : vector<24x1xf32> to vector<24x120xf32>
    %296 = arith.addf %294, %295 : vector<24x120xf32>
    %cst_286 = arith.constant 0.000000e+00 : f32
    %297 = vector.broadcast %cst_286 : f32 to vector<24x120xf32>
    %298 = arith.maximumf %296, %297 : vector<24x120xf32>
    %299 = arith.truncf %298 : vector<24x120xf32> to vector<24x120xbf16>
    %c0_287 = arith.constant 0 : index
    %c0_288 = arith.constant 0 : index
    %300 = vector.load %arg7[%c0_287, %c0_288] : memref<120x8xbf16, #tpu.memory_space<vmem>>, vector<120x8xbf16>
    %cst_289 = arith.constant dense<0.000000e+00> : vector<24x8xf32>
    %301 = tpu.matmul %299, %300, %cst_289 {dimension_numbers = #tpu.dot_dimension_numbers<[1], [0], [0], [1], [0, 0, 1, 1], [], []>} : vector<24x120xbf16>, vector<120x8xbf16>, vector<24x8xf32> -> vector<24x8xf32>
    %cst_290 = arith.constant 0.111111112 : f32
    %302 = vector.broadcast %cst_290 : f32 to vector<24x8xf32>
    %303 = arith.mulf %301, %302 : vector<24x8xf32>
    %c0_291 = arith.constant 0 : index
    %c0_292 = arith.constant 0 : index
    %304 = vector.load %arg8[%c0_291, %c0_292] : memref<24x8xf32, #tpu.memory_space<vmem>>, vector<24x8xf32>
    tpu.vector_store %arg8[%c0_291, %c0_292], %303 {strides = array<i32>} : memref<24x8xf32, #tpu.memory_space<vmem>>, vector<24x8xf32>,
    return
  }
}

</mosaic_0001>

<llo_original>
// kernel: forward.1
$region0: #{forward.1}
  #allocation0 [shape = 'u32[]', space=smem, size = 0x4, offset = 0x4, fixed_abs, tag = 'smem constant byte address 0x4 - core index']
  #allocation1 [shape = 'u32[72,128]{1,0:T(1,128)}', space=vmem, size = 0x9000, scoped, tag = 'internal scratch']
  #allocation2 [shape = 'bf16[144,572]{1,0:T(8,128)(2,1)}', space=vmem, size = 0x2d000, scoped, tag = 'scratch operand']
  #allocation3 [shape = 'bf16[8,648]{1,0:T(8,128)(2,1)}', space=vmem, size = 0x3000, scoped, tag = 'scratch operand']
  #allocation4 [shape = 'bf16[16,140]{1,0:T(8,128)(2,1)}', space=vmem, size = 0x2000, scoped, tag = 'scratch operand']
  %s0 = inlined_call_operand.vmem [shape: bf16[4,648], index: 0, kind: input, shape index: {}]
  %s1 = inlined_call_operand.vmem [shape: bf16[8,36], index: 1, kind: input, shape index: {}]
  %s2 = inlined_call_operand.vmem [shape: bf16[16,144], index: 2, kind: input, shape index: {}]
  %s3 = inlined_call_operand.vmem [shape: bf16[24,128], index: 3, kind: input, shape index: {}]
  %s4 = inlined_call_operand.vmem [shape: f32[24,9], index: 4, kind: input, shape index: {}]
  %s5 = inlined_call_operand.vmem [shape: f32[3,572], index: 5, kind: input, shape index: {}]
  %s6 = inlined_call_operand.hbm [shape: bf16[283,1024], index: 6, kind: input, shape index: {}]
  %s7 = inlined_call_operand.vmem [shape: bf16[120,8], index: 7, kind: input, shape index: {}]
  %s8 = inlined_call_operand.vmem [shape: f32[24,8], index: 8, kind: output, shape index: {}]
  %s9 = sld [smem:[#allocation0]]
  $region46: #{forward.1} parent=0
    _
  %s11 = ssub.s32 1, %s9
  %s12 = scalar_select 0, %s11, %s9
  $region1: #{forward.1} parent=0
    #allocation5 [shape = 'u8[589824]{0}', space=vmem, size = 0x90000, scoped, tag = 'input window, operand 6, single buffered']
    #allocation6 [shape = 's32[1]{0}', space=sflag, size = 0x4, scoped, tag = 'scoped memory for forward.1']
    %13 = vsyncpa [#allocation6], 0
    // Predicated region
    $region2: #{forward.1} parent=1 // pred_check
      _
    $region3: #{forward.1} parent=1 // pred_check_branch
      %15 = sbr.rel (0) target = $region5
    $region4: #{forward.1} parent=1 // pred_region
      _
    $region5: #{forward.1} parent=1 // pred_fallthru
      _
    // Predicated region
    $region6: #{forward.1} parent=1 // pred_check
      _
    $region7: #{forward.1} parent=1 // pred_check_branch
      %17 = sbr.rel (0) target = $region9
    $region8: #{forward.1} parent=1 // pred_region
      _
    $region9: #{forward.1} parent=1 // pred_fallthru
      _
    // Predicated region
    $region10: #{forward.1} parent=1 // pred_check
      _
    $region11: #{forward.1} parent=1 // pred_check_branch
      %19 = sbr.rel (0) target = $region13
    $region12: #{forward.1} parent=1 // pred_region
      _
    $region13: #{forward.1} parent=1 // pred_fallthru
      _
    // Predicated region
    $region14: #{forward.1} parent=1 // pred_check
      _
    $region15: #{forward.1} parent=1 // pred_check_branch
      %21 = sbr.rel (0) target = $region17
    $region16: #{forward.1} parent=1 // pred_region
      _
    $region17: #{forward.1} parent=1 // pred_fallthru
      _
    // Predicated region
    $region18: #{forward.1} parent=1 // pred_check
      _
    $region19: #{forward.1} parent=1 // pred_check_branch
      %23 = sbr.rel (0) target = $region21
    $region20: #{forward.1} parent=1 // pred_region
      _
    $region21: #{forward.1} parent=1 // pred_fallthru
      _
    // Predicated region
    $region22: #{forward.1} parent=1 // pred_check
      _
    $region23: #{forward.1} parent=1 // pred_check_branch
      %25 = sbr.rel (0) target = $region25
    $region24: #{forward.1} parent=1 // pred_region
      _
    $region25: #{forward.1} parent=1 // pred_fallthru
      _
    // Predicated region
    $region26: #{forward.1} parent=1 // pred_check
      _
    $region27: #{forward.1} parent=1 // pred_check_branch
      %27 = sbr.rel (0) target = $region29
    $region28: #{forward.1} parent=1 // pred_region
      %29 = vsyncadd [#allocation6], 0
      %s30 = sshll.u32 %s6, 4
      %s31 = int_to_ptr.hbm [resolvable:$true] %s30
      %s32 = sshll.u32 [#allocation5], 4
      %s33 = int_to_ptr.vmem [resolvable:$true] %s32
      %38 = dma.hbm_to_vmem [thread:$0]  %s31, 18432, %s33, [#allocation6], 512, 512, 32
    $region29: #{forward.1} parent=1 // pred_fallthru
      _
    // Predicated region
    $region30: #{forward.1} parent=1 // pred_check
      _
    $region31: #{forward.1} parent=1 // pred_check_branch
      %40 = sbr.rel (0) target = $region33
    $region32: #{forward.1} parent=1 // pred_region
      _
    $region33: #{forward.1} parent=1 // pred_fallthru
      _
    // Predicated region
    $region34: #{forward.1} parent=1 // pred_check
      _
    $region35: #{forward.1} parent=1 // pred_check_branch
      %42 = sbr.rel (0) target = $region37
    $region36: #{forward.1} parent=1 // pred_region
      %44 = dma.done [#allocation6], 18432
    $region37: #{forward.1} parent=1 // pred_fallthru
      _
    %v46 = vld [vmem:[%s0] sm:$0x3f]
    %48 = vst [vmem:[#allocation1] ss:$2 sm:$0xff] %v46
    %v49 = vld.sshfl [vmem:[#allocation1] sm:$0xff pattern:$0x75643120]
    %v50 = vld.sshfl [vmem:[#allocation1 + $0x8] sm:$0xff pattern:$0x75643120]
    %53 = vst [vmem:[#allocation2] sm:$0x33] %v49
    %vm54 = vcmask 238592
    %55 = vst.msk [vmem:[#allocation2 + $0x8] sm:$0x3] %vm54, %v50
    %v56 = vld [vmem:[%s0] sm:$0x3f]
    %s58 = scalar_lea.vmem [#allocation1], 1
    %59 = vst [vmem:[%s58] ss:$2 sm:$0xff] %v56
    %v60 = vld.sshfl [vmem:[#allocation1] sm:$0xff pattern:$0x75643120]
    %v62 = vld.sshfl [vmem:[#allocation1 + $0x8] sm:$0xff pattern:$0x75643120]
    %64 = vrot.lane.b32.xlu0 %v60, 127
    %v65 = vpop.permute.xlu0 %64
    %66 = vrot.lane.b32.xlu0 %v62, 127
    %v67 = vpop.permute.xlu0 %66
    %v68 = vrot.slane %v65, 4
    %v69 = vrot.slane %v67, 4
    %vm70 = vcmask 1043456
    %v71 = vsel %vm70, %v68, %v69
    %vm72 = vcmask 1039360
    %v73 = vsel %vm72, %v65, %v71
    %76 = vst [vmem:[#allocation2] sm:$0xcc] %v73
    %vm77 = vcmask 240642
    %78 = vst.msk [vmem:[#allocation2 + $0x8] sm:$0xc] %vm77, %v67
    %v79 = vld [vmem:[%s0] sm:$0x3f]
    %81 = vst [vmem:[#allocation1] ss:$2 sm:$0xff] %v79
    %v82 = vld.sshfl [vmem:[#allocation1] sm:$0xff pattern:$0x75643120]
    %v84 = vld.sshfl [vmem:[#allocation1 + $0x8] sm:$0xff pattern:$0x75643120]
    %86 = vrot.lane.b32.xlu0 %v82, 126
    %v87 = vpop.permute.xlu0 %86
    %88 = vrot.lane.b32.xlu0 %v84, 126
    %v89 = vpop.permute.xlu0 %88
    %v90 = vrot.slane %v87, 4
    %v91 = vrot.slane %v89, 4
    %v92 = vsel %vm70, %v90, %v91
    %vm93 = vcmask 1031168
    %v94 = vsel %vm93, %v87, %v92
    %97 = vst [vmem:[#allocation2 + $0x14] sm:$0x33] %v94
    %98 = vst.msk [vmem:[#allocation2 + $0x1c] sm:$0x3] %vm54, %v89
    %v99 = vld [vmem:[%s0] sm:$0x3f]
    %s101 = scalar_lea.vmem [#allocation1], 1
    %102 = vst [vmem:[%s101] ss:$2 sm:$0xff] %v99
    %v103 = vld.sshfl [vmem:[#allocation1] sm:$0xff pattern:$0x75643120]
    %v105 = vld.sshfl [vmem:[#allocation1 + $0x8] sm:$0xff pattern:$0x75643120]
    %107 = vrot.lane.b32.xlu0 %v103, 110
    %v108 = vpop.permute.xlu0 %107
    %109 = vrot.lane.b32.xlu0 %v105, 110
    %v110 = vpop.permute.xlu0 %109
    %v111 = vrot.slane %v108, 4
    %v112 = vrot.slane %v110, 4
    %v113 = vsel %vm70, %v111, %v112
    %vm114 = vcmask 900096
    %v115 = vsel %vm114, %v108, %v113
    %118 = vst [vmem:[#allocation2 + $0x14] sm:$0xcc] %v115
    %119 = vst.msk [vmem:[#allocation2 + $0x1c] sm:$0xc] %vm77, %v110
    %v120 = vld [vmem:[%s0] sm:$0x3f]
    %122 = vst [vmem:[#allocation1] ss:$2 sm:$0xff] %v120
    %v123 = vld.sshfl [vmem:[#allocation1] sm:$0xff pattern:$0x75643120]
    %v125 = vld.sshfl [vmem:[#allocation1 + $0x8] sm:$0xff pattern:$0x75643120]
    %127 = vrot.lane.b32.xlu0 %v123, 109
    %v128 = vpop.permute.xlu0 %127
    %129 = vrot.lane.b32.xlu0 %v125, 109
    %v130 = vpop.permute.xlu0 %129
    %v131 = vrot.slane %v128, 4
    %v132 = vrot.slane %v130, 4
    %v133 = vsel %vm70, %v131, %v132
    %vm134 = vcmask 891904
    %v135 = vsel %vm134, %v128, %v133
    %138 = vst [vmem:[#allocation2 + $0x28] sm:$0x33] %v135
    %139 = vst.msk [vmem:[#allocation2 + $0x30] sm:$0x3] %vm54, %v130
    %v140 = vld [vmem:[%s0] sm:$0x3f]
    %s142 = scalar_lea.vmem [#allocation1], 1
    %143 = vst [vmem:[%s142] ss:$2 sm:$0xff] %v140
    %v144 = vld.sshfl [vmem:[#allocation1] sm:$0xff pattern:$0x75643120]
    %v146 = vld.sshfl [vmem:[#allocation1 + $0x8] sm:$0xff pattern:$0x75643120]
    %148 = vrot.lane.b32.xlu0 %v144, 108
    %v149 = vpop.permute.xlu0 %148
    %150 = vrot.lane.b32.xlu0 %v146, 108
    %v151 = vpop.permute.xlu0 %150
    %v152 = vrot.slane %v149, 4
    %v153 = vrot.slane %v151, 4
    %v154 = vsel %vm70, %v152, %v153
    %vm155 = vcmask 883712
    %v156 = vsel %vm155, %v149, %v154
    %159 = vst [vmem:[#allocation2 + $0x28] sm:$0xcc] %v156
    %160 = vst.msk [vmem:[#allocation2 + $0x30] sm:$0xc] %vm77, %v151
    %v161 = vld [vmem:[%s0] sm:$0x3f]
    %163 = vst [vmem:[#allocation1] ss:$2 sm:$0xff] %v161
    %v164 = vld.sshfl [vmem:[#allocation1] sm:$0xff pattern:$0x75643120]
    %v166 = vld.sshfl [vmem:[#allocation1 + $0x8] sm:$0xff pattern:$0x75643120]
    %168 = vrot.lane.b32.xlu0 %v164, 92
    %v169 = vpop.permute.xlu0 %168
    %170 = vrot.lane.b32.xlu0 %v166, 92
    %v171 = vpop.permute.xlu0 %170
    %v172 = vrot.slane %v169, 4
    %v173 = vrot.slane %v171, 4
    %v174 = vsel %vm70, %v172, %v173
    %vm175 = vcmask 752640
    %v176 = vsel %vm175, %v169, %v174
    %179 = vst [vmem:[#allocation2 + $0x3c] sm:$0x33] %v176
    %180 = vst.msk [vmem:[#allocation2 + $0x44] sm:$0x3] %vm54, %v171
    %v181 = vld [vmem:[%s0] sm:$0x3f]
    %s183 = scalar_lea.vmem [#allocation1], 1
    %184 = vst [vmem:[%s183] ss:$2 sm:$0xff] %v181
    %v185 = vld.sshfl [vmem:[#allocation1] sm:$0xff pattern:$0x75643120]
    %v187 = vld.sshfl [vmem:[#allocation1 + $0x8] sm:$0xff pattern:$0x75643120]
    %189 = vrot.lane.b32.xlu0 %v185, 91
    %v190 = vpop.permute.xlu0 %189
    %191 = vrot.lane.b32.xlu0 %v187, 91
    %v192 = vpop.permute.xlu0 %191
    %v193 = vrot.slane %v190, 4
    %v194 = vrot.slane %v192, 4
    %v195 = vsel %vm70, %v193, %v194
    %vm196 = vcmask 744448
    %v197 = vsel %vm196, %v190, %v195
    %200 = vst [vmem:[#allocation2 + $0x3c] sm:$0xcc] %v197
    %201 = vst.msk [vmem:[#allocation2 + $0x44] sm:$0xc] %vm77, %v192
    %v202 = vld [vmem:[%s0] sm:$0x3f]
    %204 = vst [vmem:[#allocation1] ss:$2 sm:$0xff] %v202
    %v205 = vld.sshfl [vmem:[#allocation1] sm:$0xff pattern:$0x75643120]
    %v207 = vld.sshfl [vmem:[#allocation1 + $0x8] sm:$0xff pattern:$0x75643120]
    %209 = vrot.lane.b32.xlu0 %v205, 90
    %v210 = vpop.permute.xlu0 %209
    %211 = vrot.lane.b32.xlu0 %v207, 90
    %v212 = vpop.permute.xlu0 %211
    %v213 = vrot.slane %v210, 4
    %v214 = vrot.slane %v212, 4
    %v215 = vsel %vm70, %v213, %v214
    %vm216 = vcmask 736256
    %v217 = vsel %vm216, %v210, %v215
    %220 = vst [vmem:[#allocation2 + $0x50] sm:$0x33] %v217
    %221 = vst.msk [vmem:[#allocation2 + $0x58] sm:$0x3] %vm54, %v212
    %v222 = vld [vmem:[%s0 + $0x4] sm:$0x3f]
    %224 = vst [vmem:[#allocation1] ss:$2 sm:$0xff] %v222
    %v225 = vld.sshfl [vmem:[#allocation1] sm:$0xff pattern:$0x75643120]
    %v227 = vld.sshfl [vmem:[#allocation1 + $0x8] sm:$0xff pattern:$0x75643120]
    %229 = vrot.lane.b32.xlu0 %v225, 90
    %v230 = vpop.permute.xlu0 %229
    %231 = vrot.lane.b32.xlu0 %v227, 90
    %v232 = vpop.permute.xlu0 %231
    %v233 = vrot.slane %v230, 4
    %v234 = vrot.slane %v232, 4
    %v235 = vsel %vm70, %v233, %v234
    %v236 = vsel %vm216, %v230, %v235
    %vm239 = vcmask 1041648
    %vm240 = vcmask 1045508
    %vm241 = vmor %vm240, %vm239
    %242 = vst.msk [vmem:[#allocation2 + $0x8] sm:$0x33] %vm241, %v236
    %vm243 = vcmask 484352
    %244 = vst.msk [vmem:[#allocation2 + $0x10] sm:$0x3] %vm243, %v232
    %v245 = vld [vmem:[%s0 + $0x4] sm:$0x3f]
    %s247 = scalar_lea.vmem [#allocation1], 1
    %248 = vst [vmem:[%s247] ss:$2 sm:$0xff] %v245
    %v249 = vld.sshfl [vmem:[#allocation1] sm:$0xff pattern:$0x75643120]
    %v251 = vld.sshfl [vmem:[#allocation1 + $0x8] sm:$0xff pattern:$0x75643120]
    %253 = vrot.lane.b32.xlu0 %v249, 89
    %v254 = vpop.permute.xlu0 %253
    %255 = vrot.lane.b32.xlu0 %v251, 89
    %v256 = vpop.permute.xlu0 %255
    %v257 = vrot.slane %v254, 4
    %v258 = vrot.slane %v256, 4
    %v259 = vsel %vm70, %v257, %v258
    %vm260 = vcmask 728064
    %v261 = vsel %vm260, %v254, %v259
    %vm264 = vcmask 1043698
    %vm265 = vcmask 1047558
    %vm266 = vmor %vm265, %vm264
    %267 = vst.msk [vmem:[#allocation2 + $0x8] sm:$0xcc] %vm266, %v261
    %vm268 = vcmask 486402
    %269 = vst.msk [vmem:[#allocation2 + $0x10] sm:$0xc] %vm268, %v256
    %v270 = vld [vmem:[%s0 + $0x4] sm:$0x3f]
    %272 = vst [vmem:[#allocation1] ss:$2 sm:$0xff] %v270
    %v273 = vld.sshfl [vmem:[#allocation1] sm:$0xff pattern:$0x75643120]
    %v275 = vld.sshfl [vmem:[#allocation1 + $0x8] sm:$0xff pattern:$0x75643120]
    %277 = vrot.lane.b32.xlu0 %v273, 88
    %v278 = vpop.permute.xlu0 %277
    %279 = vrot.lane.b32.xlu0 %v275, 88
    %v280 = vpop.permute.xlu0 %279
    %v281 = vrot.slane %v278, 4
    %v282 = vrot.slane %v280, 4
    %v283 = vsel %vm70, %v281, %v282
    %vm284 = vcmask 719872
    %v285 = vsel %vm284, %v278, %v283
    %288 = vst.msk [vmem:[#allocation2 + $0x1c] sm:$0x33] %vm241, %v285
    %289 = vst.msk [vmem:[#allocation2 + $0x24] sm:$0x3] %vm243, %v280
    %v290 = vld [vmem:[%s0 + $0x4] sm:$0x3f]
    %s292 = scalar_lea.vmem [#allocation1], 1
    %293 = vst [vmem:[%s292] ss:$2 sm:$0xff] %v290
    %v294 = vld.sshfl [vmem:[#allocation1] sm:$0xff pattern:$0x75643120]
    %v296 = vld.sshfl [vmem:[#allocation1 + $0x8] sm:$0xff pattern:$0x75643120]
    %298 = vrot.lane.b32.xlu0 %v294, 72
    %v299 = vpop.permute.xlu0 %298
    %300 = vrot.lane.b32.xlu0 %v296, 72
    %v301 = vpop.permute.xlu0 %300
    %v302 = vrot.slane %v299, 4
    %v303 = vrot.slane %v301, 4
    %v304 = vsel %vm70, %v302, %v303
    %vm305 = vcmask 588800
    %v306 = vsel %vm305, %v299, %v304
    %309 = vst.msk [vmem:[#allocation2 + $0x1c] sm:$0xcc] %vm266, %v306
    %310 = vst.msk [vmem:[#allocation2 + $0x24] sm:$0xc] %vm268, %v301
    %v311 = vld [vmem:[%s0 + $0x4] sm:$0x3f]
    %313 = vst [vmem:[#allocation1] ss:$2 sm:$0xff] %v311
    %v314 = vld.sshfl [vmem:[#allocation1] sm:$0xff pattern:$0x75643120]
    %v316 = vld.sshfl [vmem:[#allocation1 + $0x8] sm:$0xff pattern:$0x75643120]
    %318 = vrot.lane.b32.xlu0 %v314, 71
    %v319 = vpop.permute.xlu0 %318
    %320 = vrot.lane.b32.xlu0 %v316, 71
    %v321 = vpop.permute.xlu0 %320
    %v322 = vrot.slane %v319, 4
    %v323 = vrot.slane %v321, 4
    %v324 = vsel %vm70, %v322, %v323
    %vm325 = vcmask 580608
    %v326 = vsel %vm325, %v319, %v324
    %329 = vst.msk [vmem:[#allocation2 + $0x30] sm:$0x33] %vm241, %v326
    %330 = vst.msk [vmem:[#allocation2 + $0x38] sm:$0x3] %vm243, %v321
    %v331 = vld [vmem:[%s0 + $0x4] sm:$0x3f]
    %s333 = scalar_lea.vmem [#allocation1], 1
    %334 = vst [vmem:[%s333] ss:$2 sm:$0xff] %v331
    %v335 = vld.sshfl [vmem:[#allocation1] sm:$0xff pattern:$0x75643120]
    %v337 = vld.sshfl [vmem:[#allocation1 + $0x8] sm:$0xff pattern:$0x75643120]
    %339 = vrot.lane.b32.xlu0 %v335, 70
    %v340 = vpop.permute.xlu0 %339
    %341 = vrot.lane.b32.xlu0 %v337, 70
    %v342 = vpop.permute.xlu0 %341
    %v343 = vrot.slane %v340, 4
    %v344 = vrot.slane %v342, 4
    %v345 = vsel %vm70, %v343, %v344
    %vm346 = vcmask 572416
    %v347 = vsel %vm346, %v340, %v345
    %350 = vst.msk [vmem:[#allocation2 + $0x30] sm:$0xcc] %vm266, %v347
    %351 = vst.msk [vmem:[#allocation2 + $0x38] sm:$0xc] %vm268, %v342
    %v352 = vld [vmem:[%s0 + $0x4] sm:$0xff]
    %354 = vst [vmem:[#allocation1] ss:$2 sm:$0xff] %v352
    %v355 = vld.sshfl [vmem:[#allocation1] sm:$0xff pattern:$0x75643120]
    %v357 = vld.sshfl [vmem:[#allocation1 + $0x8] sm:$0xff pattern:$0x75643120]
    %359 = vrot.lane.b32.xlu0 %v355, 54
    %v360 = vpop.permute.xlu0 %359
    %361 = vrot.lane.b32.xlu0 %v357, 54
    %v362 = vpop.permute.xlu0 %361
    %v363 = vrot.slane %v360, 4
    %v364 = vrot.slane %v362, 4
    %v365 = vsel %vm70, %v363, %v364
    %vm366 = vcmask 441344
    %v367 = vsel %vm366, %v360, %v365
    %v368 = vsel %vm366, %v362, %v364
    %371 = vst.msk [vmem:[#allocation2 + $0x44] sm:$0x33] %vm241, %v367
    %372 = vst.msk [vmem:[#allocation2 + $0x4c] sm:$0x3] %vm243, %v368
    %v373 = vld [vmem:[%s0 + $0x4] sm:$0xff]
    %s375 = scalar_lea.vmem [#allocation1], 1
    %376 = vst [vmem:[%s375] ss:$2 sm:$0xff] %v373
    %v377 = vld.sshfl [vmem:[#allocation1] sm:$0xff pattern:$0x75643120]
    %v379 = vld.sshfl [vmem:[#allocation1 + $0x8] sm:$0xff pattern:$0x75643120]
    %381 = vrot.lane.b32.xlu0 %v377, 53
    %v382 = vpop.permute.xlu0 %381
    %383 = vrot.lane.b32.xlu0 %v379, 53
    %v384 = vpop.permute.xlu0 %383
    %v385 = vrot.slane %v382, 4
    %v386 = vrot.slane %v384, 4
    %v387 = vsel %vm70, %v385, %v386
    %vm388 = vcmask 433152
    %v389 = vsel %vm388, %v382, %v387
    %v390 = vsel %vm388, %v384, %v386
    %393 = vst.msk [vmem:[#allocation2 + $0x44] sm:$0xcc] %vm266, %v389
    %394 = vst.msk [vmem:[#allocation2 + $0x4c] sm:$0xc] %vm268, %v390
    %v395 = vld [vmem:[%s0 + $0x4] sm:$0xff]
    %397 = vst [vmem:[#allocation1] ss:$2 sm:$0xff] %v395
    %v398 = vld.sshfl [vmem:[#allocation1] sm:$0xff pattern:$0x75643120]
    %v400 = vld.sshfl [vmem:[#allocation1 + $0x8] sm:$0xff pattern:$0x75643120]
    %402 = vrot.lane.b32.xlu0 %v398, 52
    %v403 = vpop.permute.xlu0 %402
    %404 = vrot.lane.b32.xlu0 %v400, 52
    %v405 = vpop.permute.xlu0 %404
    %v406 = vrot.slane %v403, 4
    %v407 = vrot.slane %v405, 4
    %v408 = vsel %vm70, %v406, %v407
    %vm409 = vcmask 424960
    %v410 = vsel %vm409, %v403, %v408
    %v411 = vsel %vm409, %v405, %v407
    %414 = vst.msk [vmem:[#allocation2 + $0x58] sm:$0x33] %vm241, %v410
    %415 = vst.msk [vmem:[#allocation2 + $0x60] sm:$0x3] %vm243, %v411
    %v416 = vld [vmem:[%s4] sm:$0xff]
    %v417 = vld [vmem:[%s5] ss:$4 sm:$0x1f]
    %v418 = vld [vmem:[%s1] sm:$0xf]
    %v419 = vld [vmem:[#allocation2] sm:$0xff]
    %v420 = vld [vmem:[#allocation2 + $0x8] sm:$0xff]
    %v421 = vld [vmem:[#allocation2 + $0x10] sm:$0xf]
    %v422 = vld [vmem:[#allocation2 + $0x14] sm:$0xff]
    %v423 = vld [vmem:[#allocation2 + $0x1c] sm:$0xff]
    %v424 = vld [vmem:[#allocation2 + $0x24] sm:$0xf]
    %v425 = vld [vmem:[#allocation2 + $0x28] sm:$0xff]
    %v426 = vld [vmem:[#allocation2 + $0x30] sm:$0xff]
    %v427 = vld [vmem:[#allocation2 + $0x38] sm:$0xf]
    %v428 = vld [vmem:[#allocation2 + $0x3c] sm:$0xff]
    %v429 = vld [vmem:[#allocation2 + $0x44] sm:$0xff]
    %v430 = vld [vmem:[#allocation2 + $0x4c] sm:$0xf]
    %v431 = vld [vmem:[#allocation2 + $0x50] sm:$0x33]
    %v432 = vld [vmem:[#allocation2 + $0x58] sm:$0x33]
    %v433 = vld [vmem:[#allocation2 + $0x60] sm:$0x3]
    %435 = vset.pattern.permute.xlu0 0
    %436 = vperm.xlu0 %435, %v416
    %v437 = vpop.permute.xlu0 %436
    %v454 = vunpack.c.l.b16 %v419
    %v455 = vunpack.c.h.b16 %v419
    %v456 = vunpack.c.l.b16 %v420
    %v457 = vunpack.c.h.b16 %v420
    %v458 = vunpack.c.l.b16 %v421
    %v459 = vunpack.c.l.b16 %v422
    %v460 = vunpack.c.h.b16 %v422
    %v461 = vunpack.c.l.b16 %v423
    %v462 = vunpack.c.h.b16 %v423
    %v463 = vunpack.c.l.b16 %v424
    %v464 = vunpack.c.l.b16 %v425
    %v465 = vunpack.c.h.b16 %v425
    %v466 = vunpack.c.l.b16 %v426
    %v467 = vunpack.c.h.b16 %v426
    %v468 = vunpack.c.l.b16 %v427
    %v469 = vunpack.c.l.b16 %v428
    %v470 = vunpack.c.h.b16 %v428
    %v471 = vunpack.c.l.b16 %v429
    %v472 = vunpack.c.h.b16 %v429
    %v473 = vunpack.c.l.b16 %v430
    %v474 = vunpack.c.l.b16 %v431
    %v475 = vunpack.c.h.b16 %v431
    %v476 = vunpack.c.l.b16 %v432
    %v477 = vunpack.c.h.b16 %v432
    %v478 = vunpack.c.l.b16 %v433
    %v479 = vpack.c.b16 %v459, %v454
    %v480 = vpack.c.b16 %v460, %v455
    %v481 = vpack.c.b16 %v461, %v456
    %v482 = vpack.c.b16 %v462, %v457
    %v483 = vpack.c.b16 %v463, %v458
    %v484 = vpack.c.b16 %v469, %v464
    %v485 = vpack.c.b16 %v470, %v465
    %v486 = vpack.c.b16 %v471, %v466
    %v487 = vpack.c.b16 %v472, %v467
    %v488 = vpack.c.b16 %v473, %v468
    %v489 = vpack.c.b16 %v474, %v474
    %v490 = vpack.c.b16 %v475, %v475
    %v491 = vpack.c.b16 %v476, %v476
    %v492 = vpack.c.b16 %v477, %v477
    %v493 = vpack.c.b16 %v478, %v478
    %vm504 = vcmask 293888
    %v506 = vsel %vm504, %v418, 0
    %vm508 = vcmask 1041408
    %v510 = vsel %vm508, %v489, 0
    %v513 = vsel %vm508, %v490, 0
    %v516 = vsel %vm508, %v491, 0
    %v519 = vsel %vm508, %v492, 0
    %v522 = vsel %vm508, %v493, 0
    %524 = vmatpush.bf16.msra.mxu0 0
    %525 = vmatpush.bf16.msra.mxu0 0
    %526 = vmatpush.bf16.msra.mxu0 0
    %527 = vmatpush.bf16.msra.mxu0 0
    %528 = vmatpush.bf16.msra.mxu0 0
    %529 = vmatpush.bf16.msra.mxu0 %v510
    %530 = vmatpush.bf16.msra.mxu0 %v484
    %531 = vmatpush.bf16.msra.mxu0 %v479
    %532 = vmatmul.bf16.gmra.mxu0 %v506
    %v533 = vpop.f32.mrf.mxu0
    %v534 = vadd.f32 %v437, %v533
    %v535 = vpop.f32.mrf.mxu0
    %536 = vdwg.mxu0
    %537 = vmatpush.bf16.msra.mxu0 0
    %538 = vmatpush.bf16.msra.mxu0 0
    %539 = vmatpush.bf16.msra.mxu0 0
    %540 = vmatpush.bf16.msra.mxu0 0
    %541 = vmatpush.bf16.msra.mxu0 0
    %542 = vmatpush.bf16.msra.mxu0 %v513
    %543 = vmatpush.bf16.msra.mxu0 %v485
    %544 = vmatpush.bf16.msra.mxu0 %v480
    %545 = vmatmul.bf16.gmra.mxu0 %v506
    %v546 = vpop.f32.mrf.mxu0
    %v547 = vadd.f32 %v437, %v546
    %v548 = vpop.f32.mrf.mxu0
    %549 = vdwg.mxu0
    %550 = vmatpush.bf16.msra.mxu0 0
    %551 = vmatpush.bf16.msra.mxu0 0
    %552 = vmatpush.bf16.msra.mxu0 0
    %553 = vmatpush.bf16.msra.mxu0 0
    %554 = vmatpush.bf16.msra.mxu0 0
    %555 = vmatpush.bf16.msra.mxu0 %v516
    %556 = vmatpush.bf16.msra.mxu0 %v486
    %557 = vmatpush.bf16.msra.mxu0 %v481
    %558 = vmatmul.bf16.gmra.mxu0 %v506
    %v559 = vpop.f32.mrf.mxu0
    %v560 = vadd.f32 %v437, %v559
    %v561 = vpop.f32.mrf.mxu0
    %562 = vdwg.mxu0
    %563 = vmatpush.bf16.msra.mxu0 0
    %564 = vmatpush.bf16.msra.mxu0 0
    %565 = vmatpush.bf16.msra.mxu0 0
    %566 = vmatpush.bf16.msra.mxu0 0
    %567 = vmatpush.bf16.msra.mxu0 0
    %568 = vmatpush.bf16.msra.mxu0 %v519
    %569 = vmatpush.bf16.msra.mxu0 %v487
    %570 = vmatpush.bf16.msra.mxu0 %v482
    %571 = vmatmul.bf16.gmra.mxu0 %v506
    %v572 = vpop.f32.mrf.mxu0
    %v573 = vadd.f32 %v437, %v572
    %v574 = vpop.f32.mrf.mxu0
    %575 = vdwg.mxu0
    %576 = vmatpush.bf16.msra.mxu0 0
    %577 = vmatpush.bf16.msra.mxu0 0
    %578 = vmatpush.bf16.msra.mxu0 0
    %579 = vmatpush.bf16.msra.mxu0 0
    %580 = vmatpush.bf16.msra.mxu0 0
    %581 = vmatpush.bf16.msra.mxu0 %v522
    %582 = vmatpush.bf16.msra.mxu0 %v488
    %583 = vmatpush.bf16.msra.mxu0 %v483
    %584 = vmatmul.bf16.gmra.mxu0 %v506
    %v585 = vpop.f32.mrf.mxu0
    %v586 = vadd.f32 %v437, %v585
    %v587 = vpop.f32.mrf.mxu0
    %588 = vdwg.mxu0
    %v590 = vperm.slane %v417, 0
    %v591 = vperm.slane %v417, 1
    %v592 = vperm.slane %v417, 2
    %v593 = vperm.slane %v417, 3
    %v594 = vperm.slane %v417, 4
    %v600 = vmul.f32 %v534, %v590
    %v601 = vmul.f32 %v547, %v591
    %v602 = vmul.f32 %v560, %v592
    %v603 = vmul.f32 %v573, %v593
    %v604 = vmul.f32 %v586, %v594
    %v605 = vadd.f32 %v600, %v601
    %v606 = vadd.f32 %v605, %v602
    %v607 = vadd.f32 %v606, %v603
    %vm608 = vcmask 490496
    %v609 = vsel %vm608, %v604, 0.0
    %v610 = vadd.f32 %v607, %v609
    %611 = vadd.xlane.f32.xlu0 %v610
    %v612 = vpop.xlane.xlu0 %611
    %v613 = vmul.f32 %v612, 0.001953125
    %v614 = vmul.f32 %v600, %v534
    %v615 = vmul.f32 %v601, %v547
    %v616 = vmul.f32 %v602, %v560
    %v617 = vmul.f32 %v603, %v573
    %v618 = vmul.f32 %v604, %v586
    %v619 = vadd.f32 %v614, %v615
    %v620 = vadd.f32 %v619, %v616
    %v621 = vadd.f32 %v620, %v617
    %v622 = vsel %vm608, %v618, 0.0
    %v623 = vadd.f32 %v621, %v622
    %624 = vadd.xlane.f32.xlu0 %v623
    %v625 = vpop.xlane.xlu0 %624
    %v626 = vmul.f32 %v625, 0.001953125
    %v627 = vmul.f32 %v613, %v613
    %v628 = vsub.f32 %v626, %v627
    %v629 = vmax.f32 %v628, 0.0
    %v630 = vadd.f32 %v629, 1e-05
    %v631 = vrsqrt.pop %v630
    %v632 = vmul.f32 %v631, %v630
    %v633 = vmul.f32 %v632, %v631
    %v634 = vmul.f32 0.5, %v633
    %v635 = vsub.f32 1.5, %v634
    %v636 = vmul.f32 %v631, %v635
    %vm637 = vweird.f32 %v630
    %vm638 = vweird.f32 %v631
    %vm639 = vmor %vm637, %vm638
    %v640 = vsel %vm639, %v631, %v636
    %v641 = vmul.f32 %v416, %v640
    %v642 = vmul.f32 %v613, %v641
    %644 = vrot.lane.b32.xlu0 %v642, 1
    %v645 = vpop.permute.xlu0 %644
    %v647 = vsub.f32 %v416, %v645
    %649 = vset.pattern.permute.xlu0 1
    %650 = vperm.xlu0 %649, %v641
    %v651 = vpop.permute.xlu0 %650
    %v653 = vmul.f32 %v534, %v651
    %v654 = vmul.f32 %v547, %v651
    %v655 = vmul.f32 %v560, %v651
    %v656 = vmul.f32 %v573, %v651
    %v657 = vmul.f32 %v586, %v651
    %659 = vset.pattern.permute.xlu0 2
    %660 = vperm.xlu0 %659, %v647
    %v661 = vpop.permute.xlu0 %660
    %v663 = vadd.f32 %v653, %v661
    %v664 = vadd.f32 %v654, %v661
    %v665 = vadd.f32 %v655, %v661
    %v666 = vadd.f32 %v656, %v661
    %v667 = vadd.f32 %v657, %v661
    %v668 = vmax.f32 %v663, 0.0
    %v669 = vmax.f32 %v664, 0.0
    %v670 = vmax.f32 %v665, 0.0
    %v671 = vmax.f32 %v666, 0.0
    %v672 = vmax.f32 %v667, 0.0
    %v673 = vmul.f32 %v668, %v590
    %v674 = vmul.f32 %v669, %v591
    %v675 = vmul.f32 %v670, %v592
    %v676 = vmul.f32 %v671, %v593
    %v677 = vmul.f32 %v672, %v594
    %v678 = vpack.c.bf16 %v674, %v673
    %v679 = vpack.c.bf16 %v676, %v675
    %v680 = vpack.c.bf16 %v677, %v677
    %681 = vst [vmem:[#allocation3] sm:$0xff] 0
    %682 = vst [vmem:[#allocation3 + $0x8] sm:$0xff] 0
    %vm683 = vcmask 1043456
    %vm684 = vcmask 64516
    %vm685 = vmor %vm684, %vm683
    %686 = vst.msk [vmem:[#allocation3 + $0x10] sm:$0xff] %vm685, 0
    %689 = vrot.lane.b32.xlu0 %v678, 19
    %v690 = vpop.permute.xlu0 %689
    %691 = vrot.lane.b32.xlu0 %v679, 19
    %v692 = vpop.permute.xlu0 %691
    %v693 = vrot.slane %v690, 4
    %vm694 = vcmask 154624
    %v695 = vsel %vm694, %v693, %v690
    %v696 = vsel %vm694, %v693, %v692
    %vm699 = vcmask 1043608
    %vm700 = vcmask 1047556
    %vm701 = vmor %vm700, %vm699
    %702 = vst.msk [vmem:[#allocation3] sm:$0xff] %vm701, %v695
    %vm703 = vcmask 396288
    %704 = vst.msk [vmem:[#allocation3 + $0x8] sm:$0xf] %vm703, %v696
    %706 = vrot.lane.b32.xlu0 %v679, 57
    %v707 = vpop.permute.xlu0 %706
    %708 = vrot.lane.b32.xlu0 %v680, 57
    %v709 = vpop.permute.xlu0 %708
    %v710 = vrot.slane %v707, 4
    %vm711 = vcmask 465920
    %v712 = vsel %vm711, %v710, %v707
    %v713 = vsel %vm711, %v710, %v709
    %vm716 = vcmask 1044152
    %vm717 = vmor %vm700, %vm716
    %718 = vst.msk [vmem:[#allocation3 + $0x8] sm:$0xff] %vm717, %v712
    %vm719 = vcmask 953344
    %720 = vst.msk [vmem:[#allocation3 + $0x10] sm:$0xf] %vm719, %v713
    %v721 = vld [vmem:[#allocation3] sm:$0xff]
    %v722 = vld [vmem:[#allocation3 + $0x8] sm:$0xf]
    %723 = vst [vmem:[#allocation2] sm:$0xff] %v721
    %vm724 = vcmask 216064
    %725 = vst.msk [vmem:[#allocation2 + $0x8] sm:$0xf] %vm724, %v722
    %v726 = vld [vmem:[#allocation3] sm:$0xff]
    %v727 = vld [vmem:[#allocation3 + $0x8] sm:$0xf]
    %730 = vrot.lane.b32.xlu0 %v726, 127
    %v731 = vpop.permute.xlu0 %730
    %732 = vrot.lane.b32.xlu0 %v727, 127
    %v733 = vpop.permute.xlu0 %732
    %v734 = vrot.slane %v731, 4
    %v735 = vrot.slane %v733, 4
    %v736 = vsel %vm70, %v734, %v735
    %v737 = vsel %vm72, %v731, %v736
    %740 = vst [vmem:[#allocation2 + $0x14] sm:$0xff] %v737
    %741 = vst.msk [vmem:[#allocation2 + $0x1c] sm:$0xf] %vm724, %v733
    %v742 = vld [vmem:[#allocation3] sm:$0xff]
    %v743 = vld [vmem:[#allocation3 + $0x8] sm:$0xf]
    %746 = vrot.lane.b32.xlu0 %v742, 126
    %v747 = vpop.permute.xlu0 %746
    %748 = vrot.lane.b32.xlu0 %v743, 126
    %v749 = vpop.permute.xlu0 %748
    %v750 = vrot.slane %v747, 4
    %v751 = vrot.slane %v749, 4
    %v752 = vsel %vm70, %v750, %v751
    %v753 = vsel %vm93, %v747, %v752
    %756 = vst [vmem:[#allocation2 + $0x28] sm:$0xff] %v753
    %757 = vst.msk [vmem:[#allocation2 + $0x30] sm:$0xf] %vm724, %v749
    %v758 = vld [vmem:[#allocation3] sm:$0xff]
    %v759 = vld [vmem:[#allocation3 + $0x8] sm:$0xf]
    %762 = vrot.lane.b32.xlu0 %v758, 125
    %v763 = vpop.permute.xlu0 %762
    %764 = vrot.lane.b32.xlu0 %v759, 125
    %v765 = vpop.permute.xlu0 %764
    %v766 = vrot.slane %v763, 4
    %v767 = vrot.slane %v765, 4
    %v768 = vsel %vm70, %v766, %v767
    %vm769 = vcmask 1022976
    %v770 = vsel %vm769, %v763, %v768
    %773 = vst [vmem:[#allocation2 + $0x3c] sm:$0xff] %v770
    %774 = vst.msk [vmem:[#allocation2 + $0x44] sm:$0xf] %vm724, %v765
    %v775 = vld [vmem:[#allocation3] sm:$0xff]
    %v776 = vld [vmem:[#allocation3 + $0x8] sm:$0xf]
    %779 = vrot.lane.b32.xlu0 %v775, 124
    %v780 = vpop.permute.xlu0 %779
    %781 = vrot.lane.b32.xlu0 %v776, 124
    %v782 = vpop.permute.xlu0 %781
    %v783 = vrot.slane %v780, 4
    %v784 = vrot.slane %v782, 4
    %v785 = vsel %vm70, %v783, %v784
    %vm786 = vcmask 1014784
    %v787 = vsel %vm786, %v780, %v785
    %790 = vst [vmem:[#allocation2 + $0x50] sm:$0xff] %v787
    %791 = vst.msk [vmem:[#allocation2 + $0x58] sm:$0xf] %vm724, %v782
    %v792 = vld [vmem:[#allocation3] sm:$0xff]
    %v793 = vld [vmem:[#allocation3 + $0x8] sm:$0xf]
    %796 = vrot.lane.b32.xlu0 %v792, 123
    %v797 = vpop.permute.xlu0 %796
    %798 = vrot.lane.b32.xlu0 %v793, 123
    %v799 = vpop.permute.xlu0 %798
    %v800 = vrot.slane %v797, 4
    %v801 = vrot.slane %v799, 4
    %v802 = vsel %vm70, %v800, %v801
    %vm803 = vcmask 1006592
    %v804 = vsel %vm803, %v797, %v802
    %807 = vst [vmem:[#allocation2 + $0x64] sm:$0xff] %v804
    %808 = vst.msk [vmem:[#allocation2 + $0x6c] sm:$0xf] %vm724, %v799
    %v809 = vld [vmem:[#allocation3] sm:$0xff]
    %v810 = vld [vmem:[#allocation3 + $0x8] sm:$0xf]
    %813 = vrot.lane.b32.xlu0 %v809, 110
    %v814 = vpop.permute.xlu0 %813
    %815 = vrot.lane.b32.xlu0 %v810, 110
    %v816 = vpop.permute.xlu0 %815
    %v817 = vrot.slane %v814, 4
    %v818 = vrot.slane %v816, 4
    %v819 = vsel %vm70, %v817, %v818
    %v820 = vsel %vm114, %v814, %v819
    %823 = vst [vmem:[#allocation2 + $0x78] sm:$0xff] %v820
    %824 = vst.msk [vmem:[#allocation2 + $0x80] sm:$0xf] %vm724, %v816
    %v825 = vld [vmem:[#allocation3] sm:$0xff]
    %v826 = vld [vmem:[#allocation3 + $0x8] sm:$0xf]
    %829 = vrot.lane.b32.xlu0 %v825, 109
    %v830 = vpop.permute.xlu0 %829
    %831 = vrot.lane.b32.xlu0 %v826, 109
    %v832 = vpop.permute.xlu0 %831
    %v833 = vrot.slane %v830, 4
    %v834 = vrot.slane %v832, 4
    %v835 = vsel %vm70, %v833, %v834
    %v836 = vsel %vm134, %v830, %v835
    %839 = vst [vmem:[#allocation2 + $0x8c] sm:$0xff] %v836
    %840 = vst.msk [vmem:[#allocation2 + $0x94] sm:$0xf] %vm724, %v832
    %v841 = vld [vmem:[#allocation3] sm:$0xff]
    %v842 = vld [vmem:[#allocation3 + $0x8] sm:$0xf]
    %845 = vrot.lane.b32.xlu0 %v841, 108
    %v846 = vpop.permute.xlu0 %845
    %847 = vrot.lane.b32.xlu0 %v842, 108
    %v848 = vpop.permute.xlu0 %847
    %v849 = vrot.slane %v846, 4
    %v850 = vrot.slane %v848, 4
    %v851 = vsel %vm70, %v849, %v850
    %v852 = vsel %vm155, %v846, %v851
    %855 = vst [vmem:[#allocation2 + $0xa0] sm:$0xff] %v852
    %856 = vst.msk [vmem:[#allocation2 + $0xa8] sm:$0xf] %vm724, %v848
    %v857 = vld [vmem:[#allocation3] sm:$0xff]
    %v858 = vld [vmem:[#allocation3 + $0x8] sm:$0xf]
    %861 = vrot.lane.b32.xlu0 %v857, 107
    %v862 = vpop.permute.xlu0 %861
    %863 = vrot.lane.b32.xlu0 %v858, 107
    %v864 = vpop.permute.xlu0 %863
    %v865 = vrot.slane %v862, 4
    %v866 = vrot.slane %v864, 4
    %v867 = vsel %vm70, %v865, %v866
    %vm868 = vcmask 875520
    %v869 = vsel %vm868, %v862, %v867
    %872 = vst [vmem:[#allocation2 + $0xb4] sm:$0xff] %v869
    %873 = vst.msk [vmem:[#allocation2 + $0xbc] sm:$0xf] %vm724, %v864
    %v874 = vld [vmem:[#allocation3] sm:$0xff]
    %v875 = vld [vmem:[#allocation3 + $0x8] sm:$0xf]
    %878 = vrot.lane.b32.xlu0 %v874, 106
    %v879 = vpop.permute.xlu0 %878
    %880 = vrot.lane.b32.xlu0 %v875, 106
    %v881 = vpop.permute.xlu0 %880
    %v882 = vrot.slane %v879, 4
    %v883 = vrot.slane %v881, 4
    %v884 = vsel %vm70, %v882, %v883
    %vm885 = vcmask 867328
    %v886 = vsel %vm885, %v879, %v884
    %889 = vst [vmem:[#allocation2 + $0xc8] sm:$0xff] %v886
    %890 = vst.msk [vmem:[#allocation2 + $0xd0] sm:$0xf] %vm724, %v881
    %v891 = vld [vmem:[#allocation3] sm:$0xff]
    %v892 = vld [vmem:[#allocation3 + $0x8] sm:$0xf]
    %895 = vrot.lane.b32.xlu0 %v891, 105
    %v896 = vpop.permute.xlu0 %895
    %897 = vrot.lane.b32.xlu0 %v892, 105
    %v898 = vpop.permute.xlu0 %897
    %v899 = vrot.slane %v896, 4
    %v900 = vrot.slane %v898, 4
    %v901 = vsel %vm70, %v899, %v900
    %vm902 = vcmask 859136
    %v903 = vsel %vm902, %v896, %v901
    %906 = vst [vmem:[#allocation2 + $0xdc] sm:$0xff] %v903
    %907 = vst.msk [vmem:[#allocation2 + $0xe4] sm:$0xf] %vm724, %v898
    %v908 = vld [vmem:[#allocation3] sm:$0xff]
    %v909 = vld [vmem:[#allocation3 + $0x8] sm:$0xf]
    %912 = vrot.lane.b32.xlu0 %v908, 92
    %v913 = vpop.permute.xlu0 %912
    %914 = vrot.lane.b32.xlu0 %v909, 92
    %v915 = vpop.permute.xlu0 %914
    %v916 = vrot.slane %v913, 4
    %v917 = vrot.slane %v915, 4
    %v918 = vsel %vm70, %v916, %v917
    %v919 = vsel %vm175, %v913, %v918
    %922 = vst [vmem:[#allocation2 + $0xf0] sm:$0xff] %v919
    %923 = vst.msk [vmem:[#allocation2 + $0xf8] sm:$0xf] %vm724, %v915
    %v924 = vld [vmem:[#allocation3] sm:$0xff]
    %v925 = vld [vmem:[#allocation3 + $0x8] sm:$0xf]
    %928 = vrot.lane.b32.xlu0 %v924, 91
    %v929 = vpop.permute.xlu0 %928
    %930 = vrot.lane.b32.xlu0 %v925, 91
    %v931 = vpop.permute.xlu0 %930
    %v932 = vrot.slane %v929, 4
    %v933 = vrot.slane %v931, 4
    %v934 = vsel %vm70, %v932, %v933
    %v935 = vsel %vm196, %v929, %v934
    %938 = vst [vmem:[#allocation2 + $0x104] sm:$0xff] %v935
    %939 = vst.msk [vmem:[#allocation2 + $0x10c] sm:$0xf] %vm724, %v931
    %v940 = vld [vmem:[#allocation3] sm:$0xff]
    %v941 = vld [vmem:[#allocation3 + $0x8] sm:$0xf]
    %944 = vrot.lane.b32.xlu0 %v940, 90
    %v945 = vpop.permute.xlu0 %944
    %946 = vrot.lane.b32.xlu0 %v941, 90
    %v947 = vpop.permute.xlu0 %946
    %v948 = vrot.slane %v945, 4
    %v949 = vrot.slane %v947, 4
    %v950 = vsel %vm70, %v948, %v949
    %v951 = vsel %vm216, %v945, %v950
    %954 = vst [vmem:[#allocation2 + $0x118] sm:$0xff] %v951
    %955 = vst.msk [vmem:[#allocation2 + $0x120] sm:$0xf] %vm724, %v947
    %v956 = vld [vmem:[#allocation3] sm:$0xff]
    %v957 = vld [vmem:[#allocation3 + $0x8] sm:$0xf]
    %960 = vrot.lane.b32.xlu0 %v956, 89
    %v961 = vpop.permute.xlu0 %960
    %962 = vrot.lane.b32.xlu0 %v957, 89
    %v963 = vpop.permute.xlu0 %962
    %v964 = vrot.slane %v961, 4
    %v965 = vrot.slane %v963, 4
    %v966 = vsel %vm70, %v964, %v965
    %v967 = vsel %vm260, %v961, %v966
    %970 = vst [vmem:[#allocation2 + $0x12c] sm:$0xff] %v967
    %971 = vst.msk [vmem:[#allocation2 + $0x134] sm:$0xf] %vm724, %v963
    %v972 = vld [vmem:[#allocation3] sm:$0xff]
    %v973 = vld [vmem:[#allocation3 + $0x8] sm:$0xf]
    %976 = vrot.lane.b32.xlu0 %v972, 88
    %v977 = vpop.permute.xlu0 %976
    %978 = vrot.lane.b32.xlu0 %v973, 88
    %v979 = vpop.permute.xlu0 %978
    %v980 = vrot.slane %v977, 4
    %v981 = vrot.slane %v979, 4
    %v982 = vsel %vm70, %v980, %v981
    %v983 = vsel %vm284, %v977, %v982
    %986 = vst [vmem:[#allocation2 + $0x140] sm:$0xff] %v983
    %987 = vst.msk [vmem:[#allocation2 + $0x148] sm:$0xf] %vm724, %v979
    %v988 = vld [vmem:[#allocation3] sm:$0xff]
    %v989 = vld [vmem:[#allocation3 + $0x8] sm:$0xf]
    %992 = vrot.lane.b32.xlu0 %v988, 87
    %v993 = vpop.permute.xlu0 %992
    %994 = vrot.lane.b32.xlu0 %v989, 87
    %v995 = vpop.permute.xlu0 %994
    %v996 = vrot.slane %v993, 4
    %v997 = vrot.slane %v995, 4
    %v998 = vsel %vm70, %v996, %v997
    %vm999 = vcmask 711680
    %v1000 = vsel %vm999, %v993, %v998
    %1003 = vst [vmem:[#allocation2 + $0x154] sm:$0xff] %v1000
    %1004 = vst.msk [vmem:[#allocation2 + $0x15c] sm:$0xf] %vm724, %v995
    %v1005 = vld [vmem:[#allocation3 + $0x8] sm:$0xff]
    %v1006 = vld [vmem:[#allocation3 + $0x10] sm:$0xf]
    %1009 = vrot.lane.b32.xlu0 %v1005, 87
    %v1010 = vpop.permute.xlu0 %1009
    %1011 = vrot.lane.b32.xlu0 %v1006, 87
    %v1012 = vpop.permute.xlu0 %1011
    %v1013 = vrot.slane %v1010, 4
    %v1014 = vrot.slane %v1012, 4
    %v1015 = vsel %vm70, %v1013, %v1014
    %v1016 = vsel %vm999, %v1010, %v1015
    %vm1019 = vcmask 1043672
    %vm1020 = vmor %vm700, %vm1019
    %1021 = vst.msk [vmem:[#allocation2 + $0x8] sm:$0xff] %vm1020, %v1016
    %vm1022 = vcmask 437248
    %1023 = vst.msk [vmem:[#allocation2 + $0x10] sm:$0xf] %vm1022, %v1012
    %v1024 = vld [vmem:[#allocation3 + $0x8] sm:$0xff]
    %v1025 = vld [vmem:[#allocation3 + $0x10] sm:$0xf]
    %1028 = vrot.lane.b32.xlu0 %v1024, 86
    %v1029 = vpop.permute.xlu0 %1028
    %1030 = vrot.lane.b32.xlu0 %v1025, 86
    %v1031 = vpop.permute.xlu0 %1030
    %v1032 = vrot.slane %v1029, 4
    %v1033 = vrot.slane %v1031, 4
    %v1034 = vsel %vm70, %v1032, %v1033
    %vm1035 = vcmask 703488
    %v1036 = vsel %vm1035, %v1029, %v1034
    %1039 = vst.msk [vmem:[#allocation2 + $0x1c] sm:$0xff] %vm1020, %v1036
    %1040 = vst.msk [vmem:[#allocation2 + $0x24] sm:$0xf] %vm1022, %v1031
    %v1041 = vld [vmem:[#allocation3 + $0x8] sm:$0xff]
    %v1042 = vld [vmem:[#allocation3 + $0x10] sm:$0xf]
    %1045 = vrot.lane.b32.xlu0 %v1041, 85
    %v1046 = vpop.permute.xlu0 %1045
    %1047 = vrot.lane.b32.xlu0 %v1042, 85
    %v1048 = vpop.permute.xlu0 %1047
    %v1049 = vrot.slane %v1046, 4
    %v1050 = vrot.slane %v1048, 4
    %v1051 = vsel %vm70, %v1049, %v1050
    %vm1052 = vcmask 695296
    %v1053 = vsel %vm1052, %v1046, %v1051
    %1056 = vst.msk [vmem:[#allocation2 + $0x30] sm:$0xff] %vm1020, %v1053
    %1057 = vst.msk [vmem:[#allocation2 + $0x38] sm:$0xf] %vm1022, %v1048
    %v1058 = vld [vmem:[#allocation3 + $0x8] sm:$0xff]
    %v1059 = vld [vmem:[#allocation3 + $0x10] sm:$0xf]
    %1062 = vrot.lane.b32.xlu0 %v1058, 84
    %v1063 = vpop.permute.xlu0 %1062
    %1064 = vrot.lane.b32.xlu0 %v1059, 84
    %v1065 = vpop.permute.xlu0 %1064
    %v1066 = vrot.slane %v1063, 4
    %v1067 = vrot.slane %v1065, 4
    %v1068 = vsel %vm70, %v1066, %v1067
    %vm1069 = vcmask 687104
    %v1070 = vsel %vm1069, %v1063, %v1068
    %1073 = vst.msk [vmem:[#allocation2 + $0x44] sm:$0xff] %vm1020, %v1070
    %1074 = vst.msk [vmem:[#allocation2 + $0x4c] sm:$0xf] %vm1022, %v1065
    %v1075 = vld [vmem:[#allocation3 + $0x8] sm:$0xff]
    %v1076 = vld [vmem:[#allocation3 + $0x10] sm:$0xf]
    %1079 = vrot.lane.b32.xlu0 %v1075, 83
    %v1080 = vpop.permute.xlu0 %1079
    %1081 = vrot.lane.b32.xlu0 %v1076, 83
    %v1082 = vpop.permute.xlu0 %1081
    %v1083 = vrot.slane %v1080, 4
    %v1084 = vrot.slane %v1082, 4
    %v1085 = vsel %vm70, %v1083, %v1084
    %vm1086 = vcmask 678912
    %v1087 = vsel %vm1086, %v1080, %v1085
    %1090 = vst.msk [vmem:[#allocation2 + $0x58] sm:$0xff] %vm1020, %v1087
    %1091 = vst.msk [vmem:[#allocation2 + $0x60] sm:$0xf] %vm1022, %v1082
    %v1092 = vld [vmem:[#allocation3 + $0x8] sm:$0xff]
    %v1093 = vld [vmem:[#allocation3 + $0x10] sm:$0xf]
    %1096 = vrot.lane.b32.xlu0 %v1092, 82
    %v1097 = vpop.permute.xlu0 %1096
    %1098 = vrot.lane.b32.xlu0 %v1093, 82
    %v1099 = vpop.permute.xlu0 %1098
    %v1100 = vrot.slane %v1097, 4
    %v1101 = vrot.slane %v1099, 4
    %v1102 = vsel %vm70, %v1100, %v1101
    %vm1103 = vcmask 670720
    %v1104 = vsel %vm1103, %v1097, %v1102
    %1107 = vst.msk [vmem:[#allocation2 + $0x6c] sm:$0xff] %vm1020, %v1104
    %1108 = vst.msk [vmem:[#allocation2 + $0x74] sm:$0xf] %vm1022, %v1099
    %v1109 = vld [vmem:[#allocation3 + $0x8] sm:$0xff]
    %v1110 = vld [vmem:[#allocation3 + $0x10] sm:$0xf]
    %1113 = vrot.lane.b32.xlu0 %v1109, 69
    %v1114 = vpop.permute.xlu0 %1113
    %1115 = vrot.lane.b32.xlu0 %v1110, 69
    %v1116 = vpop.permute.xlu0 %1115
    %v1117 = vrot.slane %v1114, 4
    %v1118 = vrot.slane %v1116, 4
    %v1119 = vsel %vm70, %v1117, %v1118
    %vm1120 = vcmask 564224
    %v1121 = vsel %vm1120, %v1114, %v1119
    %1124 = vst.msk [vmem:[#allocation2 + $0x80] sm:$0xff] %vm1020, %v1121
    %1125 = vst.msk [vmem:[#allocation2 + $0x88] sm:$0xf] %vm1022, %v1116
    %v1126 = vld [vmem:[#allocation3 + $0x8] sm:$0xff]
    %v1127 = vld [vmem:[#allocation3 + $0x10] sm:$0xf]
    %1130 = vrot.lane.b32.xlu0 %v1126, 68
    %v1131 = vpop.permute.xlu0 %1130
    %1132 = vrot.lane.b32.xlu0 %v1127, 68
    %v1133 = vpop.permute.xlu0 %1132
    %v1134 = vrot.slane %v1131, 4
    %v1135 = vrot.slane %v1133, 4
    %v1136 = vsel %vm70, %v1134, %v1135
    %vm1137 = vcmask 556032
    %v1138 = vsel %vm1137, %v1131, %v1136
    %1141 = vst.msk [vmem:[#allocation2 + $0x94] sm:$0xff] %vm1020, %v1138
    %1142 = vst.msk [vmem:[#allocation2 + $0x9c] sm:$0xf] %vm1022, %v1133
    %v1143 = vld [vmem:[#allocation3 + $0x8] sm:$0xff]
    %v1144 = vld [vmem:[#allocation3 + $0x10] sm:$0xf]
    %1147 = vrot.lane.b32.xlu0 %v1143, 67
    %v1148 = vpop.permute.xlu0 %1147
    %1149 = vrot.lane.b32.xlu0 %v1144, 67
    %v1150 = vpop.permute.xlu0 %1149
    %v1151 = vrot.slane %v1148, 4
    %v1152 = vrot.slane %v1150, 4
    %v1153 = vsel %vm70, %v1151, %v1152
    %vm1154 = vcmask 547840
    %v1155 = vsel %vm1154, %v1148, %v1153
    %1158 = vst.msk [vmem:[#allocation2 + $0xa8] sm:$0xff] %vm1020, %v1155
    %1159 = vst.msk [vmem:[#allocation2 + $0xb0] sm:$0xf] %vm1022, %v1150
    %v1160 = vld [vmem:[#allocation3 + $0x8] sm:$0xff]
    %v1161 = vld [vmem:[#allocation3 + $0x10] sm:$0xf]
    %1164 = vrot.lane.b32.xlu0 %v1160, 66
    %v1165 = vpop.permute.xlu0 %1164
    %1166 = vrot.lane.b32.xlu0 %v1161, 66
    %v1167 = vpop.permute.xlu0 %1166
    %v1168 = vrot.slane %v1165, 4
    %v1169 = vrot.slane %v1167, 4
    %v1170 = vsel %vm70, %v1168, %v1169
    %vm1171 = vcmask 539648
    %v1172 = vsel %vm1171, %v1165, %v1170
    %1175 = vst.msk [vmem:[#allocation2 + $0xbc] sm:$0xff] %vm1020, %v1172
    %1176 = vst.msk [vmem:[#allocation2 + $0xc4] sm:$0xf] %vm1022, %v1167
    %v1177 = vld [vmem:[#allocation3 + $0x8] sm:$0xff]
    %v1178 = vld [vmem:[#allocation3 + $0x10] sm:$0xf]
    %1181 = vrot.lane.b32.xlu0 %v1177, 65
    %v1182 = vpop.permute.xlu0 %1181
    %1183 = vrot.lane.b32.xlu0 %v1178, 65
    %v1184 = vpop.permute.xlu0 %1183
    %v1185 = vrot.slane %v1182, 4
    %v1186 = vrot.slane %v1184, 4
    %v1187 = vsel %vm70, %v1185, %v1186
    %vm1188 = vcmask 531456
    %v1189 = vsel %vm1188, %v1182, %v1187
    %1192 = vst.msk [vmem:[#allocation2 + $0xd0] sm:$0xff] %vm1020, %v1189
    %1193 = vst.msk [vmem:[#allocation2 + $0xd8] sm:$0xf] %vm1022, %v1184
    %v1194 = vld [vmem:[#allocation3 + $0x8] sm:$0xff]
    %v1195 = vld [vmem:[#allocation3 + $0x10] sm:$0xf]
    %1198 = vrot.lane.b32.xlu0 %v1194, 64
    %v1199 = vpop.permute.xlu0 %1198
    %1200 = vrot.lane.b32.xlu0 %v1195, 64
    %v1201 = vpop.permute.xlu0 %1200
    %v1202 = vrot.slane %v1199, 4
    %v1203 = vrot.slane %v1201, 4
    %v1204 = vsel %vm70, %v1202, %v1203
    %vm1205 = vcmask 523264
    %v1206 = vsel %vm1205, %v1199, %v1204
    %1209 = vst.msk [vmem:[#allocation2 + $0xe4] sm:$0xff] %vm1020, %v1206
    %1210 = vst.msk [vmem:[#allocation2 + $0xec] sm:$0xf] %vm1022, %v1201
    %v1211 = vld [vmem:[#allocation3 + $0x8] sm:$0xff]
    %v1212 = vld [vmem:[#allocation3 + $0x10] sm:$0xff]
    %1215 = vrot.lane.b32.xlu0 %v1211, 51
    %v1216 = vpop.permute.xlu0 %1215
    %1217 = vrot.lane.b32.xlu0 %v1212, 51
    %v1218 = vpop.permute.xlu0 %1217
    %v1219 = vrot.slane %v1216, 4
    %v1220 = vrot.slane %v1218, 4
    %v1221 = vsel %vm70, %v1219, %v1220
    %vm1222 = vcmask 416768
    %v1223 = vsel %vm1222, %v1216, %v1221
    %v1224 = vsel %vm1222, %v1218, %v1220
    %1227 = vst.msk [vmem:[#allocation2 + $0xf8] sm:$0xff] %vm1020, %v1223
    %1228 = vst.msk [vmem:[#allocation2 + $0x100] sm:$0xf] %vm1022, %v1224
    %v1229 = vld [vmem:[#allocation3 + $0x8] sm:$0xff]
    %v1230 = vld [vmem:[#allocation3 + $0x10] sm:$0xff]
    %1233 = vrot.lane.b32.xlu0 %v1229, 50
    %v1234 = vpop.permute.xlu0 %1233
    %1235 = vrot.lane.b32.xlu0 %v1230, 50
    %v1236 = vpop.permute.xlu0 %1235
    %v1237 = vrot.slane %v1234, 4
    %v1238 = vrot.slane %v1236, 4
    %v1239 = vsel %vm70, %v1237, %v1238
    %vm1240 = vcmask 408576
    %v1241 = vsel %vm1240, %v1234, %v1239
    %v1242 = vsel %vm1240, %v1236, %v1238
    %1245 = vst.msk [vmem:[#allocation2 + $0x10c] sm:$0xff] %vm1020, %v1241
    %1246 = vst.msk [vmem:[#allocation2 + $0x114] sm:$0xf] %vm1022, %v1242
    %v1247 = vld [vmem:[#allocation3 + $0x8] sm:$0xff]
    %v1248 = vld [vmem:[#allocation3 + $0x10] sm:$0xff]
    %1251 = vrot.lane.b32.xlu0 %v1247, 49
    %v1252 = vpop.permute.xlu0 %1251
    %1253 = vrot.lane.b32.xlu0 %v1248, 49
    %v1254 = vpop.permute.xlu0 %1253
    %v1255 = vrot.slane %v1252, 4
    %v1256 = vrot.slane %v1254, 4
    %v1257 = vsel %vm70, %v1255, %v1256
    %vm1258 = vcmask 400384
    %v1259 = vsel %vm1258, %v1252, %v1257
    %v1260 = vsel %vm1258, %v1254, %v1256
    %1263 = vst.msk [vmem:[#allocation2 + $0x120] sm:$0xff] %vm1020, %v1259
    %1264 = vst.msk [vmem:[#allocation2 + $0x128] sm:$0xf] %vm1022, %v1260
    %v1265 = vld [vmem:[#allocation3 + $0x8] sm:$0xff]
    %v1266 = vld [vmem:[#allocation3 + $0x10] sm:$0xff]
    %1269 = vrot.lane.b32.xlu0 %v1265, 48
    %v1270 = vpop.permute.xlu0 %1269
    %1271 = vrot.lane.b32.xlu0 %v1266, 48
    %v1272 = vpop.permute.xlu0 %1271
    %v1273 = vrot.slane %v1270, 4
    %v1274 = vrot.slane %v1272, 4
    %v1275 = vsel %vm70, %v1273, %v1274
    %vm1276 = vcmask 392192
    %v1277 = vsel %vm1276, %v1270, %v1275
    %v1278 = vsel %vm1276, %v1272, %v1274
    %1281 = vst.msk [vmem:[#allocation2 + $0x134] sm:$0xff] %vm1020, %v1277
    %1282 = vst.msk [vmem:[#allocation2 + $0x13c] sm:$0xf] %vm1022, %v1278
    %v1283 = vld [vmem:[#allocation3 + $0x8] sm:$0xff]
    %v1284 = vld [vmem:[#allocation3 + $0x10] sm:$0xff]
    %1287 = vrot.lane.b32.xlu0 %v1283, 47
    %v1288 = vpop.permute.xlu0 %1287
    %1289 = vrot.lane.b32.xlu0 %v1284, 47
    %v1290 = vpop.permute.xlu0 %1289
    %v1291 = vrot.slane %v1288, 4
    %v1292 = vrot.slane %v1290, 4
    %v1293 = vsel %vm70, %v1291, %v1292
    %vm1294 = vcmask 384000
    %v1295 = vsel %vm1294, %v1288, %v1293
    %v1296 = vsel %vm1294, %v1290, %v1292
    %1299 = vst.msk [vmem:[#allocation2 + $0x148] sm:$0xff] %vm1020, %v1295
    %1300 = vst.msk [vmem:[#allocation2 + $0x150] sm:$0xf] %vm1022, %v1296
    %v1301 = vld [vmem:[#allocation3 + $0x8] sm:$0xff]
    %v1302 = vld [vmem:[#allocation3 + $0x10] sm:$0xff]
    %1305 = vrot.lane.b32.xlu0 %v1301, 46
    %v1306 = vpop.permute.xlu0 %1305
    %1307 = vrot.lane.b32.xlu0 %v1302, 46
    %v1308 = vpop.permute.xlu0 %1307
    %v1309 = vrot.slane %v1306, 4
    %v1310 = vrot.slane %v1308, 4
    %v1311 = vsel %vm70, %v1309, %v1310
    %vm1312 = vcmask 375808
    %v1313 = vsel %vm1312, %v1306, %v1311
    %v1314 = vsel %vm1312, %v1308, %v1310
    %1317 = vst.msk [vmem:[#allocation2 + $0x15c] sm:$0xff] %vm1020, %v1313
    %1318 = vst.msk [vmem:[#allocation2 + $0x164] sm:$0xf] %vm1022, %v1314
    %v1319 = vld [vmem:[%s4] sm:$0xff]
    %v1320 = vld [vmem:[%s4 + $0x8] sm:$0xff]
    %s1321 = scalar_lea.vmem %s5, 1
    %v1322 = vld [vmem:[%s1321] ss:$4 sm:$0x1f]
    %v1323 = vld [vmem:[%s2] sm:$0xff]
    %v1324 = vld [vmem:[%s2 + $0x8] sm:$0xff]
    %v1325 = vld [vmem:[#allocation2] sm:$0xff]
    %v1326 = vld [vmem:[#allocation2 + $0x8] sm:$0xff]
    %v1327 = vld [vmem:[#allocation2 + $0x10] sm:$0xf]
    %v1328 = vld [vmem:[#allocation2 + $0x14] sm:$0xff]
    %v1329 = vld [vmem:[#allocation2 + $0x1c] sm:$0xff]
    %v1330 = vld [vmem:[#allocation2 + $0x24] sm:$0xf]
    %v1331 = vld [vmem:[#allocation2 + $0x28] sm:$0xff]
    %v1332 = vld [vmem:[#allocation2 + $0x30] sm:$0xff]
    %v1333 = vld [vmem:[#allocation2 + $0x38] sm:$0xf]
    %v1334 = vld [vmem:[#allocation2 + $0x3c] sm:$0xff]
    %v1335 = vld [vmem:[#allocation2 + $0x44] sm:$0xff]
    %v1336 = vld [vmem:[#allocation2 + $0x4c] sm:$0xf]
    %v1337 = vld [vmem:[#allocation2 + $0x50] sm:$0xff]
    %v1338 = vld [vmem:[#allocation2 + $0x58] sm:$0xff]
    %v1339 = vld [vmem:[#allocation2 + $0x60] sm:$0xf]
    %v1340 = vld [vmem:[#allocation2 + $0x64] sm:$0xff]
    %v1341 = vld [vmem:[#allocation2 + $0x6c] sm:$0xff]
    %v1342 = vld [vmem:[#allocation2 + $0x74] sm:$0xf]
    %v1343 = vld [vmem:[#allocation2 + $0x78] sm:$0xff]
    %v1344 = vld [vmem:[#allocation2 + $0x80] sm:$0xff]
    %v1345 = vld [vmem:[#allocation2 + $0x88] sm:$0xf]
    %v1346 = vld [vmem:[#allocation2 + $0x8c] sm:$0xff]
    %v1347 = vld [vmem:[#allocation2 + $0x94] sm:$0xff]
    %v1348 = vld [vmem:[#allocation2 + $0x9c] sm:$0xf]
    %v1349 = vld [vmem:[#allocation2 + $0xa0] sm:$0xff]
    %v1350 = vld [vmem:[#allocation2 + $0xa8] sm:$0xff]
    %v1351 = vld [vmem:[#allocation2 + $0xb0] sm:$0xf]
    %v1352 = vld [vmem:[#allocation2 + $0xb4] sm:$0xff]
    %v1353 = vld [vmem:[#allocation2 + $0xbc] sm:$0xff]
    %v1354 = vld [vmem:[#allocation2 + $0xc4] sm:$0xf]
    %v1355 = vld [vmem:[#allocation2 + $0xc8] sm:$0xff]
    %v1356 = vld [vmem:[#allocation2 + $0xd0] sm:$0xff]
    %v1357 = vld [vmem:[#allocation2 + $0xd8] sm:$0xf]
    %v1358 = vld [vmem:[#allocation2 + $0xdc] sm:$0xff]
    %v1359 = vld [vmem:[#allocation2 + $0xe4] sm:$0xff]
    %v1360 = vld [vmem:[#allocation2 + $0xec] sm:$0xf]
    %v1361 = vld [vmem:[#allocation2 + $0xf0] sm:$0xff]
    %v1362 = vld [vmem:[#allocation2 + $0xf8] sm:$0xff]
    %v1363 = vld [vmem:[#allocation2 + $0x100] sm:$0xf]
    %v1364 = vld [vmem:[#allocation2 + $0x104] sm:$0xff]
    %v1365 = vld [vmem:[#allocation2 + $0x10c] sm:$0xff]
    %v1366 = vld [vmem:[#allocation2 + $0x114] sm:$0xf]
    %v1367 = vld [vmem:[#allocation2 + $0x118] sm:$0xff]
    %v1368 = vld [vmem:[#allocation2 + $0x120] sm:$0xff]
    %v1369 = vld [vmem:[#allocation2 + $0x128] sm:$0xf]
    %v1370 = vld [vmem:[#allocation2 + $0x12c] sm:$0xff]
    %v1371 = vld [vmem:[#allocation2 + $0x134] sm:$0xff]
    %v1372 = vld [vmem:[#allocation2 + $0x13c] sm:$0xf]
    %v1373 = vld [vmem:[#allocation2 + $0x140] sm:$0xff]
    %v1374 = vld [vmem:[#allocation2 + $0x148] sm:$0xff]
    %v1375 = vld [vmem:[#allocation2 + $0x150] sm:$0xf]
    %v1376 = vld [vmem:[#allocation2 + $0x154] sm:$0xff]
    %v1377 = vld [vmem:[#allocation2 + $0x15c] sm:$0xff]
    %v1378 = vld [vmem:[#allocation2 + $0x164] sm:$0xf]
    %1380 = vset.pattern.permute.xlu0 3
    %1381 = vperm.xlu0 %1380, %v1319
    %v1382 = vpop.permute.xlu0 %1381
    %1385 = vset.pattern.permute.xlu0 3
    %1386 = vperm.xlu0 %1385, %v1320
    %v1387 = vpop.permute.xlu0 %1386
    %v1391 = vunpack.c.l.b16 %v1323
    %v1392 = vunpack.c.h.b16 %v1323
    %v1393 = vunpack.c.l.b16 %v1324
    %v1394 = vunpack.c.h.b16 %v1324
    %v1395 = vpack.c.b16 %v1393, %v1391
    %v1396 = vpack.c.b16 %v1394, %v1392
    %v1452 = vunpack.c.l.b16 %v1325
    %v1453 = vunpack.c.h.b16 %v1325
    %v1454 = vunpack.c.l.b16 %v1326
    %v1455 = vunpack.c.h.b16 %v1326
    %v1456 = vunpack.c.l.b16 %v1327
    %v1457 = vunpack.c.l.b16 %v1328
    %v1458 = vunpack.c.h.b16 %v1328
    %v1459 = vunpack.c.l.b16 %v1329
    %v1460 = vunpack.c.h.b16 %v1329
    %v1461 = vunpack.c.l.b16 %v1330
    %v1462 = vunpack.c.l.b16 %v1331
    %v1463 = vunpack.c.h.b16 %v1331
    %v1464 = vunpack.c.l.b16 %v1332
    %v1465 = vunpack.c.h.b16 %v1332
    %v1466 = vunpack.c.l.b16 %v1333
    %v1467 = vunpack.c.l.b16 %v1334
    %v1468 = vunpack.c.h.b16 %v1334
    %v1469 = vunpack.c.l.b16 %v1335
    %v1470 = vunpack.c.h.b16 %v1335
    %v1471 = vunpack.c.l.b16 %v1336
    %v1472 = vunpack.c.l.b16 %v1337
    %v1473 = vunpack.c.h.b16 %v1337
    %v1474 = vunpack.c.l.b16 %v1338
    %v1475 = vunpack.c.h.b16 %v1338
    %v1476 = vunpack.c.l.b16 %v1339
    %v1477 = vunpack.c.l.b16 %v1340
    %v1478 = vunpack.c.h.b16 %v1340
    %v1479 = vunpack.c.l.b16 %v1341
    %v1480 = vunpack.c.h.b16 %v1341
    %v1481 = vunpack.c.l.b16 %v1342
    %v1482 = vunpack.c.l.b16 %v1343
    %v1483 = vunpack.c.h.b16 %v1343
    %v1484 = vunpack.c.l.b16 %v1344
    %v1485 = vunpack.c.h.b16 %v1344
    %v1486 = vunpack.c.l.b16 %v1345
    %v1487 = vunpack.c.l.b16 %v1346
    %v1488 = vunpack.c.h.b16 %v1346
    %v1489 = vunpack.c.l.b16 %v1347
    %v1490 = vunpack.c.h.b16 %v1347
    %v1491 = vunpack.c.l.b16 %v1348
    %v1492 = vunpack.c.l.b16 %v1349
    %v1493 = vunpack.c.h.b16 %v1349
    %v1494 = vunpack.c.l.b16 %v1350
    %v1495 = vunpack.c.h.b16 %v1350
    %v1496 = vunpack.c.l.b16 %v1351
    %v1497 = vunpack.c.l.b16 %v1352
    %v1498 = vunpack.c.h.b16 %v1352
    %v1499 = vunpack.c.l.b16 %v1353
    %v1500 = vunpack.c.h.b16 %v1353
    %v1501 = vunpack.c.l.b16 %v1354
    %v1502 = vunpack.c.l.b16 %v1355
    %v1503 = vunpack.c.h.b16 %v1355
    %v1504 = vunpack.c.l.b16 %v1356
    %v1505 = vunpack.c.h.b16 %v1356
    %v1506 = vunpack.c.l.b16 %v1357
    %v1507 = vunpack.c.l.b16 %v1358
    %v1508 = vunpack.c.h.b16 %v1358
    %v1509 = vunpack.c.l.b16 %v1359
    %v1510 = vunpack.c.h.b16 %v1359
    %v1511 = vunpack.c.l.b16 %v1360
    %v1512 = vunpack.c.l.b16 %v1361
    %v1513 = vunpack.c.h.b16 %v1361
    %v1514 = vunpack.c.l.b16 %v1362
    %v1515 = vunpack.c.h.b16 %v1362
    %v1516 = vunpack.c.l.b16 %v1363
    %v1517 = vunpack.c.l.b16 %v1364
    %v1518 = vunpack.c.h.b16 %v1364
    %v1519 = vunpack.c.l.b16 %v1365
    %v1520 = vunpack.c.h.b16 %v1365
    %v1521 = vunpack.c.l.b16 %v1366
    %v1522 = vunpack.c.l.b16 %v1367
    %v1523 = vunpack.c.h.b16 %v1367
    %v1524 = vunpack.c.l.b16 %v1368
    %v1525 = vunpack.c.h.b16 %v1368
    %v1526 = vunpack.c.l.b16 %v1369
    %v1527 = vunpack.c.l.b16 %v1370
    %v1528 = vunpack.c.h.b16 %v1370
    %v1529 = vunpack.c.l.b16 %v1371
    %v1530 = vunpack.c.h.b16 %v1371
    %v1531 = vunpack.c.l.b16 %v1372
    %v1532 = vunpack.c.l.b16 %v1373
    %v1533 = vunpack.c.h.b16 %v1373
    %v1534 = vunpack.c.l.b16 %v1374
    %v1535 = vunpack.c.h.b16 %v1374
    %v1536 = vunpack.c.l.b16 %v1375
    %v1537 = vunpack.c.l.b16 %v1376
    %v1538 = vunpack.c.h.b16 %v1376
    %v1539 = vunpack.c.l.b16 %v1377
    %v1540 = vunpack.c.h.b16 %v1377
    %v1541 = vunpack.c.l.b16 %v1378
    %v1542 = vpack.c.b16 %v1457, %v1452
    %v1543 = vpack.c.b16 %v1458, %v1453
    %v1544 = vpack.c.b16 %v1459, %v1454
    %v1545 = vpack.c.b16 %v1460, %v1455
    %v1546 = vpack.c.b16 %v1461, %v1456
    %v1547 = vpack.c.b16 %v1467, %v1462
    %v1548 = vpack.c.b16 %v1468, %v1463
    %v1549 = vpack.c.b16 %v1469, %v1464
    %v1550 = vpack.c.b16 %v1470, %v1465
    %v1551 = vpack.c.b16 %v1471, %v1466
    %v1552 = vpack.c.b16 %v1477, %v1472
    %v1553 = vpack.c.b16 %v1478, %v1473
    %v1554 = vpack.c.b16 %v1479, %v1474
    %v1555 = vpack.c.b16 %v1480, %v1475
    %v1556 = vpack.c.b16 %v1481, %v1476
    %v1557 = vpack.c.b16 %v1487, %v1482
    %v1558 = vpack.c.b16 %v1488, %v1483
    %v1559 = vpack.c.b16 %v1489, %v1484
    %v1560 = vpack.c.b16 %v1490, %v1485
    %v1561 = vpack.c.b16 %v1491, %v1486
    %v1562 = vpack.c.b16 %v1497, %v1492
    %v1563 = vpack.c.b16 %v1498, %v1493
    %v1564 = vpack.c.b16 %v1499, %v1494
    %v1565 = vpack.c.b16 %v1500, %v1495
    %v1566 = vpack.c.b16 %v1501, %v1496
    %v1567 = vpack.c.b16 %v1507, %v1502
    %v1568 = vpack.c.b16 %v1508, %v1503
    %v1569 = vpack.c.b16 %v1509, %v1504
    %v1570 = vpack.c.b16 %v1510, %v1505
    %v1571 = vpack.c.b16 %v1511, %v1506
    %v1572 = vpack.c.b16 %v1517, %v1512
    %v1573 = vpack.c.b16 %v1518, %v1513
    %v1574 = vpack.c.b16 %v1519, %v1514
    %v1575 = vpack.c.b16 %v1520, %v1515
    %v1576 = vpack.c.b16 %v1521, %v1516
    %v1577 = vpack.c.b16 %v1527, %v1522
    %v1578 = vpack.c.b16 %v1528, %v1523
    %v1579 = vpack.c.b16 %v1529, %v1524
    %v1580 = vpack.c.b16 %v1530, %v1525
    %v1581 = vpack.c.b16 %v1531, %v1526
    %v1582 = vpack.c.b16 %v1537, %v1532
    %v1583 = vpack.c.b16 %v1538, %v1533
    %v1584 = vpack.c.b16 %v1539, %v1534
    %v1585 = vpack.c.b16 %v1540, %v1535
    %v1586 = vpack.c.b16 %v1541, %v1536
    %vm1632 = vcmask 130048
    %v1634 = vsel %vm1632, %v1396, 0
    %1636 = vmatpush.bf16.msra.mxu0 %v1577
    %1637 = vmatpush.bf16.msra.mxu0 %v1572
    %1638 = vmatpush.bf16.msra.mxu0 %v1567
    %1639 = vmatpush.bf16.msra.mxu0 %v1562
    %1640 = vmatpush.bf16.msra.mxu0 %v1557
    %1641 = vmatpush.bf16.msra.mxu0 %v1552
    %1642 = vmatpush.bf16.msra.mxu0 %v1547
    %1643 = vmatpush.bf16.msra.mxu0 %v1542
    %1644 = vmatmul.bf16.gmra.mxu0 %v1395
    %v1645 = vpop.f32.mrf.mxu0
    %v1646 = vadd.f32 %v1382, %v1645
    %v1647 = vpop.f32.mrf.mxu0
    %v1648 = vadd.f32 %v1387, %v1647
    %1649 = vdwg.mxu0
    %1650 = vmatpush.bf16.msra.mxu0 0
    %1651 = vmatpush.bf16.msra.mxu0 0
    %1652 = vmatpush.bf16.msra.mxu0 0
    %1653 = vmatpush.bf16.msra.mxu0 0
    %1654 = vmatpush.bf16.msra.mxu0 0
    %1655 = vmatpush.bf16.msra.mxu0 0
    %1656 = vmatpush.bf16.msra.mxu0 0
    %1657 = vmatpush.bf16.msra.mxu0 %v1582
    %1658 = vmatmul.bf16.gmra.mxu0 %v1634
    %v1659 = vpop.f32.mrf.mxu0
    %v1660 = vadd.f32 %v1646, %v1659
    %v1661 = vpop.f32.mrf.mxu0
    %v1662 = vadd.f32 %v1648, %v1661
    %1663 = vdwg.mxu0
    %1664 = vmatpush.bf16.msra.mxu0 %v1578
    %1665 = vmatpush.bf16.msra.mxu0 %v1573
    %1666 = vmatpush.bf16.msra.mxu0 %v1568
    %1667 = vmatpush.bf16.msra.mxu0 %v1563
    %1668 = vmatpush.bf16.msra.mxu0 %v1558
    %1669 = vmatpush.bf16.msra.mxu0 %v1553
    %1670 = vmatpush.bf16.msra.mxu0 %v1548
    %1671 = vmatpush.bf16.msra.mxu0 %v1543
    %1672 = vmatmul.bf16.gmra.mxu0 %v1395
    %v1673 = vpop.f32.mrf.mxu0
    %v1674 = vadd.f32 %v1382, %v1673
    %v1675 = vpop.f32.mrf.mxu0
    %v1676 = vadd.f32 %v1387, %v1675
    %1677 = vdwg.mxu0
    %1678 = vmatpush.bf16.msra.mxu0 0
    %1679 = vmatpush.bf16.msra.mxu0 0
    %1680 = vmatpush.bf16.msra.mxu0 0
    %1681 = vmatpush.bf16.msra.mxu0 0
    %1682 = vmatpush.bf16.msra.mxu0 0
    %1683 = vmatpush.bf16.msra.mxu0 0
    %1684 = vmatpush.bf16.msra.mxu0 0
    %1685 = vmatpush.bf16.msra.mxu0 %v1583
    %1686 = vmatmul.bf16.gmra.mxu0 %v1634
    %v1687 = vpop.f32.mrf.mxu0
    %v1688 = vadd.f32 %v1674, %v1687
    %v1689 = vpop.f32.mrf.mxu0
    %v1690 = vadd.f32 %v1676, %v1689
    %1691 = vdwg.mxu0
    %1692 = vmatpush.bf16.msra.mxu0 %v1579
    %1693 = vmatpush.bf16.msra.mxu0 %v1574
    %1694 = vmatpush.bf16.msra.mxu0 %v1569
    %1695 = vmatpush.bf16.msra.mxu0 %v1564
    %1696 = vmatpush.bf16.msra.mxu0 %v1559
    %1697 = vmatpush.bf16.msra.mxu0 %v1554
    %1698 = vmatpush.bf16.msra.mxu0 %v1549
    %1699 = vmatpush.bf16.msra.mxu0 %v1544
    %1700 = vmatmul.bf16.gmra.mxu0 %v1395
    %v1701 = vpop.f32.mrf.mxu0
    %v1702 = vadd.f32 %v1382, %v1701
    %v1703 = vpop.f32.mrf.mxu0
    %v1704 = vadd.f32 %v1387, %v1703
    %1705 = vdwg.mxu0
    %1706 = vmatpush.bf16.msra.mxu0 0
    %1707 = vmatpush.bf16.msra.mxu0 0
    %1708 = vmatpush.bf16.msra.mxu0 0
    %1709 = vmatpush.bf16.msra.mxu0 0
    %1710 = vmatpush.bf16.msra.mxu0 0
    %1711 = vmatpush.bf16.msra.mxu0 0
    %1712 = vmatpush.bf16.msra.mxu0 0
    %1713 = vmatpush.bf16.msra.mxu0 %v1584
    %1714 = vmatmul.bf16.gmra.mxu0 %v1634
    %v1715 = vpop.f32.mrf.mxu0
    %v1716 = vadd.f32 %v1702, %v1715
    %v1717 = vpop.f32.mrf.mxu0
    %v1718 = vadd.f32 %v1704, %v1717
    %1719 = vdwg.mxu0
    %1720 = vmatpush.bf16.msra.mxu0 %v1580
    %1721 = vmatpush.bf16.msra.mxu0 %v1575
    %1722 = vmatpush.bf16.msra.mxu0 %v1570
    %1723 = vmatpush.bf16.msra.mxu0 %v1565
    %1724 = vmatpush.bf16.msra.mxu0 %v1560
    %1725 = vmatpush.bf16.msra.mxu0 %v1555
    %1726 = vmatpush.bf16.msra.mxu0 %v1550
    %1727 = vmatpush.bf16.msra.mxu0 %v1545
    %1728 = vmatmul.bf16.gmra.mxu0 %v1395
    %v1729 = vpop.f32.mrf.mxu0
    %v1730 = vadd.f32 %v1382, %v1729
    %v1731 = vpop.f32.mrf.mxu0
    %v1732 = vadd.f32 %v1387, %v1731
    %1733 = vdwg.mxu0
    %1734 = vmatpush.bf16.msra.mxu0 0
    %1735 = vmatpush.bf16.msra.mxu0 0
    %1736 = vmatpush.bf16.msra.mxu0 0
    %1737 = vmatpush.bf16.msra.mxu0 0
    %1738 = vmatpush.bf16.msra.mxu0 0
    %1739 = vmatpush.bf16.msra.mxu0 0
    %1740 = vmatpush.bf16.msra.mxu0 0
    %1741 = vmatpush.bf16.msra.mxu0 %v1585
    %1742 = vmatmul.bf16.gmra.mxu0 %v1634
    %v1743 = vpop.f32.mrf.mxu0
    %v1744 = vadd.f32 %v1730, %v1743
    %v1745 = vpop.f32.mrf.mxu0
    %v1746 = vadd.f32 %v1732, %v1745
    %1747 = vdwg.mxu0
    %1748 = vmatpush.bf16.msra.mxu0 %v1581
    %1749 = vmatpush.bf16.msra.mxu0 %v1576
    %1750 = vmatpush.bf16.msra.mxu0 %v1571
    %1751 = vmatpush.bf16.msra.mxu0 %v1566
    %1752 = vmatpush.bf16.msra.mxu0 %v1561
    %1753 = vmatpush.bf16.msra.mxu0 %v1556
    %1754 = vmatpush.bf16.msra.mxu0 %v1551
    %1755 = vmatpush.bf16.msra.mxu0 %v1546
    %1756 = vmatmul.bf16.gmra.mxu0 %v1395
    %v1757 = vpop.f32.mrf.mxu0
    %v1758 = vadd.f32 %v1382, %v1757
    %v1759 = vpop.f32.mrf.mxu0
    %v1760 = vadd.f32 %v1387, %v1759
    %1761 = vdwg.mxu0
    %1762 = vmatpush.bf16.msra.mxu0 0
    %1763 = vmatpush.bf16.msra.mxu0 0
    %1764 = vmatpush.bf16.msra.mxu0 0
    %1765 = vmatpush.bf16.msra.mxu0 0
    %1766 = vmatpush.bf16.msra.mxu0 0
    %1767 = vmatpush.bf16.msra.mxu0 0
    %1768 = vmatpush.bf16.msra.mxu0 0
    %1769 = vmatpush.bf16.msra.mxu0 %v1586
    %1770 = vmatmul.bf16.gmra.mxu0 %v1634
    %v1771 = vpop.f32.mrf.mxu0
    %v1772 = vadd.f32 %v1758, %v1771
    %v1773 = vpop.f32.mrf.mxu0
    %v1774 = vadd.f32 %v1760, %v1773
    %1775 = vdwg.mxu0
    %v1777 = vperm.slane %v1322, 0
    %v1778 = vperm.slane %v1322, 1
    %v1779 = vperm.slane %v1322, 2
    %v1780 = vperm.slane %v1322, 3
    %v1781 = vperm.slane %v1322, 4
    %v1787 = vmul.f32 %v1660, %v1777
    %v1788 = vmul.f32 %v1688, %v1778
    %v1789 = vmul.f32 %v1716, %v1779
    %v1790 = vmul.f32 %v1744, %v1780
    %v1791 = vmul.f32 %v1772, %v1781
    %v1792 = vmul.f32 %v1662, %v1777
    %v1793 = vmul.f32 %v1690, %v1778
    %v1794 = vmul.f32 %v1718, %v1779
    %v1795 = vmul.f32 %v1746, %v1780
    %v1796 = vmul.f32 %v1774, %v1781
    %v1797 = vadd.f32 %v1787, %v1788
    %v1798 = vadd.f32 %v1797, %v1789
    %v1799 = vadd.f32 %v1798, %v1790
    %vm1800 = vcmask 441344
    %v1801 = vsel %vm1800, %v1791, 0.0
    %v1802 = vadd.f32 %v1799, %v1801
    %1803 = vadd.xlane.f32.xlu0 %v1802
    %v1804 = vpop.xlane.xlu0 %1803
    %v1805 = vadd.f32 %v1792, %v1793
    %v1806 = vadd.f32 %v1805, %v1794
    %v1807 = vadd.f32 %v1806, %v1795
    %v1808 = vsel %vm1800, %v1796, 0.0
    %v1809 = vadd.f32 %v1807, %v1808
    %1810 = vadd.xlane.f32.xlu0 %v1809
    %v1811 = vpop.xlane.xlu0 %1810
    %v1812 = vmul.f32 %v1804, 0.0024038462
    %v1813 = vmul.f32 %v1811, 0.0024038462
    %v1814 = vmul.f32 %v1787, %v1660
    %v1815 = vmul.f32 %v1788, %v1688
    %v1816 = vmul.f32 %v1789, %v1716
    %v1817 = vmul.f32 %v1790, %v1744
    %v1818 = vmul.f32 %v1791, %v1772
    %v1819 = vmul.f32 %v1792, %v1662
    %v1820 = vmul.f32 %v1793, %v1690
    %v1821 = vmul.f32 %v1794, %v1718
    %v1822 = vmul.f32 %v1795, %v1746
    %v1823 = vmul.f32 %v1796, %v1774
    %v1824 = vadd.f32 %v1814, %v1815
    %v1825 = vadd.f32 %v1824, %v1816
    %v1826 = vadd.f32 %v1825, %v1817
    %v1827 = vsel %vm1800, %v1818, 0.0
    %v1828 = vadd.f32 %v1826, %v1827
    %1829 = vadd.xlane.f32.xlu0 %v1828
    %v1830 = vpop.xlane.xlu0 %1829
    %v1831 = vadd.f32 %v1819, %v1820
    %v1832 = vadd.f32 %v1831, %v1821
    %v1833 = vadd.f32 %v1832, %v1822
    %v1834 = vsel %vm1800, %v1823, 0.0
    %v1835 = vadd.f32 %v1833, %v1834
    %1836 = vadd.xlane.f32.xlu0 %v1835
    %v1837 = vpop.xlane.xlu0 %1836
    %v1838 = vmul.f32 %v1830, 0.0024038462
    %v1839 = vmul.f32 %v1837, 0.0024038462
    %v1840 = vmul.f32 %v1812, %v1812
    %v1841 = vmul.f32 %v1813, %v1813
    %v1842 = vsub.f32 %v1838, %v1840
    %v1843 = vsub.f32 %v1839, %v1841
    %v1844 = vmax.f32 %v1842, 0.0
    %v1845 = vmax.f32 %v1843, 0.0
    %v1846 = vadd.f32 %v1844, 1e-05
    %v1847 = vadd.f32 %v1845, 1e-05
    %v1848 = vrsqrt.pop %v1846
    %v1849 = vmul.f32 %v1848, %v1846
    %v1850 = vmul.f32 %v1849, %v1848
    %v1851 = vmul.f32 0.5, %v1850
    %v1852 = vsub.f32 1.5, %v1851
    %v1853 = vmul.f32 %v1848, %v1852
    %vm1854 = vweird.f32 %v1846
    %vm1855 = vweird.f32 %v1848
    %vm1856 = vmor %vm1854, %vm1855
    %v1857 = vsel %vm1856, %v1848, %v1853
    %v1858 = vrsqrt.pop %v1847
    %v1859 = vmul.f32 %v1858, %v1847
    %v1860 = vmul.f32 %v1859, %v1858
    %v1861 = vmul.f32 0.5, %v1860
    %v1862 = vsub.f32 1.5, %v1861
    %v1863 = vmul.f32 %v1858, %v1862
    %vm1864 = vweird.f32 %v1847
    %vm1865 = vweird.f32 %v1858
    %vm1866 = vmor %vm1864, %vm1865
    %v1867 = vsel %vm1866, %v1858, %v1863
    %v1868 = vmul.f32 %v1319, %v1857
    %v1869 = vmul.f32 %v1320, %v1867
    %v1870 = vmul.f32 %v1812, %v1868
    %v1871 = vmul.f32 %v1813, %v1869
    %1874 = vrot.lane.b32.xlu0 %v1870, 1
    %v1875 = vpop.permute.xlu0 %1874
    %1876 = vrot.lane.b32.xlu0 %v1871, 1
    %v1877 = vpop.permute.xlu0 %1876
    %v1880 = vsub.f32 %v1319, %v1875
    %v1881 = vsub.f32 %v1320, %v1877
    %1883 = vset.pattern.permute.xlu0 4
    %1884 = vperm.xlu0 %1883, %v1868
    %v1885 = vpop.permute.xlu0 %1884
    %1888 = vset.pattern.permute.xlu0 4
    %1889 = vperm.xlu0 %1888, %v1869
    %v1890 = vpop.permute.xlu0 %1889
    %v1892 = vmul.f32 %v1660, %v1885
    %v1893 = vmul.f32 %v1688, %v1885
    %v1894 = vmul.f32 %v1716, %v1885
    %v1895 = vmul.f32 %v1744, %v1885
    %v1896 = vmul.f32 %v1772, %v1885
    %v1897 = vmul.f32 %v1662, %v1890
    %v1898 = vmul.f32 %v1690, %v1890
    %v1899 = vmul.f32 %v1718, %v1890
    %v1900 = vmul.f32 %v1746, %v1890
    %v1901 = vmul.f32 %v1774, %v1890
    %1903 = vset.pattern.permute.xlu0 5
    %1904 = vperm.xlu0 %1903, %v1880
    %v1905 = vpop.permute.xlu0 %1904
    %1908 = vset.pattern.permute.xlu0 5
    %1909 = vperm.xlu0 %1908, %v1881
    %v1910 = vpop.permute.xlu0 %1909
    %v1912 = vadd.f32 %v1892, %v1905
    %v1913 = vadd.f32 %v1893, %v1905
    %v1914 = vadd.f32 %v1894, %v1905
    %v1915 = vadd.f32 %v1895, %v1905
    %v1916 = vadd.f32 %v1896, %v1905
    %v1917 = vadd.f32 %v1897, %v1910
    %v1918 = vadd.f32 %v1898, %v1910
    %v1919 = vadd.f32 %v1899, %v1910
    %v1920 = vadd.f32 %v1900, %v1910
    %v1921 = vadd.f32 %v1901, %v1910
    %v1922 = vmax.f32 %v1912, 0.0
    %v1923 = vmax.f32 %v1913, 0.0
    %v1924 = vmax.f32 %v1914, 0.0
    %v1925 = vmax.f32 %v1915, 0.0
    %v1926 = vmax.f32 %v1916, 0.0
    %v1927 = vmax.f32 %v1917, 0.0
    %v1928 = vmax.f32 %v1918, 0.0
    %v1929 = vmax.f32 %v1919, 0.0
    %v1930 = vmax.f32 %v1920, 0.0
    %v1931 = vmax.f32 %v1921, 0.0
    %v1932 = vpack.c.bf16 %v1923, %v1922
    %v1933 = vpack.c.bf16 %v1925, %v1924
    %v1934 = vpack.c.bf16 %v1926, %v1926
    %v1935 = vpack.c.bf16 %v1928, %v1927
    %v1936 = vpack.c.bf16 %v1930, %v1929
    %v1937 = vpack.c.bf16 %v1931, %v1931
    %v1938 = vld [vmem:[#allocation5] sm:$0xff]
    %v1939 = vld [vmem:[#allocation5 + $0x8] sm:$0xff]
    %v1940 = vld [vmem:[#allocation5 + $0x10] sm:$0xff]
    %v1941 = vld [vmem:[#allocation5 + $0x18] sm:$0xff]
    %v1942 = vld [vmem:[#allocation5 + $0x20] sm:$0xff]
    %v1943 = vld [vmem:[#allocation5 + $0x28] sm:$0xff]
    %v1944 = vld [vmem:[#allocation5 + $0x30] sm:$0xff]
    %v1945 = vld [vmem:[#allocation5 + $0x38] sm:$0xff]
    %v1946 = vld [vmem:[#allocation5 + $0x40] sm:$0xff]
    %v1947 = vld [vmem:[#allocation5 + $0x48] sm:$0xff]
    %v1948 = vld [vmem:[#allocation5 + $0x50] sm:$0xff]
    %v1949 = vld [vmem:[#allocation5 + $0x58] sm:$0xff]
    %v1950 = vld [vmem:[#allocation5 + $0x60] sm:$0xff]
    %v1951 = vld [vmem:[#allocation5 + $0x68] sm:$0xff]
    %v1952 = vld [vmem:[#allocation5 + $0x70] sm:$0xff]
    %v1953 = vld [vmem:[#allocation5 + $0x78] sm:$0xff]
    %v1954 = vld [vmem:[#allocation5 + $0x80] sm:$0xff]
    %v1955 = vld [vmem:[#allocation5 + $0x88] sm:$0xff]
    %v1956 = vld [vmem:[#allocation5 + $0x90] sm:$0xff]
    %v1957 = vld [vmem:[#allocation5 + $0x98] sm:$0xff]
    %v1958 = vld [vmem:[#allocation5 + $0xa0] sm:$0xff]
    %v1959 = vld [vmem:[#allocation5 + $0xa8] sm:$0xff]
    %v1960 = vld [vmem:[#allocation5 + $0xb0] sm:$0xff]
    %v1961 = vld [vmem:[#allocation5 + $0xb8] sm:$0xff]
    %v1962 = vld [vmem:[#allocation5 + $0xc0] sm:$0xff]
    %v1963 = vld [vmem:[#allocation5 + $0xc8] sm:$0xff]
    %v1964 = vld [vmem:[#allocation5 + $0xd0] sm:$0xff]
    %v1965 = vld [vmem:[#allocation5 + $0xd8] sm:$0xff]
    %v1966 = vld [vmem:[#allocation5 + $0xe0] sm:$0xff]
    %v1967 = vld [vmem:[#allocation5 + $0xe8] sm:$0xff]
    %v1968 = vld [vmem:[#allocation5 + $0xf0] sm:$0xff]
    %v1969 = vld [vmem:[#allocation5 + $0xf8] sm:$0xff]
    %v1970 = vld [vmem:[#allocation5 + $0x100] sm:$0xff]
    %v1971 = vld [vmem:[#allocation5 + $0x108] sm:$0xff]
    %v1972 = vld [vmem:[#allocation5 + $0x110] sm:$0xff]
    %v1973 = vld [vmem:[#allocation5 + $0x118] sm:$0xff]
    %v1974 = vld [vmem:[#allocation5 + $0x120] sm:$0xff]
    %v1975 = vld [vmem:[#allocation5 + $0x128] sm:$0xff]
    %v1976 = vld [vmem:[#allocation5 + $0x130] sm:$0xff]
    %v1977 = vld [vmem:[#allocation5 + $0x138] sm:$0xff]
    %v1978 = vld [vmem:[#allocation5 + $0x140] sm:$0xff]
    %v1979 = vld [vmem:[#allocation5 + $0x148] sm:$0xff]
    %v1980 = vld [vmem:[#allocation5 + $0x150] sm:$0xff]
    %v1981 = vld [vmem:[#allocation5 + $0x158] sm:$0xff]
    %v1982 = vld [vmem:[#allocation5 + $0x160] sm:$0xff]
    %v1983 = vld [vmem:[#allocation5 + $0x168] sm:$0xff]
    %v1984 = vld [vmem:[#allocation5 + $0x170] sm:$0xff]
    %v1985 = vld [vmem:[#allocation5 + $0x178] sm:$0xff]
    %v1986 = vld [vmem:[#allocation5 + $0x180] sm:$0xff]
    %v1987 = vld [vmem:[#allocation5 + $0x188] sm:$0xff]
    %v1988 = vld [vmem:[#allocation5 + $0x190] sm:$0xff]
    %v1989 = vld [vmem:[#allocation5 + $0x198] sm:$0xff]
    %v1990 = vld [vmem:[#allocation5 + $0x1a0] sm:$0xff]
    %v1991 = vld [vmem:[#allocation5 + $0x1a8] sm:$0xff]
    %v1992 = vld [vmem:[#allocation5 + $0x1b0] sm:$0xff]
    %v1993 = vld [vmem:[#allocation5 + $0x1b8] sm:$0xff]
    %v1994 = vld [vmem:[#allocation5 + $0x1c0] sm:$0xff]
    %v1995 = vld [vmem:[#allocation5 + $0x1c8] sm:$0xff]
    %v1996 = vld [vmem:[#allocation5 + $0x1d0] sm:$0xff]
    %v1997 = vld [vmem:[#allocation5 + $0x1d8] sm:$0xff]
    %v1998 = vld [vmem:[#allocation5 + $0x1e0] sm:$0xff]
    %v1999 = vld [vmem:[#allocation5 + $0x1e8] sm:$0xff]
    %v2000 = vld [vmem:[#allocation5 + $0x1f0] sm:$0xff]
    %v2001 = vld [vmem:[#allocation5 + $0x1f8] sm:$0xff]
    %v2002 = vld [vmem:[#allocation5 + $0x200] sm:$0xff]
    %v2003 = vld [vmem:[#allocation5 + $0x208] sm:$0xff]
    %v2004 = vld [vmem:[#allocation5 + $0x210] sm:$0xff]
    %v2005 = vld [vmem:[#allocation5 + $0x218] sm:$0xff]
    %v2006 = vld [vmem:[#allocation5 + $0x220] sm:$0xff]
    %v2007 = vld [vmem:[#allocation5 + $0x228] sm:$0xff]
    %v2008 = vld [vmem:[#allocation5 + $0x230] sm:$0xff]
    %v2009 = vld [vmem:[#allocation5 + $0x238] sm:$0xff]
    %v2010 = vld [vmem:[#allocation5 + $0x240] sm:$0xff]
    %v2011 = vld [vmem:[#allocation5 + $0x248] sm:$0xff]
    %v2012 = vld [vmem:[#allocation5 + $0x250] sm:$0xff]
    %v2013 = vld [vmem:[#allocation5 + $0x258] sm:$0xff]
    %v2014 = vld [vmem:[#allocation5 + $0x260] sm:$0xff]
    %v2015 = vld [vmem:[#allocation5 + $0x268] sm:$0xff]
    %v2016 = vld [vmem:[#allocation5 + $0x270] sm:$0xff]
    %v2017 = vld [vmem:[#allocation5 + $0x278] sm:$0xff]
    %v2018 = vld [vmem:[#allocation5 + $0x280] sm:$0xff]
    %v2019 = vld [vmem:[#allocation5 + $0x288] sm:$0xff]
    %v2020 = vld [vmem:[#allocation5 + $0x290] sm:$0xff]
    %v2021 = vld [vmem:[#allocation5 + $0x298] sm:$0xff]
    %v2022 = vld [vmem:[#allocation5 + $0x2a0] sm:$0xff]
    %v2023 = vld [vmem:[#allocation5 + $0x2a8] sm:$0xff]
    %v2024 = vld [vmem:[#allocation5 + $0x2b0] sm:$0xff]
    %v2025 = vld [vmem:[#allocation5 + $0x2b8] sm:$0xff]
    %v2026 = vld [vmem:[#allocation5 + $0x2c0] sm:$0xff]
    %v2027 = vld [vmem:[#allocation5 + $0x2c8] sm:$0xff]
    %v2028 = vld [vmem:[#allocation5 + $0x2d0] sm:$0xff]
    %v2029 = vld [vmem:[#allocation5 + $0x2d8] sm:$0xff]
    %v2030 = vld [vmem:[#allocation5 + $0x2e0] sm:$0xff]
    %v2031 = vld [vmem:[#allocation5 + $0x2e8] sm:$0xff]
    %v2032 = vld [vmem:[#allocation5 + $0x2f0] sm:$0xff]
    %v2033 = vld [vmem:[#allocation5 + $0x2f8] sm:$0xff]
    %v2034 = vld [vmem:[#allocation5 + $0x300] sm:$0xff]
    %v2035 = vld [vmem:[#allocation5 + $0x308] sm:$0xff]
    %v2036 = vld [vmem:[#allocation5 + $0x310] sm:$0xff]
    %v2037 = vld [vmem:[#allocation5 + $0x318] sm:$0xff]
    %v2038 = vld [vmem:[#allocation5 + $0x320] sm:$0xff]
    %v2039 = vld [vmem:[#allocation5 + $0x328] sm:$0xff]
    %v2040 = vld [vmem:[#allocation5 + $0x330] sm:$0xff]
    %v2041 = vld [vmem:[#allocation5 + $0x338] sm:$0xff]
    %v2042 = vld [vmem:[#allocation5 + $0x340] sm:$0xff]
    %v2043 = vld [vmem:[#allocation5 + $0x348] sm:$0xff]
    %v2044 = vld [vmem:[#allocation5 + $0x350] sm:$0xff]
    %v2045 = vld [vmem:[#allocation5 + $0x358] sm:$0xff]
    %v2046 = vld [vmem:[#allocation5 + $0x360] sm:$0xff]
    %v2047 = vld [vmem:[#allocation5 + $0x368] sm:$0xff]
    %v2048 = vld [vmem:[#allocation5 + $0x370] sm:$0xff]
    %v2049 = vld [vmem:[#allocation5 + $0x378] sm:$0xff]
    %v2050 = vld [vmem:[#allocation5 + $0x380] sm:$0xff]
    %v2051 = vld [vmem:[#allocation5 + $0x388] sm:$0xff]
    %v2052 = vld [vmem:[#allocation5 + $0x390] sm:$0xff]
    %v2053 = vld [vmem:[#allocation5 + $0x398] sm:$0xff]
    %v2054 = vld [vmem:[#allocation5 + $0x3a0] sm:$0xff]
    %v2055 = vld [vmem:[#allocation5 + $0x3a8] sm:$0xff]
    %v2056 = vld [vmem:[#allocation5 + $0x3b0] sm:$0xff]
    %v2057 = vld [vmem:[#allocation5 + $0x3b8] sm:$0xff]
    %v2058 = vld [vmem:[#allocation5 + $0x3c0] sm:$0xff]
    %v2059 = vld [vmem:[#allocation5 + $0x3c8] sm:$0xff]
    %v2060 = vld [vmem:[#allocation5 + $0x3d0] sm:$0xff]
    %v2061 = vld [vmem:[#allocation5 + $0x3d8] sm:$0xff]
    %v2062 = vld [vmem:[#allocation5 + $0x3e0] sm:$0xff]
    %v2063 = vld [vmem:[#allocation5 + $0x3e8] sm:$0xff]
    %v2064 = vld [vmem:[#allocation5 + $0x3f0] sm:$0xff]
    %v2065 = vld [vmem:[#allocation5 + $0x3f8] sm:$0xff]
    %v2066 = vld [vmem:[#allocation5 + $0x400] sm:$0xff]
    %v2067 = vld [vmem:[#allocation5 + $0x408] sm:$0xff]
    %v2068 = vld [vmem:[#allocation5 + $0x410] sm:$0xff]
    %v2069 = vld [vmem:[#allocation5 + $0x418] sm:$0xff]
    %v2070 = vld [vmem:[#allocation5 + $0x420] sm:$0xff]
    %v2071 = vld [vmem:[#allocation5 + $0x428] sm:$0xff]
    %v2072 = vld [vmem:[#allocation5 + $0x430] sm:$0xff]
    %v2073 = vld [vmem:[#allocation5 + $0x438] sm:$0xff]
    %v2074 = vld [vmem:[#allocation5 + $0x440] sm:$0xff]
    %v2075 = vld [vmem:[#allocation5 + $0x448] sm:$0xff]
    %v2076 = vld [vmem:[#allocation5 + $0x450] sm:$0xff]
    %v2077 = vld [vmem:[#allocation5 + $0x458] sm:$0xff]
    %v2078 = vld [vmem:[#allocation5 + $0x460] sm:$0x33]
    %v2079 = vld [vmem:[#allocation5 + $0x468] sm:$0x33]
    %v2080 = vld [vmem:[#allocation5 + $0x470] sm:$0x33]
    %v2081 = vld [vmem:[#allocation5 + $0x478] sm:$0x33]
    %v2086 = vunpack.c.l.b16 %v1932
    %v2087 = vunpack.c.h.b16 %v1932
    %v2088 = vunpack.c.l.b16 %v1933
    %v2089 = vunpack.c.l.b16 %v1935
    %v2090 = vunpack.c.h.b16 %v1935
    %v2091 = vunpack.c.l.b16 %v1936
    %v2092 = vpack.c.b16 %v2089, %v2086
    %v2093 = vpack.c.b16 %v2090, %v2087
    %v2094 = vpack.c.b16 %v2091, %v2088
    %v2241 = vunpack.c.l.b16 %v1938
    %v2242 = vunpack.c.h.b16 %v1938
    %v2243 = vunpack.c.l.b16 %v1939
    %v2244 = vunpack.c.h.b16 %v1939
    %v2245 = vunpack.c.l.b16 %v1940
    %v2246 = vunpack.c.h.b16 %v1940
    %v2247 = vunpack.c.l.b16 %v1941
    %v2248 = vunpack.c.h.b16 %v1941
    %v2249 = vunpack.c.l.b16 %v1942
    %v2250 = vunpack.c.h.b16 %v1942
    %v2251 = vunpack.c.l.b16 %v1943
    %v2252 = vunpack.c.h.b16 %v1943
    %v2253 = vunpack.c.l.b16 %v1944
    %v2254 = vunpack.c.h.b16 %v1944
    %v2255 = vunpack.c.l.b16 %v1945
    %v2256 = vunpack.c.h.b16 %v1945
    %v2257 = vunpack.c.l.b16 %v1946
    %v2258 = vunpack.c.h.b16 %v1946
    %v2259 = vunpack.c.l.b16 %v1947
    %v2260 = vunpack.c.h.b16 %v1947
    %v2261 = vunpack.c.l.b16 %v1948
    %v2262 = vunpack.c.h.b16 %v1948
    %v2263 = vunpack.c.l.b16 %v1949
    %v2264 = vunpack.c.h.b16 %v1949
    %v2265 = vunpack.c.l.b16 %v1950
    %v2266 = vunpack.c.h.b16 %v1950
    %v2267 = vunpack.c.l.b16 %v1951
    %v2268 = vunpack.c.h.b16 %v1951
    %v2269 = vunpack.c.l.b16 %v1952
    %v2270 = vunpack.c.h.b16 %v1952
    %v2271 = vunpack.c.l.b16 %v1953
    %v2272 = vunpack.c.h.b16 %v1953
    %v2273 = vunpack.c.l.b16 %v1954
    %v2274 = vunpack.c.h.b16 %v1954
    %v2275 = vunpack.c.l.b16 %v1955
    %v2276 = vunpack.c.h.b16 %v1955
    %v2277 = vunpack.c.l.b16 %v1956
    %v2278 = vunpack.c.h.b16 %v1956
    %v2279 = vunpack.c.l.b16 %v1957
    %v2280 = vunpack.c.h.b16 %v1957
    %v2281 = vunpack.c.l.b16 %v1958
    %v2282 = vunpack.c.h.b16 %v1958
    %v2283 = vunpack.c.l.b16 %v1959
    %v2284 = vunpack.c.h.b16 %v1959
    %v2285 = vunpack.c.l.b16 %v1960
    %v2286 = vunpack.c.h.b16 %v1960
    %v2287 = vunpack.c.l.b16 %v1961
    %v2288 = vunpack.c.h.b16 %v1961
    %v2289 = vunpack.c.l.b16 %v1962
    %v2290 = vunpack.c.h.b16 %v1962
    %v2291 = vunpack.c.l.b16 %v1963
    %v2292 = vunpack.c.h.b16 %v1963
    %v2293 = vunpack.c.l.b16 %v1964
    %v2294 = vunpack.c.h.b16 %v1964
    %v2295 = vunpack.c.l.b16 %v1965
    %v2296 = vunpack.c.h.b16 %v1965
    %v2297 = vunpack.c.l.b16 %v1966
    %v2298 = vunpack.c.h.b16 %v1966
    %v2299 = vunpack.c.l.b16 %v1967
    %v2300 = vunpack.c.h.b16 %v1967
    %v2301 = vunpack.c.l.b16 %v1968
    %v2302 = vunpack.c.h.b16 %v1968
    %v2303 = vunpack.c.l.b16 %v1969
    %v2304 = vunpack.c.h.b16 %v1969
    %v2305 = vunpack.c.l.b16 %v1970
    %v2306 = vunpack.c.h.b16 %v1970
    %v2307 = vunpack.c.l.b16 %v1971
    %v2308 = vunpack.c.h.b16 %v1971
    %v2309 = vunpack.c.l.b16 %v1972
    %v2310 = vunpack.c.h.b16 %v1972
    %v2311 = vunpack.c.l.b16 %v1973
    %v2312 = vunpack.c.h.b16 %v1973
    %v2313 = vunpack.c.l.b16 %v1974
    %v2314 = vunpack.c.h.b16 %v1974
    %v2315 = vunpack.c.l.b16 %v1975
    %v2316 = vunpack.c.h.b16 %v1975
    %v2317 = vunpack.c.l.b16 %v1976
    %v2318 = vunpack.c.h.b16 %v1976
    %v2319 = vunpack.c.l.b16 %v1977
    %v2320 = vunpack.c.h.b16 %v1977
    %v2321 = vunpack.c.l.b16 %v1978
    %v2322 = vunpack.c.h.b16 %v1978
    %v2323 = vunpack.c.l.b16 %v1979
    %v2324 = vunpack.c.h.b16 %v1979
    %v2325 = vunpack.c.l.b16 %v1980
    %v2326 = vunpack.c.h.b16 %v1980
    %v2327 = vunpack.c.l.b16 %v1981
    %v2328 = vunpack.c.h.b16 %v1981
    %v2329 = vunpack.c.l.b16 %v1982
    %v2330 = vunpack.c.h.b16 %v1982
    %v2331 = vunpack.c.l.b16 %v1983
    %v2332 = vunpack.c.h.b16 %v1983
    %v2333 = vunpack.c.l.b16 %v1984
    %v2334 = vunpack.c.h.b16 %v1984
    %v2335 = vunpack.c.l.b16 %v1985
    %v2336 = vunpack.c.h.b16 %v1985
    %v2337 = vunpack.c.l.b16 %v1986
    %v2338 = vunpack.c.h.b16 %v1986
    %v2339 = vunpack.c.l.b16 %v1987
    %v2340 = vunpack.c.h.b16 %v1987
    %v2341 = vunpack.c.l.b16 %v1988
    %v2342 = vunpack.c.h.b16 %v1988
    %v2343 = vunpack.c.l.b16 %v1989
    %v2344 = vunpack.c.h.b16 %v1989
    %v2345 = vunpack.c.l.b16 %v1990
    %v2346 = vunpack.c.h.b16 %v1990
    %v2347 = vunpack.c.l.b16 %v1991
    %v2348 = vunpack.c.h.b16 %v1991
    %v2349 = vunpack.c.l.b16 %v1992
    %v2350 = vunpack.c.h.b16 %v1992
    %v2351 = vunpack.c.l.b16 %v1993
    %v2352 = vunpack.c.h.b16 %v1993
    %v2353 = vunpack.c.l.b16 %v1994
    %v2354 = vunpack.c.h.b16 %v1994
    %v2355 = vunpack.c.l.b16 %v1995
    %v2356 = vunpack.c.h.b16 %v1995
    %v2357 = vunpack.c.l.b16 %v1996
    %v2358 = vunpack.c.h.b16 %v1996
    %v2359 = vunpack.c.l.b16 %v1997
    %v2360 = vunpack.c.h.b16 %v1997
    %v2361 = vunpack.c.l.b16 %v1998
    %v2362 = vunpack.c.h.b16 %v1998
    %v2363 = vunpack.c.l.b16 %v1999
    %v2364 = vunpack.c.h.b16 %v1999
    %v2365 = vunpack.c.l.b16 %v2000
    %v2366 = vunpack.c.h.b16 %v2000
    %v2367 = vunpack.c.l.b16 %v2001
    %v2368 = vunpack.c.h.b16 %v2001
    %v2369 = vunpack.c.l.b16 %v2002
    %v2370 = vunpack.c.h.b16 %v2002
    %v2371 = vunpack.c.l.b16 %v2003
    %v2372 = vunpack.c.h.b16 %v2003
    %v2373 = vunpack.c.l.b16 %v2004
    %v2374 = vunpack.c.h.b16 %v2004
    %v2375 = vunpack.c.l.b16 %v2005
    %v2376 = vunpack.c.h.b16 %v2005
    %v2377 = vunpack.c.l.b16 %v2006
    %v2378 = vunpack.c.h.b16 %v2006
    %v2379 = vunpack.c.l.b16 %v2007
    %v2380 = vunpack.c.h.b16 %v2007
    %v2381 = vunpack.c.l.b16 %v2008
    %v2382 = vunpack.c.h.b16 %v2008
    %v2383 = vunpack.c.l.b16 %v2009
    %v2384 = vunpack.c.h.b16 %v2009
    %v2385 = vunpack.c.l.b16 %v2010
    %v2386 = vunpack.c.h.b16 %v2010
    %v2387 = vunpack.c.l.b16 %v2011
    %v2388 = vunpack.c.h.b16 %v2011
    %v2389 = vunpack.c.l.b16 %v2012
    %v2390 = vunpack.c.h.b16 %v2012
    %v2391 = vunpack.c.l.b16 %v2013
    %v2392 = vunpack.c.h.b16 %v2013
    %v2393 = vunpack.c.l.b16 %v2014
    %v2394 = vunpack.c.h.b16 %v2014
    %v2395 = vunpack.c.l.b16 %v2015
    %v2396 = vunpack.c.h.b16 %v2015
    %v2397 = vunpack.c.l.b16 %v2016
    %v2398 = vunpack.c.h.b16 %v2016
    %v2399 = vunpack.c.l.b16 %v2017
    %v2400 = vunpack.c.h.b16 %v2017
    %v2401 = vunpack.c.l.b16 %v2018
    %v2402 = vunpack.c.h.b16 %v2018
    %v2403 = vunpack.c.l.b16 %v2019
    %v2404 = vunpack.c.h.b16 %v2019
    %v2405 = vunpack.c.l.b16 %v2020
    %v2406 = vunpack.c.h.b16 %v2020
    %v2407 = vunpack.c.l.b16 %v2021
    %v2408 = vunpack.c.h.b16 %v2021
    %v2409 = vunpack.c.l.b16 %v2022
    %v2410 = vunpack.c.h.b16 %v2022
    %v2411 = vunpack.c.l.b16 %v2023
    %v2412 = vunpack.c.h.b16 %v2023
    %v2413 = vunpack.c.l.b16 %v2024
    %v2414 = vunpack.c.h.b16 %v2024
    %v2415 = vunpack.c.l.b16 %v2025
    %v2416 = vunpack.c.h.b16 %v2025
    %v2417 = vunpack.c.l.b16 %v2026
    %v2418 = vunpack.c.h.b16 %v2026
    %v2419 = vunpack.c.l.b16 %v2027
    %v2420 = vunpack.c.h.b16 %v2027
    %v2421 = vunpack.c.l.b16 %v2028
    %v2422 = vunpack.c.h.b16 %v2028
    %v2423 = vunpack.c.l.b16 %v2029
    %v2424 = vunpack.c.h.b16 %v2029
    %v2425 = vunpack.c.l.b16 %v2030
    %v2426 = vunpack.c.h.b16 %v2030
    %v2427 = vunpack.c.l.b16 %v2031
    %v2428 = vunpack.c.h.b16 %v2031
    %v2429 = vunpack.c.l.b16 %v2032
    %v2430 = vunpack.c.h.b16 %v2032
    %v2431 = vunpack.c.l.b16 %v2033
    %v2432 = vunpack.c.h.b16 %v2033
    %v2433 = vunpack.c.l.b16 %v2034
    %v2434 = vunpack.c.h.b16 %v2034
    %v2435 = vunpack.c.l.b16 %v2035
    %v2436 = vunpack.c.h.b16 %v2035
    %v2437 = vunpack.c.l.b16 %v2036
    %v2438 = vunpack.c.h.b16 %v2036
    %v2439 = vunpack.c.l.b16 %v2037
    %v2440 = vunpack.c.h.b16 %v2037
    %v2441 = vunpack.c.l.b16 %v2038
    %v2442 = vunpack.c.h.b16 %v2038
    %v2443 = vunpack.c.l.b16 %v2039
    %v2444 = vunpack.c.h.b16 %v2039
    %v2445 = vunpack.c.l.b16 %v2040
    %v2446 = vunpack.c.h.b16 %v2040
    %v2447 = vunpack.c.l.b16 %v2041
    %v2448 = vunpack.c.h.b16 %v2041
    %v2449 = vunpack.c.l.b16 %v2042
    %v2450 = vunpack.c.h.b16 %v2042
    %v2451 = vunpack.c.l.b16 %v2043
    %v2452 = vunpack.c.h.b16 %v2043
    %v2453 = vunpack.c.l.b16 %v2044
    %v2454 = vunpack.c.h.b16 %v2044
    %v2455 = vunpack.c.l.b16 %v2045
    %v2456 = vunpack.c.h.b16 %v2045
    %v2457 = vunpack.c.l.b16 %v2046
    %v2458 = vunpack.c.h.b16 %v2046
    %v2459 = vunpack.c.l.b16 %v2047
    %v2460 = vunpack.c.h.b16 %v2047
    %v2461 = vunpack.c.l.b16 %v2048
    %v2462 = vunpack.c.h.b16 %v2048
    %v2463 = vunpack.c.l.b16 %v2049
    %v2464 = vunpack.c.h.b16 %v2049
    %v2465 = vunpack.c.l.b16 %v2050
    %v2466 = vunpack.c.h.b16 %v2050
    %v2467 = vunpack.c.l.b16 %v2051
    %v2468 = vunpack.c.h.b16 %v2051
    %v2469 = vunpack.c.l.b16 %v2052
    %v2470 = vunpack.c.h.b16 %v2052
    %v2471 = vunpack.c.l.b16 %v2053
    %v2472 = vunpack.c.h.b16 %v2053
    %v2473 = vunpack.c.l.b16 %v2054
    %v2474 = vunpack.c.h.b16 %v2054
    %v2475 = vunpack.c.l.b16 %v2055
    %v2476 = vunpack.c.h.b16 %v2055
    %v2477 = vunpack.c.l.b16 %v2056
    %v2478 = vunpack.c.h.b16 %v2056
    %v2479 = vunpack.c.l.b16 %v2057
    %v2480 = vunpack.c.h.b16 %v2057
    %v2481 = vunpack.c.l.b16 %v2058
    %v2482 = vunpack.c.h.b16 %v2058
    %v2483 = vunpack.c.l.b16 %v2059
    %v2484 = vunpack.c.h.b16 %v2059
    %v2485 = vunpack.c.l.b16 %v2060
    %v2486 = vunpack.c.h.b16 %v2060
    %v2487 = vunpack.c.l.b16 %v2061
    %v2488 = vunpack.c.h.b16 %v2061
    %v2489 = vunpack.c.l.b16 %v2062
    %v2490 = vunpack.c.h.b16 %v2062
    %v2491 = vunpack.c.l.b16 %v2063
    %v2492 = vunpack.c.h.b16 %v2063
    %v2493 = vunpack.c.l.b16 %v2064
    %v2494 = vunpack.c.h.b16 %v2064
    %v2495 = vunpack.c.l.b16 %v2065
    %v2496 = vunpack.c.h.b16 %v2065
    %v2497 = vunpack.c.l.b16 %v2066
    %v2498 = vunpack.c.h.b16 %v2066
    %v2499 = vunpack.c.l.b16 %v2067
    %v2500 = vunpack.c.h.b16 %v2067
    %v2501 = vunpack.c.l.b16 %v2068
    %v2502 = vunpack.c.h.b16 %v2068
    %v2503 = vunpack.c.l.b16 %v2069
    %v2504 = vunpack.c.h.b16 %v2069
    %v2505 = vunpack.c.l.b16 %v2070
    %v2506 = vunpack.c.h.b16 %v2070
    %v2507 = vunpack.c.l.b16 %v2071
    %v2508 = vunpack.c.h.b16 %v2071
    %v2509 = vunpack.c.l.b16 %v2072
    %v2510 = vunpack.c.h.b16 %v2072
    %v2511 = vunpack.c.l.b16 %v2073
    %v2512 = vunpack.c.h.b16 %v2073
    %v2513 = vunpack.c.l.b16 %v2074
    %v2514 = vunpack.c.h.b16 %v2074
    %v2515 = vunpack.c.l.b16 %v2075
    %v2516 = vunpack.c.h.b16 %v2075
    %v2517 = vunpack.c.l.b16 %v2076
    %v2518 = vunpack.c.h.b16 %v2076
    %v2519 = vunpack.c.l.b16 %v2077
    %v2520 = vunpack.c.h.b16 %v2077
    %v2521 = vunpack.c.l.b16 %v2078
    %v2522 = vunpack.c.h.b16 %v2078
    %v2523 = vunpack.c.l.b16 %v2079
    %v2524 = vunpack.c.h.b16 %v2079
    %v2525 = vunpack.c.l.b16 %v2080
    %v2526 = vunpack.c.h.b16 %v2080
    %v2527 = vunpack.c.l.b16 %v2081
    %v2528 = vunpack.c.h.b16 %v2081
    %v2529 = vpack.c.b16 %v2249, %v2241
    %v2530 = vpack.c.b16 %v2250, %v2242
    %v2531 = vpack.c.b16 %v2251, %v2243
    %v2532 = vpack.c.b16 %v2252, %v2244
    %v2533 = vpack.c.b16 %v2253, %v2245
    %v2534 = vpack.c.b16 %v2254, %v2246
    %v2535 = vpack.c.b16 %v2255, %v2247
    %v2536 = vpack.c.b16 %v2256, %v2248
    %v2537 = vpack.c.b16 %v2265, %v2257
    %v2538 = vpack.c.b16 %v2266, %v2258
    %v2539 = vpack.c.b16 %v2267, %v2259
    %v2540 = vpack.c.b16 %v2268, %v2260
    %v2541 = vpack.c.b16 %v2269, %v2261
    %v2542 = vpack.c.b16 %v2270, %v2262
    %v2543 = vpack.c.b16 %v2271, %v2263
    %v2544 = vpack.c.b16 %v2272, %v2264
    %v2545 = vpack.c.b16 %v2281, %v2273
    %v2546 = vpack.c.b16 %v2282, %v2274
    %v2547 = vpack.c.b16 %v2283, %v2275
    %v2548 = vpack.c.b16 %v2284, %v2276
    %v2549 = vpack.c.b16 %v2285, %v2277
    %v2550 = vpack.c.b16 %v2286, %v2278
    %v2551 = vpack.c.b16 %v2287, %v2279
    %v2552 = vpack.c.b16 %v2288, %v2280
    %v2553 = vpack.c.b16 %v2297, %v2289
    %v2554 = vpack.c.b16 %v2298, %v2290
    %v2555 = vpack.c.b16 %v2299, %v2291
    %v2556 = vpack.c.b16 %v2300, %v2292
    %v2557 = vpack.c.b16 %v2301, %v2293
    %v2558 = vpack.c.b16 %v2302, %v2294
    %v2559 = vpack.c.b16 %v2303, %v2295
    %v2560 = vpack.c.b16 %v2304, %v2296
    %v2561 = vpack.c.b16 %v2313, %v2305
    %v2562 = vpack.c.b16 %v2314, %v2306
    %v2563 = vpack.c.b16 %v2315, %v2307
    %v2564 = vpack.c.b16 %v2316, %v2308
    %v2565 = vpack.c.b16 %v2317, %v2309
    %v2566 = vpack.c.b16 %v2318, %v2310
    %v2567 = vpack.c.b16 %v2319, %v2311
    %v2568 = vpack.c.b16 %v2320, %v2312
    %v2569 = vpack.c.b16 %v2329, %v2321
    %v2570 = vpack.c.b16 %v2330, %v2322
    %v2571 = vpack.c.b16 %v2331, %v2323
    %v2572 = vpack.c.b16 %v2332, %v2324
    %v2573 = vpack.c.b16 %v2333, %v2325
    %v2574 = vpack.c.b16 %v2334, %v2326
    %v2575 = vpack.c.b16 %v2335, %v2327
    %v2576 = vpack.c.b16 %v2336, %v2328
    %v2577 = vpack.c.b16 %v2345, %v2337
    %v2578 = vpack.c.b16 %v2346, %v2338
    %v2579 = vpack.c.b16 %v2347, %v2339
    %v2580 = vpack.c.b16 %v2348, %v2340
    %v2581 = vpack.c.b16 %v2349, %v2341
    %v2582 = vpack.c.b16 %v2350, %v2342
    %v2583 = vpack.c.b16 %v2351, %v2343
    %v2584 = vpack.c.b16 %v2352, %v2344
    %v2585 = vpack.c.b16 %v2361, %v2353
    %v2586 = vpack.c.b16 %v2362, %v2354
    %v2587 = vpack.c.b16 %v2363, %v2355
    %v2588 = vpack.c.b16 %v2364, %v2356
    %v2589 = vpack.c.b16 %v2365, %v2357
    %v2590 = vpack.c.b16 %v2366, %v2358
    %v2591 = vpack.c.b16 %v2367, %v2359
    %v2592 = vpack.c.b16 %v2368, %v2360
    %v2593 = vpack.c.b16 %v2377, %v2369
    %v2594 = vpack.c.b16 %v2378, %v2370
    %v2595 = vpack.c.b16 %v2379, %v2371
    %v2596 = vpack.c.b16 %v2380, %v2372
    %v2597 = vpack.c.b16 %v2381, %v2373
    %v2598 = vpack.c.b16 %v2382, %v2374
    %v2599 = vpack.c.b16 %v2383, %v2375
    %v2600 = vpack.c.b16 %v2384, %v2376
    %v2601 = vpack.c.b16 %v2393, %v2385
    %v2602 = vpack.c.b16 %v2394, %v2386
    %v2603 = vpack.c.b16 %v2395, %v2387
    %v2604 = vpack.c.b16 %v2396, %v2388
    %v2605 = vpack.c.b16 %v2397, %v2389
    %v2606 = vpack.c.b16 %v2398, %v2390
    %v2607 = vpack.c.b16 %v2399, %v2391
    %v2608 = vpack.c.b16 %v2400, %v2392
    %v2609 = vpack.c.b16 %v2409, %v2401
    %v2610 = vpack.c.b16 %v2410, %v2402
    %v2611 = vpack.c.b16 %v2411, %v2403
    %v2612 = vpack.c.b16 %v2412, %v2404
    %v2613 = vpack.c.b16 %v2413, %v2405
    %v2614 = vpack.c.b16 %v2414, %v2406
    %v2615 = vpack.c.b16 %v2415, %v2407
    %v2616 = vpack.c.b16 %v2416, %v2408
    %v2617 = vpack.c.b16 %v2425, %v2417
    %v2618 = vpack.c.b16 %v2426, %v2418
    %v2619 = vpack.c.b16 %v2427, %v2419
    %v2620 = vpack.c.b16 %v2428, %v2420
    %v2621 = vpack.c.b16 %v2429, %v2421
    %v2622 = vpack.c.b16 %v2430, %v2422
    %v2623 = vpack.c.b16 %v2431, %v2423
    %v2624 = vpack.c.b16 %v2432, %v2424
    %v2625 = vpack.c.b16 %v2441, %v2433
    %v2626 = vpack.c.b16 %v2442, %v2434
    %v2627 = vpack.c.b16 %v2443, %v2435
    %v2628 = vpack.c.b16 %v2444, %v2436
    %v2629 = vpack.c.b16 %v2445, %v2437
    %v2630 = vpack.c.b16 %v2446, %v2438
    %v2631 = vpack.c.b16 %v2447, %v2439
    %v2632 = vpack.c.b16 %v2448, %v2440
    %v2633 = vpack.c.b16 %v2457, %v2449
    %v2634 = vpack.c.b16 %v2458, %v2450
    %v2635 = vpack.c.b16 %v2459, %v2451
    %v2636 = vpack.c.b16 %v2460, %v2452
    %v2637 = vpack.c.b16 %v2461, %v2453
    %v2638 = vpack.c.b16 %v2462, %v2454
    %v2639 = vpack.c.b16 %v2463, %v2455
    %v2640 = vpack.c.b16 %v2464, %v2456
    %v2641 = vpack.c.b16 %v2473, %v2465
    %v2642 = vpack.c.b16 %v2474, %v2466
    %v2643 = vpack.c.b16 %v2475, %v2467
    %v2644 = vpack.c.b16 %v2476, %v2468
    %v2645 = vpack.c.b16 %v2477, %v2469
    %v2646 = vpack.c.b16 %v2478, %v2470
    %v2647 = vpack.c.b16 %v2479, %v2471
    %v2648 = vpack.c.b16 %v2480, %v2472
    %v2649 = vpack.c.b16 %v2489, %v2481
    %v2650 = vpack.c.b16 %v2490, %v2482
    %v2651 = vpack.c.b16 %v2491, %v2483
    %v2652 = vpack.c.b16 %v2492, %v2484
    %v2653 = vpack.c.b16 %v2493, %v2485
    %v2654 = vpack.c.b16 %v2494, %v2486
    %v2655 = vpack.c.b16 %v2495, %v2487
    %v2656 = vpack.c.b16 %v2496, %v2488
    %v2657 = vpack.c.b16 %v2505, %v2497
    %v2658 = vpack.c.b16 %v2506, %v2498
    %v2659 = vpack.c.b16 %v2507, %v2499
    %v2660 = vpack.c.b16 %v2508, %v2500
    %v2661 = vpack.c.b16 %v2509, %v2501
    %v2662 = vpack.c.b16 %v2510, %v2502
    %v2663 = vpack.c.b16 %v2511, %v2503
    %v2664 = vpack.c.b16 %v2512, %v2504
    %v2665 = vpack.c.b16 %v2521, %v2513
    %v2666 = vpack.c.b16 %v2522, %v2514
    %v2667 = vpack.c.b16 %v2523, %v2515
    %v2668 = vpack.c.b16 %v2524, %v2516
    %v2669 = vpack.c.b16 %v2525, %v2517
    %v2670 = vpack.c.b16 %v2526, %v2518
    %v2671 = vpack.c.b16 %v2527, %v2519
    %v2672 = vpack.c.b16 %v2528, %v2520
    %vm2809 = vcmask 220160
    %v2811 = vsel %vm2809, %v2094, 0
    %vm2813 = vcmask 1044480
    %vm2814 = vcmask 1045504
    %v2815 = vsel %vm2813, 4294967295, 65535
    %v2816 = vsel %vm2814, %v2815, 0
    %v2818 = vand.u32 %v2665, %v2816
    %v2821 = vand.u32 %v2666, %v2816
    %v2824 = vand.u32 %v2667, %v2816
    %v2827 = vand.u32 %v2668, %v2816
    %v2830 = vand.u32 %v2669, %v2816
    %v2833 = vand.u32 %v2670, %v2816
    %v2836 = vand.u32 %v2671, %v2816
    %v2839 = vand.u32 %v2672, %v2816
    %2841 = vmatpush.bf16.msra.mxu0 %v2585
    %2842 = vmatpush.bf16.msra.mxu0 %v2577
    %2843 = vmatpush.bf16.msra.mxu0 %v2569
    %2844 = vmatpush.bf16.msra.mxu0 %v2561
    %2845 = vmatpush.bf16.msra.mxu0 %v2553
    %2846 = vmatpush.bf16.msra.mxu0 %v2545
    %2847 = vmatpush.bf16.msra.mxu0 %v2537
    %2848 = vmatpush.bf16.msra.mxu0 %v2529
    %2849 = vmatmul.bf16.gmra.mxu0 %v2092
    %v2850 = vpop.f32.mrf.mxu0
    %v2851 = vadd.f32 0.0, %v2850
    %v2852 = vpop.f32.mrf.mxu0
    %v2853 = vadd.f32 0.0, %v2852
    %2854 = vdwg.mxu0
    %2855 = vmatpush.bf16.msra.mxu0 %v2649
    %2856 = vmatpush.bf16.msra.mxu0 %v2641
    %2857 = vmatpush.bf16.msra.mxu0 %v2633
    %2858 = vmatpush.bf16.msra.mxu0 %v2625
    %2859 = vmatpush.bf16.msra.mxu0 %v2617
    %2860 = vmatpush.bf16.msra.mxu0 %v2609
    %2861 = vmatpush.bf16.msra.mxu0 %v2601
    %2862 = vmatpush.bf16.msra.mxu0 %v2593
    %2863 = vmatmul.bf16.gmra.mxu0 %v2093
    %v2864 = vpop.f32.mrf.mxu0
    %v2865 = vadd.f32 %v2851, %v2864
    %v2866 = vpop.f32.mrf.mxu0
    %v2867 = vadd.f32 %v2853, %v2866
    %2868 = vdwg.mxu0
    %2869 = vmatpush.bf16.msra.mxu0 0
    %2870 = vmatpush.bf16.msra.mxu0 0
    %2871 = vmatpush.bf16.msra.mxu0 0
    %2872 = vmatpush.bf16.msra.mxu0 0
    %2873 = vmatpush.bf16.msra.mxu0 0
    %2874 = vmatpush.bf16.msra.mxu0 0
    %2875 = vmatpush.bf16.msra.mxu0 %v2818
    %2876 = vmatpush.bf16.msra.mxu0 %v2657
    %2877 = vmatmul.bf16.gmra.mxu0 %v2811
    %v2878 = vpop.f32.mrf.mxu0
    %v2879 = vadd.f32 %v2865, %v2878
    %v2880 = vpop.f32.mrf.mxu0
    %v2881 = vadd.f32 %v2867, %v2880
    %2882 = vdwg.mxu0
    %2883 = vmatpush.bf16.msra.mxu0 %v2586
    %2884 = vmatpush.bf16.msra.mxu0 %v2578
    %2885 = vmatpush.bf16.msra.mxu0 %v2570
    %2886 = vmatpush.bf16.msra.mxu0 %v2562
    %2887 = vmatpush.bf16.msra.mxu0 %v2554
    %2888 = vmatpush.bf16.msra.mxu0 %v2546
    %2889 = vmatpush.bf16.msra.mxu0 %v2538
    %2890 = vmatpush.bf16.msra.mxu0 %v2530
    %2891 = vmatmul.bf16.gmra.mxu0 %v2092
    %v2892 = vpop.f32.mrf.mxu0
    %v2893 = vadd.f32 0.0, %v2892
    %v2894 = vpop.f32.mrf.mxu0
    %v2895 = vadd.f32 0.0, %v2894
    %2896 = vdwg.mxu0
    %2897 = vmatpush.bf16.msra.mxu0 %v2650
    %2898 = vmatpush.bf16.msra.mxu0 %v2642
    %2899 = vmatpush.bf16.msra.mxu0 %v2634
    %2900 = vmatpush.bf16.msra.mxu0 %v2626
    %2901 = vmatpush.bf16.msra.mxu0 %v2618
    %2902 = vmatpush.bf16.msra.mxu0 %v2610
    %2903 = vmatpush.bf16.msra.mxu0 %v2602
    %2904 = vmatpush.bf16.msra.mxu0 %v2594
    %2905 = vmatmul.bf16.gmra.mxu0 %v2093
    %v2906 = vpop.f32.mrf.mxu0
    %v2907 = vadd.f32 %v2893, %v2906
    %v2908 = vpop.f32.mrf.mxu0
    %v2909 = vadd.f32 %v2895, %v2908
    %2910 = vdwg.mxu0
    %2911 = vmatpush.bf16.msra.mxu0 0
    %2912 = vmatpush.bf16.msra.mxu0 0
    %2913 = vmatpush.bf16.msra.mxu0 0
    %2914 = vmatpush.bf16.msra.mxu0 0
    %2915 = vmatpush.bf16.msra.mxu0 0
    %2916 = vmatpush.bf16.msra.mxu0 0
    %2917 = vmatpush.bf16.msra.mxu0 %v2821
    %2918 = vmatpush.bf16.msra.mxu0 %v2658
    %2919 = vmatmul.bf16.gmra.mxu0 %v2811
    %v2920 = vpop.f32.mrf.mxu0
    %v2921 = vadd.f32 %v2907, %v2920
    %v2922 = vpop.f32.mrf.mxu0
    %v2923 = vadd.f32 %v2909, %v2922
    %2924 = vdwg.mxu0
    %2925 = vmatpush.bf16.msra.mxu0 %v2587
    %2926 = vmatpush.bf16.msra.mxu0 %v2579
    %2927 = vmatpush.bf16.msra.mxu0 %v2571
    %2928 = vmatpush.bf16.msra.mxu0 %v2563
    %2929 = vmatpush.bf16.msra.mxu0 %v2555
    %2930 = vmatpush.bf16.msra.mxu0 %v2547
    %2931 = vmatpush.bf16.msra.mxu0 %v2539
    %2932 = vmatpush.bf16.msra.mxu0 %v2531
    %2933 = vmatmul.bf16.gmra.mxu0 %v2092
    %v2934 = vpop.f32.mrf.mxu0
    %v2935 = vadd.f32 0.0, %v2934
    %v2936 = vpop.f32.mrf.mxu0
    %v2937 = vadd.f32 0.0, %v2936
    %2938 = vdwg.mxu0
    %2939 = vmatpush.bf16.msra.mxu0 %v2651
    %2940 = vmatpush.bf16.msra.mxu0 %v2643
    %2941 = vmatpush.bf16.msra.mxu0 %v2635
    %2942 = vmatpush.bf16.msra.mxu0 %v2627
    %2943 = vmatpush.bf16.msra.mxu0 %v2619
    %2944 = vmatpush.bf16.msra.mxu0 %v2611
    %2945 = vmatpush.bf16.msra.mxu0 %v2603
    %2946 = vmatpush.bf16.msra.mxu0 %v2595
    %2947 = vmatmul.bf16.gmra.mxu0 %v2093
    %v2948 = vpop.f32.mrf.mxu0
    %v2949 = vadd.f32 %v2935, %v2948
    %v2950 = vpop.f32.mrf.mxu0
    %v2951 = vadd.f32 %v2937, %v2950
    %2952 = vdwg.mxu0
    %2953 = vmatpush.bf16.msra.mxu0 0
    %2954 = vmatpush.bf16.msra.mxu0 0
    %2955 = vmatpush.bf16.msra.mxu0 0
    %2956 = vmatpush.bf16.msra.mxu0 0
    %2957 = vmatpush.bf16.msra.mxu0 0
    %2958 = vmatpush.bf16.msra.mxu0 0
    %2959 = vmatpush.bf16.msra.mxu0 %v2824
    %2960 = vmatpush.bf16.msra.mxu0 %v2659
    %2961 = vmatmul.bf16.gmra.mxu0 %v2811
    %v2962 = vpop.f32.mrf.mxu0
    %v2963 = vadd.f32 %v2949, %v2962
    %v2964 = vpop.f32.mrf.mxu0
    %v2965 = vadd.f32 %v2951, %v2964
    %2966 = vdwg.mxu0
    %2967 = vmatpush.bf16.msra.mxu0 %v2588
    %2968 = vmatpush.bf16.msra.mxu0 %v2580
    %2969 = vmatpush.bf16.msra.mxu0 %v2572
    %2970 = vmatpush.bf16.msra.mxu0 %v2564
    %2971 = vmatpush.bf16.msra.mxu0 %v2556
    %2972 = vmatpush.bf16.msra.mxu0 %v2548
    %2973 = vmatpush.bf16.msra.mxu0 %v2540
    %2974 = vmatpush.bf16.msra.mxu0 %v2532
    %2975 = vmatmul.bf16.gmra.mxu0 %v2092
    %v2976 = vpop.f32.mrf.mxu0
    %v2977 = vadd.f32 0.0, %v2976
    %v2978 = vpop.f32.mrf.mxu0
    %v2979 = vadd.f32 0.0, %v2978
    %2980 = vdwg.mxu0
    %2981 = vmatpush.bf16.msra.mxu0 %v2652
    %2982 = vmatpush.bf16.msra.mxu0 %v2644
    %2983 = vmatpush.bf16.msra.mxu0 %v2636
    %2984 = vmatpush.bf16.msra.mxu0 %v2628
    %2985 = vmatpush.bf16.msra.mxu0 %v2620
    %2986 = vmatpush.bf16.msra.mxu0 %v2612
    %2987 = vmatpush.bf16.msra.mxu0 %v2604
    %2988 = vmatpush.bf16.msra.mxu0 %v2596
    %2989 = vmatmul.bf16.gmra.mxu0 %v2093
    %v2990 = vpop.f32.mrf.mxu0
    %v2991 = vadd.f32 %v2977, %v2990
    %v2992 = vpop.f32.mrf.mxu0
    %v2993 = vadd.f32 %v2979, %v2992
    %2994 = vdwg.mxu0
    %2995 = vmatpush.bf16.msra.mxu0 0
    %2996 = vmatpush.bf16.msra.mxu0 0
    %2997 = vmatpush.bf16.msra.mxu0 0
    %2998 = vmatpush.bf16.msra.mxu0 0
    %2999 = vmatpush.bf16.msra.mxu0 0
    %3000 = vmatpush.bf16.msra.mxu0 0
    %3001 = vmatpush.bf16.msra.mxu0 %v2827
    %3002 = vmatpush.bf16.msra.mxu0 %v2660
    %3003 = vmatmul.bf16.gmra.mxu0 %v2811
    %v3004 = vpop.f32.mrf.mxu0
    %v3005 = vadd.f32 %v2991, %v3004
    %v3006 = vpop.f32.mrf.mxu0
    %v3007 = vadd.f32 %v2993, %v3006
    %3008 = vdwg.mxu0
    %3009 = vmatpush.bf16.msra.mxu0 %v2589
    %3010 = vmatpush.bf16.msra.mxu0 %v2581
    %3011 = vmatpush.bf16.msra.mxu0 %v2573
    %3012 = vmatpush.bf16.msra.mxu0 %v2565
    %3013 = vmatpush.bf16.msra.mxu0 %v2557
    %3014 = vmatpush.bf16.msra.mxu0 %v2549
    %3015 = vmatpush.bf16.msra.mxu0 %v2541
    %3016 = vmatpush.bf16.msra.mxu0 %v2533
    %3017 = vmatmul.bf16.gmra.mxu0 %v2092
    %v3018 = vpop.f32.mrf.mxu0
    %v3019 = vadd.f32 0.0, %v3018
    %v3020 = vpop.f32.mrf.mxu0
    %v3021 = vadd.f32 0.0, %v3020
    %3022 = vdwg.mxu0
    %3023 = vmatpush.bf16.msra.mxu0 %v2653
    %3024 = vmatpush.bf16.msra.mxu0 %v2645
    %3025 = vmatpush.bf16.msra.mxu0 %v2637
    %3026 = vmatpush.bf16.msra.mxu0 %v2629
    %3027 = vmatpush.bf16.msra.mxu0 %v2621
    %3028 = vmatpush.bf16.msra.mxu0 %v2613
    %3029 = vmatpush.bf16.msra.mxu0 %v2605
    %3030 = vmatpush.bf16.msra.mxu0 %v2597
    %3031 = vmatmul.bf16.gmra.mxu0 %v2093
    %v3032 = vpop.f32.mrf.mxu0
    %v3033 = vadd.f32 %v3019, %v3032
    %v3034 = vpop.f32.mrf.mxu0
    %v3035 = vadd.f32 %v3021, %v3034
    %3036 = vdwg.mxu0
    %3037 = vmatpush.bf16.msra.mxu0 0
    %3038 = vmatpush.bf16.msra.mxu0 0
    %3039 = vmatpush.bf16.msra.mxu0 0
    %3040 = vmatpush.bf16.msra.mxu0 0
    %3041 = vmatpush.bf16.msra.mxu0 0
    %3042 = vmatpush.bf16.msra.mxu0 0
    %3043 = vmatpush.bf16.msra.mxu0 %v2830
    %3044 = vmatpush.bf16.msra.mxu0 %v2661
    %3045 = vmatmul.bf16.gmra.mxu0 %v2811
    %v3046 = vpop.f32.mrf.mxu0
    %v3047 = vadd.f32 %v3033, %v3046
    %v3048 = vpop.f32.mrf.mxu0
    %v3049 = vadd.f32 %v3035, %v3048
    %3050 = vdwg.mxu0
    %3051 = vmatpush.bf16.msra.mxu0 %v2590
    %3052 = vmatpush.bf16.msra.mxu0 %v2582
    %3053 = vmatpush.bf16.msra.mxu0 %v2574
    %3054 = vmatpush.bf16.msra.mxu0 %v2566
    %3055 = vmatpush.bf16.msra.mxu0 %v2558
    %3056 = vmatpush.bf16.msra.mxu0 %v2550
    %3057 = vmatpush.bf16.msra.mxu0 %v2542
    %3058 = vmatpush.bf16.msra.mxu0 %v2534
    %3059 = vmatmul.bf16.gmra.mxu0 %v2092
    %v3060 = vpop.f32.mrf.mxu0
    %v3061 = vadd.f32 0.0, %v3060
    %v3062 = vpop.f32.mrf.mxu0
    %v3063 = vadd.f32 0.0, %v3062
    %3064 = vdwg.mxu0
    %3065 = vmatpush.bf16.msra.mxu0 %v2654
    %3066 = vmatpush.bf16.msra.mxu0 %v2646
    %3067 = vmatpush.bf16.msra.mxu0 %v2638
    %3068 = vmatpush.bf16.msra.mxu0 %v2630
    %3069 = vmatpush.bf16.msra.mxu0 %v2622
    %3070 = vmatpush.bf16.msra.mxu0 %v2614
    %3071 = vmatpush.bf16.msra.mxu0 %v2606
    %3072 = vmatpush.bf16.msra.mxu0 %v2598
    %3073 = vmatmul.bf16.gmra.mxu0 %v2093
    %v3074 = vpop.f32.mrf.mxu0
    %v3075 = vadd.f32 %v3061, %v3074
    %v3076 = vpop.f32.mrf.mxu0
    %v3077 = vadd.f32 %v3063, %v3076
    %3078 = vdwg.mxu0
    %3079 = vmatpush.bf16.msra.mxu0 0
    %3080 = vmatpush.bf16.msra.mxu0 0
    %3081 = vmatpush.bf16.msra.mxu0 0
    %3082 = vmatpush.bf16.msra.mxu0 0
    %3083 = vmatpush.bf16.msra.mxu0 0
    %3084 = vmatpush.bf16.msra.mxu0 0
    %3085 = vmatpush.bf16.msra.mxu0 %v2833
    %3086 = vmatpush.bf16.msra.mxu0 %v2662
    %3087 = vmatmul.bf16.gmra.mxu0 %v2811
    %v3088 = vpop.f32.mrf.mxu0
    %v3089 = vadd.f32 %v3075, %v3088
    %v3090 = vpop.f32.mrf.mxu0
    %v3091 = vadd.f32 %v3077, %v3090
    %3092 = vdwg.mxu0
    %3093 = vmatpush.bf16.msra.mxu0 %v2591
    %3094 = vmatpush.bf16.msra.mxu0 %v2583
    %3095 = vmatpush.bf16.msra.mxu0 %v2575
    %3096 = vmatpush.bf16.msra.mxu0 %v2567
    %3097 = vmatpush.bf16.msra.mxu0 %v2559
    %3098 = vmatpush.bf16.msra.mxu0 %v2551
    %3099 = vmatpush.bf16.msra.mxu0 %v2543
    %3100 = vmatpush.bf16.msra.mxu0 %v2535
    %3101 = vmatmul.bf16.gmra.mxu0 %v2092
    %v3102 = vpop.f32.mrf.mxu0
    %v3103 = vadd.f32 0.0, %v3102
    %v3104 = vpop.f32.mrf.mxu0
    %v3105 = vadd.f32 0.0, %v3104
    %3106 = vdwg.mxu0
    %3107 = vmatpush.bf16.msra.mxu0 %v2655
    %3108 = vmatpush.bf16.msra.mxu0 %v2647
    %3109 = vmatpush.bf16.msra.mxu0 %v2639
    %3110 = vmatpush.bf16.msra.mxu0 %v2631
    %3111 = vmatpush.bf16.msra.mxu0 %v2623
    %3112 = vmatpush.bf16.msra.mxu0 %v2615
    %3113 = vmatpush.bf16.msra.mxu0 %v2607
    %3114 = vmatpush.bf16.msra.mxu0 %v2599
    %3115 = vmatmul.bf16.gmra.mxu0 %v2093
    %v3116 = vpop.f32.mrf.mxu0
    %v3117 = vadd.f32 %v3103, %v3116
    %v3118 = vpop.f32.mrf.mxu0
    %v3119 = vadd.f32 %v3105, %v3118
    %3120 = vdwg.mxu0
    %3121 = vmatpush.bf16.msra.mxu0 0
    %3122 = vmatpush.bf16.msra.mxu0 0
    %3123 = vmatpush.bf16.msra.mxu0 0
    %3124 = vmatpush.bf16.msra.mxu0 0
    %3125 = vmatpush.bf16.msra.mxu0 0
    %3126 = vmatpush.bf16.msra.mxu0 0
    %3127 = vmatpush.bf16.msra.mxu0 %v2836
    %3128 = vmatpush.bf16.msra.mxu0 %v2663
    %3129 = vmatmul.bf16.gmra.mxu0 %v2811
    %v3130 = vpop.f32.mrf.mxu0
    %v3131 = vadd.f32 %v3117, %v3130
    %v3132 = vpop.f32.mrf.mxu0
    %v3133 = vadd.f32 %v3119, %v3132
    %3134 = vdwg.mxu0
    %3135 = vmatpush.bf16.msra.mxu0 %v2592
    %3136 = vmatpush.bf16.msra.mxu0 %v2584
    %3137 = vmatpush.bf16.msra.mxu0 %v2576
    %3138 = vmatpush.bf16.msra.mxu0 %v2568
    %3139 = vmatpush.bf16.msra.mxu0 %v2560
    %3140 = vmatpush.bf16.msra.mxu0 %v2552
    %3141 = vmatpush.bf16.msra.mxu0 %v2544
    %3142 = vmatpush.bf16.msra.mxu0 %v2536
    %3143 = vmatmul.bf16.gmra.mxu0 %v2092
    %v3144 = vpop.f32.mrf.mxu0
    %v3145 = vadd.f32 0.0, %v3144
    %v3146 = vpop.f32.mrf.mxu0
    %v3147 = vadd.f32 0.0, %v3146
    %3148 = vdwg.mxu0
    %3149 = vmatpush.bf16.msra.mxu0 %v2656
    %3150 = vmatpush.bf16.msra.mxu0 %v2648
    %3151 = vmatpush.bf16.msra.mxu0 %v2640
    %3152 = vmatpush.bf16.msra.mxu0 %v2632
    %3153 = vmatpush.bf16.msra.mxu0 %v2624
    %3154 = vmatpush.bf16.msra.mxu0 %v2616
    %3155 = vmatpush.bf16.msra.mxu0 %v2608
    %3156 = vmatpush.bf16.msra.mxu0 %v2600
    %3157 = vmatmul.bf16.gmra.mxu0 %v2093
    %v3158 = vpop.f32.mrf.mxu0
    %v3159 = vadd.f32 %v3145, %v3158
    %v3160 = vpop.f32.mrf.mxu0
    %v3161 = vadd.f32 %v3147, %v3160
    %3162 = vdwg.mxu0
    %3163 = vmatpush.bf16.msra.mxu0 0
    %3164 = vmatpush.bf16.msra.mxu0 0
    %3165 = vmatpush.bf16.msra.mxu0 0
    %3166 = vmatpush.bf16.msra.mxu0 0
    %3167 = vmatpush.bf16.msra.mxu0 0
    %3168 = vmatpush.bf16.msra.mxu0 0
    %3169 = vmatpush.bf16.msra.mxu0 %v2839
    %3170 = vmatpush.bf16.msra.mxu0 %v2664
    %3171 = vmatmul.bf16.gmra.mxu0 %v2811
    %v3172 = vpop.f32.mrf.mxu0
    %v3173 = vadd.f32 %v3159, %v3172
    %v3174 = vpop.f32.mrf.mxu0
    %v3175 = vadd.f32 %v3161, %v3174
    %3176 = vdwg.mxu0
    %v3177 = vmax.f32 %v2879, %v2921
    %v3178 = vmax.f32 %v2881, %v2923
    %v3179 = vmax.f32 %v3177, %v2963
    %v3180 = vmax.f32 %v3178, %v2965
    %v3181 = vmax.f32 %v3179, %v3005
    %v3182 = vmax.f32 %v3180, %v3007
    %v3183 = vmax.f32 %v3181, %v3047
    %v3184 = vmax.f32 %v3182, %v3049
    %v3185 = vmax.f32 %v3183, %v3089
    %v3186 = vmax.f32 %v3184, %v3091
    %v3187 = vmax.f32 %v3185, %v3131
    %v3188 = vmax.f32 %v3186, %v3133
    %v3189 = vmax.f32 %v3187, %v3173
    %v3190 = vmax.f32 %v3188, %v3175
    %v3191 = vpack.c.bf16 %v3189, %v3189
    %v3192 = vpack.c.bf16 %v3190, %v3190
    %vm3193 = vcmask 568320
    %3194 = vst.msk [vmem:[#allocation4] sm:$0xf] %vm3193, %v3191
    %3195 = vst.msk [vmem:[#allocation4 + $0x8] sm:$0xf] %vm3193, %v3192
    %v3198 = vunpack.c.h.b16 %v1933
    %v3199 = vunpack.c.l.b16 %v1934
    %v3200 = vunpack.c.h.b16 %v1936
    %v3201 = vunpack.c.l.b16 %v1937
    %v3202 = vpack.c.b16 %v3200, %v3198
    %v3203 = vpack.c.b16 %v3201, %v3199
    %3204 = vrot.lane.b32.xlu0 %v2094, 101
    %v3205 = vpop.permute.xlu0 %3204
    %3206 = vrot.lane.b32.xlu0 %v3202, 101
    %v3207 = vpop.permute.xlu0 %3206
    %3208 = vrot.lane.b32.xlu0 %v3203, 101
    %v3209 = vpop.permute.xlu0 %3208
    %vm3210 = vcmask 826368
    %v3211 = vsel %vm3210, %v3205, %v3207
    %v3212 = vsel %vm3210, %v3207, %v3209
    %v3216 = vsel %vm2809, %v3209, 0
    %3218 = vmatpush.bf16.msra.mxu0 %v2585
    %3219 = vmatpush.bf16.msra.mxu0 %v2577
    %3220 = vmatpush.bf16.msra.mxu0 %v2569
    %3221 = vmatpush.bf16.msra.mxu0 %v2561
    %3222 = vmatpush.bf16.msra.mxu0 %v2553
    %3223 = vmatpush.bf16.msra.mxu0 %v2545
    %3224 = vmatpush.bf16.msra.mxu0 %v2537
    %3225 = vmatpush.bf16.msra.mxu0 %v2529
    %3226 = vmatmul.bf16.gmra.mxu0 %v3211
    %v3227 = vpop.f32.mrf.mxu0
    %v3228 = vadd.f32 0.0, %v3227
    %v3229 = vpop.f32.mrf.mxu0
    %v3230 = vadd.f32 0.0, %v3229
    %3231 = vdwg.mxu0
    %3232 = vmatpush.bf16.msra.mxu0 %v2649
    %3233 = vmatpush.bf16.msra.mxu0 %v2641
    %3234 = vmatpush.bf16.msra.mxu0 %v2633
    %3235 = vmatpush.bf16.msra.mxu0 %v2625
    %3236 = vmatpush.bf16.msra.mxu0 %v2617
    %3237 = vmatpush.bf16.msra.mxu0 %v2609
    %3238 = vmatpush.bf16.msra.mxu0 %v2601
    %3239 = vmatpush.bf16.msra.mxu0 %v2593
    %3240 = vmatmul.bf16.gmra.mxu0 %v3212
    %v3241 = vpop.f32.mrf.mxu0
    %v3242 = vadd.f32 %v3228, %v3241
    %v3243 = vpop.f32.mrf.mxu0
    %v3244 = vadd.f32 %v3230, %v3243
    %3245 = vdwg.mxu0
    %3246 = vmatpush.bf16.msra.mxu0 0
    %3247 = vmatpush.bf16.msra.mxu0 0
    %3248 = vmatpush.bf16.msra.mxu0 0
    %3249 = vmatpush.bf16.msra.mxu0 0
    %3250 = vmatpush.bf16.msra.mxu0 0
    %3251 = vmatpush.bf16.msra.mxu0 0
    %3252 = vmatpush.bf16.msra.mxu0 %v2818
    %3253 = vmatpush.bf16.msra.mxu0 %v2657
    %3254 = vmatmul.bf16.gmra.mxu0 %v3216
    %v3255 = vpop.f32.mrf.mxu0
    %v3256 = vadd.f32 %v3242, %v3255
    %v3257 = vpop.f32.mrf.mxu0
    %v3258 = vadd.f32 %v3244, %v3257
    %3259 = vdwg.mxu0
    %3260 = vmatpush.bf16.msra.mxu0 %v2586
    %3261 = vmatpush.bf16.msra.mxu0 %v2578
    %3262 = vmatpush.bf16.msra.mxu0 %v2570
    %3263 = vmatpush.bf16.msra.mxu0 %v2562
    %3264 = vmatpush.bf16.msra.mxu0 %v2554
    %3265 = vmatpush.bf16.msra.mxu0 %v2546
    %3266 = vmatpush.bf16.msra.mxu0 %v2538
    %3267 = vmatpush.bf16.msra.mxu0 %v2530
    %3268 = vmatmul.bf16.gmra.mxu0 %v3211
    %v3269 = vpop.f32.mrf.mxu0
    %v3270 = vadd.f32 0.0, %v3269
    %v3271 = vpop.f32.mrf.mxu0
    %v3272 = vadd.f32 0.0, %v3271
    %3273 = vdwg.mxu0
    %3274 = vmatpush.bf16.msra.mxu0 %v2650
    %3275 = vmatpush.bf16.msra.mxu0 %v2642
    %3276 = vmatpush.bf16.msra.mxu0 %v2634
    %3277 = vmatpush.bf16.msra.mxu0 %v2626
    %3278 = vmatpush.bf16.msra.mxu0 %v2618
    %3279 = vmatpush.bf16.msra.mxu0 %v2610
    %3280 = vmatpush.bf16.msra.mxu0 %v2602
    %3281 = vmatpush.bf16.msra.mxu0 %v2594
    %3282 = vmatmul.bf16.gmra.mxu0 %v3212
    %v3283 = vpop.f32.mrf.mxu0
    %v3284 = vadd.f32 %v3270, %v3283
    %v3285 = vpop.f32.mrf.mxu0
    %v3286 = vadd.f32 %v3272, %v3285
    %3287 = vdwg.mxu0
    %3288 = vmatpush.bf16.msra.mxu0 0
    %3289 = vmatpush.bf16.msra.mxu0 0
    %3290 = vmatpush.bf16.msra.mxu0 0
    %3291 = vmatpush.bf16.msra.mxu0 0
    %3292 = vmatpush.bf16.msra.mxu0 0
    %3293 = vmatpush.bf16.msra.mxu0 0
    %3294 = vmatpush.bf16.msra.mxu0 %v2821
    %3295 = vmatpush.bf16.msra.mxu0 %v2658
    %3296 = vmatmul.bf16.gmra.mxu0 %v3216
    %v3297 = vpop.f32.mrf.mxu0
    %v3298 = vadd.f32 %v3284, %v3297
    %v3299 = vpop.f32.mrf.mxu0
    %v3300 = vadd.f32 %v3286, %v3299
    %3301 = vdwg.mxu0
    %3302 = vmatpush.bf16.msra.mxu0 %v2587
    %3303 = vmatpush.bf16.msra.mxu0 %v2579
    %3304 = vmatpush.bf16.msra.mxu0 %v2571
    %3305 = vmatpush.bf16.msra.mxu0 %v2563
    %3306 = vmatpush.bf16.msra.mxu0 %v2555
    %3307 = vmatpush.bf16.msra.mxu0 %v2547
    %3308 = vmatpush.bf16.msra.mxu0 %v2539
    %3309 = vmatpush.bf16.msra.mxu0 %v2531
    %3310 = vmatmul.bf16.gmra.mxu0 %v3211
    %v3311 = vpop.f32.mrf.mxu0
    %v3312 = vadd.f32 0.0, %v3311
    %v3313 = vpop.f32.mrf.mxu0
    %v3314 = vadd.f32 0.0, %v3313
    %3315 = vdwg.mxu0
    %3316 = vmatpush.bf16.msra.mxu0 %v2651
    %3317 = vmatpush.bf16.msra.mxu0 %v2643
    %3318 = vmatpush.bf16.msra.mxu0 %v2635
    %3319 = vmatpush.bf16.msra.mxu0 %v2627
    %3320 = vmatpush.bf16.msra.mxu0 %v2619
    %3321 = vmatpush.bf16.msra.mxu0 %v2611
    %3322 = vmatpush.bf16.msra.mxu0 %v2603
    %3323 = vmatpush.bf16.msra.mxu0 %v2595
    %3324 = vmatmul.bf16.gmra.mxu0 %v3212
    %v3325 = vpop.f32.mrf.mxu0
    %v3326 = vadd.f32 %v3312, %v3325
    %v3327 = vpop.f32.mrf.mxu0
    %v3328 = vadd.f32 %v3314, %v3327
    %3329 = vdwg.mxu0
    %3330 = vmatpush.bf16.msra.mxu0 0
    %3331 = vmatpush.bf16.msra.mxu0 0
    %3332 = vmatpush.bf16.msra.mxu0 0
    %3333 = vmatpush.bf16.msra.mxu0 0
    %3334 = vmatpush.bf16.msra.mxu0 0
    %3335 = vmatpush.bf16.msra.mxu0 0
    %3336 = vmatpush.bf16.msra.mxu0 %v2824
    %3337 = vmatpush.bf16.msra.mxu0 %v2659
    %3338 = vmatmul.bf16.gmra.mxu0 %v3216
    %v3339 = vpop.f32.mrf.mxu0
    %v3340 = vadd.f32 %v3326, %v3339
    %v3341 = vpop.f32.mrf.mxu0
    %v3342 = vadd.f32 %v3328, %v3341
    %3343 = vdwg.mxu0
    %3344 = vmatpush.bf16.msra.mxu0 %v2588
    %3345 = vmatpush.bf16.msra.mxu0 %v2580
    %3346 = vmatpush.bf16.msra.mxu0 %v2572
    %3347 = vmatpush.bf16.msra.mxu0 %v2564
    %3348 = vmatpush.bf16.msra.mxu0 %v2556
    %3349 = vmatpush.bf16.msra.mxu0 %v2548
    %3350 = vmatpush.bf16.msra.mxu0 %v2540
    %3351 = vmatpush.bf16.msra.mxu0 %v2532
    %3352 = vmatmul.bf16.gmra.mxu0 %v3211
    %v3353 = vpop.f32.mrf.mxu0
    %v3354 = vadd.f32 0.0, %v3353
    %v3355 = vpop.f32.mrf.mxu0
    %v3356 = vadd.f32 0.0, %v3355
    %3357 = vdwg.mxu0
    %3358 = vmatpush.bf16.msra.mxu0 %v2652
    %3359 = vmatpush.bf16.msra.mxu0 %v2644
    %3360 = vmatpush.bf16.msra.mxu0 %v2636
    %3361 = vmatpush.bf16.msra.mxu0 %v2628
    %3362 = vmatpush.bf16.msra.mxu0 %v2620
    %3363 = vmatpush.bf16.msra.mxu0 %v2612
    %3364 = vmatpush.bf16.msra.mxu0 %v2604
    %3365 = vmatpush.bf16.msra.mxu0 %v2596
    %3366 = vmatmul.bf16.gmra.mxu0 %v3212
    %v3367 = vpop.f32.mrf.mxu0
    %v3368 = vadd.f32 %v3354, %v3367
    %v3369 = vpop.f32.mrf.mxu0
    %v3370 = vadd.f32 %v3356, %v3369
    %3371 = vdwg.mxu0
    %3372 = vmatpush.bf16.msra.mxu0 0
    %3373 = vmatpush.bf16.msra.mxu0 0
    %3374 = vmatpush.bf16.msra.mxu0 0
    %3375 = vmatpush.bf16.msra.mxu0 0
    %3376 = vmatpush.bf16.msra.mxu0 0
    %3377 = vmatpush.bf16.msra.mxu0 0
    %3378 = vmatpush.bf16.msra.mxu0 %v2827
    %3379 = vmatpush.bf16.msra.mxu0 %v2660
    %3380 = vmatmul.bf16.gmra.mxu0 %v3216
    %v3381 = vpop.f32.mrf.mxu0
    %v3382 = vadd.f32 %v3368, %v3381
    %v3383 = vpop.f32.mrf.mxu0
    %v3384 = vadd.f32 %v3370, %v3383
    %3385 = vdwg.mxu0
    %3386 = vmatpush.bf16.msra.mxu0 %v2589
    %3387 = vmatpush.bf16.msra.mxu0 %v2581
    %3388 = vmatpush.bf16.msra.mxu0 %v2573
    %3389 = vmatpush.bf16.msra.mxu0 %v2565
    %3390 = vmatpush.bf16.msra.mxu0 %v2557
    %3391 = vmatpush.bf16.msra.mxu0 %v2549
    %3392 = vmatpush.bf16.msra.mxu0 %v2541
    %3393 = vmatpush.bf16.msra.mxu0 %v2533
    %3394 = vmatmul.bf16.gmra.mxu0 %v3211
    %v3395 = vpop.f32.mrf.mxu0
    %v3396 = vadd.f32 0.0, %v3395
    %v3397 = vpop.f32.mrf.mxu0
    %v3398 = vadd.f32 0.0, %v3397
    %3399 = vdwg.mxu0
    %3400 = vmatpush.bf16.msra.mxu0 %v2653
    %3401 = vmatpush.bf16.msra.mxu0 %v2645
    %3402 = vmatpush.bf16.msra.mxu0 %v2637
    %3403 = vmatpush.bf16.msra.mxu0 %v2629
    %3404 = vmatpush.bf16.msra.mxu0 %v2621
    %3405 = vmatpush.bf16.msra.mxu0 %v2613
    %3406 = vmatpush.bf16.msra.mxu0 %v2605
    %3407 = vmatpush.bf16.msra.mxu0 %v2597
    %3408 = vmatmul.bf16.gmra.mxu0 %v3212
    %v3409 = vpop.f32.mrf.mxu0
    %v3410 = vadd.f32 %v3396, %v3409
    %v3411 = vpop.f32.mrf.mxu0
    %v3412 = vadd.f32 %v3398, %v3411
    %3413 = vdwg.mxu0
    %3414 = vmatpush.bf16.msra.mxu0 0
    %3415 = vmatpush.bf16.msra.mxu0 0
    %3416 = vmatpush.bf16.msra.mxu0 0
    %3417 = vmatpush.bf16.msra.mxu0 0
    %3418 = vmatpush.bf16.msra.mxu0 0
    %3419 = vmatpush.bf16.msra.mxu0 0
    %3420 = vmatpush.bf16.msra.mxu0 %v2830
    %3421 = vmatpush.bf16.msra.mxu0 %v2661
    %3422 = vmatmul.bf16.gmra.mxu0 %v3216
    %v3423 = vpop.f32.mrf.mxu0
    %v3424 = vadd.f32 %v3410, %v3423
    %v3425 = vpop.f32.mrf.mxu0
    %v3426 = vadd.f32 %v3412, %v3425
    %3427 = vdwg.mxu0
    %3428 = vmatpush.bf16.msra.mxu0 %v2590
    %3429 = vmatpush.bf16.msra.mxu0 %v2582
    %3430 = vmatpush.bf16.msra.mxu0 %v2574
    %3431 = vmatpush.bf16.msra.mxu0 %v2566
    %3432 = vmatpush.bf16.msra.mxu0 %v2558
    %3433 = vmatpush.bf16.msra.mxu0 %v2550
    %3434 = vmatpush.bf16.msra.mxu0 %v2542
    %3435 = vmatpush.bf16.msra.mxu0 %v2534
    %3436 = vmatmul.bf16.gmra.mxu0 %v3211
    %v3437 = vpop.f32.mrf.mxu0
    %v3438 = vadd.f32 0.0, %v3437
    %v3439 = vpop.f32.mrf.mxu0
    %v3440 = vadd.f32 0.0, %v3439
    %3441 = vdwg.mxu0
    %3442 = vmatpush.bf16.msra.mxu0 %v2654
    %3443 = vmatpush.bf16.msra.mxu0 %v2646
    %3444 = vmatpush.bf16.msra.mxu0 %v2638
    %3445 = vmatpush.bf16.msra.mxu0 %v2630
    %3446 = vmatpush.bf16.msra.mxu0 %v2622
    %3447 = vmatpush.bf16.msra.mxu0 %v2614
    %3448 = vmatpush.bf16.msra.mxu0 %v2606
    %3449 = vmatpush.bf16.msra.mxu0 %v2598
    %3450 = vmatmul.bf16.gmra.mxu0 %v3212
    %v3451 = vpop.f32.mrf.mxu0
    %v3452 = vadd.f32 %v3438, %v3451
    %v3453 = vpop.f32.mrf.mxu0
    %v3454 = vadd.f32 %v3440, %v3453
    %3455 = vdwg.mxu0
    %3456 = vmatpush.bf16.msra.mxu0 0
    %3457 = vmatpush.bf16.msra.mxu0 0
    %3458 = vmatpush.bf16.msra.mxu0 0
    %3459 = vmatpush.bf16.msra.mxu0 0
    %3460 = vmatpush.bf16.msra.mxu0 0
    %3461 = vmatpush.bf16.msra.mxu0 0
    %3462 = vmatpush.bf16.msra.mxu0 %v2833
    %3463 = vmatpush.bf16.msra.mxu0 %v2662
    %3464 = vmatmul.bf16.gmra.mxu0 %v3216
    %v3465 = vpop.f32.mrf.mxu0
    %v3466 = vadd.f32 %v3452, %v3465
    %v3467 = vpop.f32.mrf.mxu0
    %v3468 = vadd.f32 %v3454, %v3467
    %3469 = vdwg.mxu0
    %3470 = vmatpush.bf16.msra.mxu0 %v2591
    %3471 = vmatpush.bf16.msra.mxu0 %v2583
    %3472 = vmatpush.bf16.msra.mxu0 %v2575
    %3473 = vmatpush.bf16.msra.mxu0 %v2567
    %3474 = vmatpush.bf16.msra.mxu0 %v2559
    %3475 = vmatpush.bf16.msra.mxu0 %v2551
    %3476 = vmatpush.bf16.msra.mxu0 %v2543
    %3477 = vmatpush.bf16.msra.mxu0 %v2535
    %3478 = vmatmul.bf16.gmra.mxu0 %v3211
    %v3479 = vpop.f32.mrf.mxu0
    %v3480 = vadd.f32 0.0, %v3479
    %v3481 = vpop.f32.mrf.mxu0
    %v3482 = vadd.f32 0.0, %v3481
    %3483 = vdwg.mxu0
    %3484 = vmatpush.bf16.msra.mxu0 %v2655
    %3485 = vmatpush.bf16.msra.mxu0 %v2647
    %3486 = vmatpush.bf16.msra.mxu0 %v2639
    %3487 = vmatpush.bf16.msra.mxu0 %v2631
    %3488 = vmatpush.bf16.msra.mxu0 %v2623
    %3489 = vmatpush.bf16.msra.mxu0 %v2615
    %3490 = vmatpush.bf16.msra.mxu0 %v2607
    %3491 = vmatpush.bf16.msra.mxu0 %v2599
    %3492 = vmatmul.bf16.gmra.mxu0 %v3212
    %v3493 = vpop.f32.mrf.mxu0
    %v3494 = vadd.f32 %v3480, %v3493
    %v3495 = vpop.f32.mrf.mxu0
    %v3496 = vadd.f32 %v3482, %v3495
    %3497 = vdwg.mxu0
    %3498 = vmatpush.bf16.msra.mxu0 0
    %3499 = vmatpush.bf16.msra.mxu0 0
    %3500 = vmatpush.bf16.msra.mxu0 0
    %3501 = vmatpush.bf16.msra.mxu0 0
    %3502 = vmatpush.bf16.msra.mxu0 0
    %3503 = vmatpush.bf16.msra.mxu0 0
    %3504 = vmatpush.bf16.msra.mxu0 %v2836
    %3505 = vmatpush.bf16.msra.mxu0 %v2663
    %3506 = vmatmul.bf16.gmra.mxu0 %v3216
    %v3507 = vpop.f32.mrf.mxu0
    %v3508 = vadd.f32 %v3494, %v3507
    %v3509 = vpop.f32.mrf.mxu0
    %v3510 = vadd.f32 %v3496, %v3509
    %3511 = vdwg.mxu0
    %3512 = vmatpush.bf16.msra.mxu0 %v2592
    %3513 = vmatpush.bf16.msra.mxu0 %v2584
    %3514 = vmatpush.bf16.msra.mxu0 %v2576
    %3515 = vmatpush.bf16.msra.mxu0 %v2568
    %3516 = vmatpush.bf16.msra.mxu0 %v2560
    %3517 = vmatpush.bf16.msra.mxu0 %v2552
    %3518 = vmatpush.bf16.msra.mxu0 %v2544
    %3519 = vmatpush.bf16.msra.mxu0 %v2536
    %3520 = vmatmul.bf16.gmra.mxu0 %v3211
    %v3521 = vpop.f32.mrf.mxu0
    %v3522 = vadd.f32 0.0, %v3521
    %v3523 = vpop.f32.mrf.mxu0
    %v3524 = vadd.f32 0.0, %v3523
    %3525 = vdwg.mxu0
    %3526 = vmatpush.bf16.msra.mxu0 %v2656
    %3527 = vmatpush.bf16.msra.mxu0 %v2648
    %3528 = vmatpush.bf16.msra.mxu0 %v2640
    %3529 = vmatpush.bf16.msra.mxu0 %v2632
    %3530 = vmatpush.bf16.msra.mxu0 %v2624
    %3531 = vmatpush.bf16.msra.mxu0 %v2616
    %3532 = vmatpush.bf16.msra.mxu0 %v2608
    %3533 = vmatpush.bf16.msra.mxu0 %v2600
    %3534 = vmatmul.bf16.gmra.mxu0 %v3212
    %v3535 = vpop.f32.mrf.mxu0
    %v3536 = vadd.f32 %v3522, %v3535
    %v3537 = vpop.f32.mrf.mxu0
    %v3538 = vadd.f32 %v3524, %v3537
    %3539 = vdwg.mxu0
    %3540 = vmatpush.bf16.msra.mxu0 0
    %3541 = vmatpush.bf16.msra.mxu0 0
    %3542 = vmatpush.bf16.msra.mxu0 0
    %3543 = vmatpush.bf16.msra.mxu0 0
    %3544 = vmatpush.bf16.msra.mxu0 0
    %3545 = vmatpush.bf16.msra.mxu0 0
    %3546 = vmatpush.bf16.msra.mxu0 %v2839
    %3547 = vmatpush.bf16.msra.mxu0 %v2664
    %3548 = vmatmul.bf16.gmra.mxu0 %v3216
    %v3549 = vpop.f32.mrf.mxu0
    %v3550 = vadd.f32 %v3536, %v3549
    %v3551 = vpop.f32.mrf.mxu0
    %v3552 = vadd.f32 %v3538, %v3551
    %3553 = vdwg.mxu0
    %v3554 = vmax.f32 %v3256, %v3298
    %v3555 = vmax.f32 %v3258, %v3300
    %v3556 = vmax.f32 %v3554, %v3340
    %v3557 = vmax.f32 %v3555, %v3342
    %v3558 = vmax.f32 %v3556, %v3382
    %v3559 = vmax.f32 %v3557, %v3384
    %v3560 = vmax.f32 %v3558, %v3424
    %v3561 = vmax.f32 %v3559, %v3426
    %v3562 = vmax.f32 %v3560, %v3466
    %v3563 = vmax.f32 %v3561, %v3468
    %v3564 = vmax.f32 %v3562, %v3508
    %v3565 = vmax.f32 %v3563, %v3510
    %v3566 = vmax.f32 %v3564, %v3550
    %v3567 = vmax.f32 %v3565, %v3552
    %v3568 = vpack.c.bf16 %v3566, %v3566
    %v3569 = vpack.c.bf16 %v3567, %v3567
    %3572 = vrot.lane.b32.xlu0 %v3568, 70
    %v3573 = vpop.permute.xlu0 %3572
    %3574 = vrot.lane.b32.xlu0 %v3569, 70
    %v3575 = vpop.permute.xlu0 %3574
    %v3576 = vrot.slane %v3573, 4
    %v3577 = vrot.slane %v3575, 4
    %v3578 = vsel %vm346, %v3576, %v3573
    %v3579 = vsel %vm346, %v3577, %v3575
    %vm3582 = vcmask 1044016
    %vm3583 = vcmask 97284
    %vm3584 = vmor %vm3583, %vm3582
    %3585 = vst.msk [vmem:[#allocation4] sm:$0xff] %vm3584, %v3578
    %3586 = vst.msk [vmem:[#allocation4 + $0x8] sm:$0xff] %vm3584, %v3579
    %v3587 = vld [vmem:[#allocation4] sm:$0xf]
    %v3588 = vld [vmem:[#allocation4 + $0x8] sm:$0xf]
    %vm3589 = vcmask 486400
    %3590 = vst.msk [vmem:[#allocation2] sm:$0xf] %vm3589, %v3587
    %3591 = vst.msk [vmem:[#allocation2 + $0x14] sm:$0xf] %vm3589, %v3588
    %v3592 = vld [vmem:[#allocation4] sm:$0xf]
    %v3593 = vld [vmem:[#allocation4 + $0x8] sm:$0xf]
    %3596 = vrot.lane.b32.xlu0 %v3592, 127
    %v3597 = vpop.permute.xlu0 %3596
    %3598 = vrot.lane.b32.xlu0 %v3593, 127
    %v3599 = vpop.permute.xlu0 %3598
    %3602 = vst.msk [vmem:[#allocation2 + $0x28] sm:$0xf] %vm3589, %v3597
    %3603 = vst.msk [vmem:[#allocation2 + $0x3c] sm:$0xf] %vm3589, %v3599
    %v3604 = vld [vmem:[#allocation4] sm:$0xf]
    %v3605 = vld [vmem:[#allocation4 + $0x8] sm:$0xf]
    %3608 = vrot.lane.b32.xlu0 %v3604, 126
    %v3609 = vpop.permute.xlu0 %3608
    %3610 = vrot.lane.b32.xlu0 %v3605, 126
    %v3611 = vpop.permute.xlu0 %3610
    %3614 = vst.msk [vmem:[#allocation2 + $0x50] sm:$0xf] %vm3589, %v3609
    %3615 = vst.msk [vmem:[#allocation2 + $0x64] sm:$0xf] %vm3589, %v3611
    %v3616 = vld [vmem:[#allocation4] sm:$0xf]
    %v3617 = vld [vmem:[#allocation4 + $0x8] sm:$0xf]
    %3620 = vrot.lane.b32.xlu0 %v3616, 125
    %v3621 = vpop.permute.xlu0 %3620
    %3622 = vrot.lane.b32.xlu0 %v3617, 125
    %v3623 = vpop.permute.xlu0 %3622
    %3626 = vst.msk [vmem:[#allocation2 + $0x78] sm:$0xf] %vm3589, %v3621
    %3627 = vst.msk [vmem:[#allocation2 + $0x8c] sm:$0xf] %vm3589, %v3623
    %v3628 = vld [vmem:[#allocation4] sm:$0xf]
    %v3629 = vld [vmem:[#allocation4 + $0x8] sm:$0xf]
    %3632 = vrot.lane.b32.xlu0 %v3628, 121
    %v3633 = vpop.permute.xlu0 %3632
    %3634 = vrot.lane.b32.xlu0 %v3629, 121
    %v3635 = vpop.permute.xlu0 %3634
    %3638 = vst.msk [vmem:[#allocation2 + $0xa0] sm:$0xf] %vm3589, %v3633
    %3639 = vst.msk [vmem:[#allocation2 + $0xb4] sm:$0xf] %vm3589, %v3635
    %v3640 = vld [vmem:[#allocation4] sm:$0xf]
    %v3641 = vld [vmem:[#allocation4 + $0x8] sm:$0xf]
    %3644 = vrot.lane.b32.xlu0 %v3640, 120
    %v3645 = vpop.permute.xlu0 %3644
    %3646 = vrot.lane.b32.xlu0 %v3641, 120
    %v3647 = vpop.permute.xlu0 %3646
    %3650 = vst.msk [vmem:[#allocation2 + $0xc8] sm:$0xf] %vm3589, %v3645
    %3651 = vst.msk [vmem:[#allocation2 + $0xdc] sm:$0xf] %vm3589, %v3647
    %v3652 = vld [vmem:[#allocation4] sm:$0xf]
    %v3653 = vld [vmem:[#allocation4 + $0x8] sm:$0xf]
    %3656 = vrot.lane.b32.xlu0 %v3652, 119
    %v3657 = vpop.permute.xlu0 %3656
    %3658 = vrot.lane.b32.xlu0 %v3653, 119
    %v3659 = vpop.permute.xlu0 %3658
    %3662 = vst.msk [vmem:[#allocation2 + $0xf0] sm:$0xf] %vm3589, %v3657
    %3663 = vst.msk [vmem:[#allocation2 + $0x104] sm:$0xf] %vm3589, %v3659
    %v3664 = vld [vmem:[#allocation4] sm:$0xf]
    %v3665 = vld [vmem:[#allocation4 + $0x8] sm:$0xf]
    %3668 = vrot.lane.b32.xlu0 %v3664, 118
    %v3669 = vpop.permute.xlu0 %3668
    %3670 = vrot.lane.b32.xlu0 %v3665, 118
    %v3671 = vpop.permute.xlu0 %3670
    %3674 = vst.msk [vmem:[#allocation2 + $0x118] sm:$0xf] %vm3589, %v3669
    %3675 = vst.msk [vmem:[#allocation2 + $0x12c] sm:$0xf] %vm3589, %v3671
    %v3676 = vld [vmem:[#allocation4] sm:$0xff]
    %v3677 = vld [vmem:[#allocation4 + $0x8] sm:$0xff]
    %3680 = vrot.lane.b32.xlu0 %v3676, 118
    %v3681 = vpop.permute.xlu0 %3680
    %3682 = vrot.lane.b32.xlu0 %v3677, 118
    %v3683 = vpop.permute.xlu0 %3682
    %v3684 = vrot.slane %v3681, 4
    %v3685 = vrot.slane %v3683, 4
    %vm3686 = vcmask 965632
    %v3687 = vsel %vm3686, %v3681, %v3684
    %v3688 = vsel %vm3686, %v3683, %v3685
    %vm3691 = vcmask 978400
    %3692 = vst.msk [vmem:[#allocation2] sm:$0xf] %vm3691, %v3687
    %3693 = vst.msk [vmem:[#allocation2 + $0x14] sm:$0xf] %vm3691, %v3688
    %v3694 = vld [vmem:[#allocation4] sm:$0xff]
    %v3695 = vld [vmem:[#allocation4 + $0x8] sm:$0xff]
    %3698 = vrot.lane.b32.xlu0 %v3694, 117
    %v3699 = vpop.permute.xlu0 %3698
    %3700 = vrot.lane.b32.xlu0 %v3695, 117
    %v3701 = vpop.permute.xlu0 %3700
    %v3702 = vrot.slane %v3699, 4
    %v3703 = vrot.slane %v3701, 4
    %vm3704 = vcmask 957440
    %v3705 = vsel %vm3704, %v3699, %v3702
    %v3706 = vsel %vm3704, %v3701, %v3703
    %3709 = vst.msk [vmem:[#allocation2 + $0x28] sm:$0xf] %vm3691, %v3705
    %3710 = vst.msk [vmem:[#allocation2 + $0x3c] sm:$0xf] %vm3691, %v3706
    %v3711 = vld [vmem:[#allocation4] sm:$0xff]
    %v3712 = vld [vmem:[#allocation4 + $0x8] sm:$0xff]
    %3715 = vrot.lane.b32.xlu0 %v3711, 116
    %v3716 = vpop.permute.xlu0 %3715
    %3717 = vrot.lane.b32.xlu0 %v3712, 116
    %v3718 = vpop.permute.xlu0 %3717
    %v3719 = vrot.slane %v3716, 4
    %v3720 = vrot.slane %v3718, 4
    %vm3721 = vcmask 949248
    %v3722 = vsel %vm3721, %v3716, %v3719
    %v3723 = vsel %vm3721, %v3718, %v3720
    %3726 = vst.msk [vmem:[#allocation2 + $0x50] sm:$0xf] %vm3691, %v3722
    %3727 = vst.msk [vmem:[#allocation2 + $0x64] sm:$0xf] %vm3691, %v3723
    %v3728 = vld [vmem:[#allocation4] sm:$0xff]
    %v3729 = vld [vmem:[#allocation4 + $0x8] sm:$0xff]
    %3732 = vrot.lane.b32.xlu0 %v3728, 115
    %v3733 = vpop.permute.xlu0 %3732
    %3734 = vrot.lane.b32.xlu0 %v3729, 115
    %v3735 = vpop.permute.xlu0 %3734
    %v3736 = vrot.slane %v3733, 4
    %v3737 = vrot.slane %v3735, 4
    %vm3738 = vcmask 941056
    %v3739 = vsel %vm3738, %v3733, %v3736
    %v3740 = vsel %vm3738, %v3735, %v3737
    %3743 = vst.msk [vmem:[#allocation2 + $0x78] sm:$0xf] %vm3691, %v3739
    %3744 = vst.msk [vmem:[#allocation2 + $0x8c] sm:$0xf] %vm3691, %v3740
    %v3745 = vld [vmem:[#allocation4] sm:$0xff]
    %v3746 = vld [vmem:[#allocation4 + $0x8] sm:$0xff]
    %3749 = vrot.lane.b32.xlu0 %v3745, 111
    %v3750 = vpop.permute.xlu0 %3749
    %3751 = vrot.lane.b32.xlu0 %v3746, 111
    %v3752 = vpop.permute.xlu0 %3751
    %v3753 = vrot.slane %v3750, 4
    %v3754 = vrot.slane %v3752, 4
    %vm3755 = vcmask 908288
    %v3756 = vsel %vm3755, %v3750, %v3753
    %v3757 = vsel %vm3755, %v3752, %v3754
    %3760 = vst.msk [vmem:[#allocation2 + $0xa0] sm:$0xf] %vm3691, %v3756
    %3761 = vst.msk [vmem:[#allocation2 + $0xb4] sm:$0xf] %vm3691, %v3757
    %v3762 = vld [vmem:[#allocation4] sm:$0xff]
    %v3763 = vld [vmem:[#allocation4 + $0x8] sm:$0xff]
    %3766 = vrot.lane.b32.xlu0 %v3762, 110
    %v3767 = vpop.permute.xlu0 %3766
    %3768 = vrot.lane.b32.xlu0 %v3763, 110
    %v3769 = vpop.permute.xlu0 %3768
    %v3770 = vrot.slane %v3767, 4
    %v3771 = vrot.slane %v3769, 4
    %v3772 = vsel %vm114, %v3767, %v3770
    %v3773 = vsel %vm114, %v3769, %v3771
    %3776 = vst.msk [vmem:[#allocation2 + $0xc8] sm:$0xf] %vm3691, %v3772
    %3777 = vst.msk [vmem:[#allocation2 + $0xdc] sm:$0xf] %vm3691, %v3773
    %v3778 = vld [vmem:[#allocation4] sm:$0xff]
    %v3779 = vld [vmem:[#allocation4 + $0x8] sm:$0xff]
    %3782 = vrot.lane.b32.xlu0 %v3778, 109
    %v3783 = vpop.permute.xlu0 %3782
    %3784 = vrot.lane.b32.xlu0 %v3779, 109
    %v3785 = vpop.permute.xlu0 %3784
    %v3786 = vrot.slane %v3783, 4
    %v3787 = vrot.slane %v3785, 4
    %v3788 = vsel %vm134, %v3783, %v3786
    %v3789 = vsel %vm134, %v3785, %v3787
    %3792 = vst.msk [vmem:[#allocation2 + $0xf0] sm:$0xf] %vm3691, %v3788
    %3793 = vst.msk [vmem:[#allocation2 + $0x104] sm:$0xf] %vm3691, %v3789
    %v3794 = vld [vmem:[#allocation4] sm:$0xff]
    %v3795 = vld [vmem:[#allocation4 + $0x8] sm:$0xff]
    %3798 = vrot.lane.b32.xlu0 %v3794, 108
    %v3799 = vpop.permute.xlu0 %3798
    %3800 = vrot.lane.b32.xlu0 %v3795, 108
    %v3801 = vpop.permute.xlu0 %3800
    %v3802 = vrot.slane %v3799, 4
    %v3803 = vrot.slane %v3801, 4
    %v3804 = vsel %vm155, %v3799, %v3802
    %v3805 = vsel %vm155, %v3801, %v3803
    %3808 = vst.msk [vmem:[#allocation2 + $0x118] sm:$0xf] %vm3691, %v3804
    %3809 = vst.msk [vmem:[#allocation2 + $0x12c] sm:$0xf] %vm3691, %v3805
    %v3810 = vld [vmem:[%s4] sm:$0xff]
    %v3811 = vld [vmem:[%s4 + $0x8] sm:$0xff]
    %v3812 = vld [vmem:[%s4 + $0x10] sm:$0xff]
    %v3813 = vld [vmem:[%s5 + $0x2] sm:$0x1]
    %v3814 = vld [vmem:[%s3] sm:$0xf]
    %v3815 = vld [vmem:[%s3 + $0x4] sm:$0xf]
    %v3816 = vld [vmem:[%s3 + $0x8] sm:$0xf]
    %v3817 = vld [vmem:[#allocation2] sm:$0xf]
    %v3818 = vld [vmem:[#allocation2 + $0x14] sm:$0xf]
    %v3819 = vld [vmem:[#allocation2 + $0x28] sm:$0xf]
    %v3820 = vld [vmem:[#allocation2 + $0x3c] sm:$0xf]
    %v3821 = vld [vmem:[#allocation2 + $0x50] sm:$0xf]
    %v3822 = vld [vmem:[#allocation2 + $0x64] sm:$0xf]
    %v3823 = vld [vmem:[#allocation2 + $0x78] sm:$0xf]
    %v3824 = vld [vmem:[#allocation2 + $0x8c] sm:$0xf]
    %v3825 = vld [vmem:[#allocation2 + $0xa0] sm:$0xf]
    %v3826 = vld [vmem:[#allocation2 + $0xb4] sm:$0xf]
    %v3827 = vld [vmem:[#allocation2 + $0xc8] sm:$0xf]
    %v3828 = vld [vmem:[#allocation2 + $0xdc] sm:$0xf]
    %v3829 = vld [vmem:[#allocation2 + $0xf0] sm:$0xf]
    %v3830 = vld [vmem:[#allocation2 + $0x104] sm:$0xf]
    %v3831 = vld [vmem:[#allocation2 + $0x118] sm:$0xf]
    %v3832 = vld [vmem:[#allocation2 + $0x12c] sm:$0xf]
    %3834 = vset.pattern.permute.xlu0 6
    %3835 = vperm.xlu0 %3834, %v3810
    %v3836 = vpop.permute.xlu0 %3835
    %3839 = vset.pattern.permute.xlu0 6
    %3840 = vperm.xlu0 %3839, %v3811
    %v3841 = vpop.permute.xlu0 %3840
    %3844 = vset.pattern.permute.xlu0 6
    %3845 = vperm.xlu0 %3844, %v3812
    %v3846 = vpop.permute.xlu0 %3845
    %v3851 = vunpack.c.l.b16 %v3814
    %v3852 = vunpack.c.l.b16 %v3815
    %v3853 = vunpack.c.l.b16 %v3816
    %v3854 = vpack.c.b16 %v3852, %v3851
    %v3855 = vpack.c.b16 %v3853, %v3853
    %v3874 = vunpack.c.l.b16 %v3817
    %v3875 = vunpack.c.l.b16 %v3818
    %v3876 = vunpack.c.l.b16 %v3819
    %v3877 = vunpack.c.l.b16 %v3820
    %v3878 = vunpack.c.l.b16 %v3821
    %v3879 = vunpack.c.l.b16 %v3822
    %v3880 = vunpack.c.l.b16 %v3823
    %v3881 = vunpack.c.l.b16 %v3824
    %v3882 = vunpack.c.l.b16 %v3825
    %v3883 = vunpack.c.l.b16 %v3826
    %v3884 = vunpack.c.l.b16 %v3827
    %v3885 = vunpack.c.l.b16 %v3828
    %v3886 = vunpack.c.l.b16 %v3829
    %v3887 = vunpack.c.l.b16 %v3830
    %v3888 = vunpack.c.l.b16 %v3831
    %v3889 = vunpack.c.l.b16 %v3832
    %v3890 = vpack.c.b16 %v3875, %v3874
    %v3891 = vpack.c.b16 %v3877, %v3876
    %v3892 = vpack.c.b16 %v3879, %v3878
    %v3893 = vpack.c.b16 %v3881, %v3880
    %v3894 = vpack.c.b16 %v3883, %v3882
    %v3895 = vpack.c.b16 %v3885, %v3884
    %v3896 = vpack.c.b16 %v3887, %v3886
    %v3897 = vpack.c.b16 %v3889, %v3888
    %3906 = vmatpush.bf16.msra.mxu0 %v3897
    %3907 = vmatpush.bf16.msra.mxu0 %v3896
    %3908 = vmatpush.bf16.msra.mxu0 %v3895
    %3909 = vmatpush.bf16.msra.mxu0 %v3894
    %3910 = vmatpush.bf16.msra.mxu0 %v3893
    %3911 = vmatpush.bf16.msra.mxu0 %v3892
    %3912 = vmatpush.bf16.msra.mxu0 %v3891
    %3913 = vmatpush.bf16.msra.mxu0 %v3890
    %3914 = vmatmul.bf16.gmra.mxu0 %v3854
    %v3915 = vpop.f32.mrf.mxu0
    %v3916 = vadd.f32 %v3836, %v3915
    %v3917 = vpop.f32.mrf.mxu0
    %v3918 = vadd.f32 %v3841, %v3917
    %3919 = vmatmul.bf16.gmra.mxu0 %v3855
    %v3920 = vpop.f32.mrf.mxu0
    %v3921 = vadd.f32 %v3846, %v3920
    %v3922 = vpop.f32.mrf.mxu0
    %3923 = vdwg.mxu0
    %v3924 = vperm.slane %v3813, 0
    %v3925 = vmul.f32 %v3916, %v3924
    %v3926 = vmul.f32 %v3918, %v3924
    %v3927 = vmul.f32 %v3921, %v3924
    %vm3928 = vcmask 982016
    %v3929 = vsel %vm3928, %v3925, 0.0
    %3930 = vadd.xlane.f32.xlu0 %v3929
    %v3931 = vpop.xlane.xlu0 %3930
    %v3932 = vsel %vm3928, %v3926, 0.0
    %3933 = vadd.xlane.f32.xlu0 %v3932
    %v3934 = vpop.xlane.xlu0 %3933
    %v3935 = vsel %vm3928, %v3927, 0.0
    %3936 = vadd.xlane.f32.xlu0 %v3935
    %v3937 = vpop.xlane.xlu0 %3936
    %v3938 = vmul.f32 %v3931, 0.013888889
    %v3939 = vmul.f32 %v3934, 0.013888889
    %v3940 = vmul.f32 %v3937, 0.013888889
    %v3941 = vmul.f32 %v3925, %v3916
    %v3942 = vmul.f32 %v3926, %v3918
    %v3943 = vmul.f32 %v3927, %v3921
    %v3944 = vsel %vm3928, %v3941, 0.0
    %3945 = vadd.xlane.f32.xlu0 %v3944
    %v3946 = vpop.xlane.xlu0 %3945
    %v3947 = vsel %vm3928, %v3942, 0.0
    %3948 = vadd.xlane.f32.xlu0 %v3947
    %v3949 = vpop.xlane.xlu0 %3948
    %v3950 = vsel %vm3928, %v3943, 0.0
    %3951 = vadd.xlane.f32.xlu0 %v3950
    %v3952 = vpop.xlane.xlu0 %3951
    %v3953 = vmul.f32 %v3946, 0.013888889
    %v3954 = vmul.f32 %v3949, 0.013888889
    %v3955 = vmul.f32 %v3952, 0.013888889
    %v3956 = vmul.f32 %v3938, %v3938
    %v3957 = vmul.f32 %v3939, %v3939
    %v3958 = vmul.f32 %v3940, %v3940
    %v3959 = vsub.f32 %v3953, %v3956
    %v3960 = vsub.f32 %v3954, %v3957
    %v3961 = vsub.f32 %v3955, %v3958
    %v3962 = vmax.f32 %v3959, 0.0
    %v3963 = vmax.f32 %v3960, 0.0
    %v3964 = vmax.f32 %v3961, 0.0
    %v3965 = vadd.f32 %v3962, 1e-05
    %v3966 = vadd.f32 %v3963, 1e-05
    %v3967 = vadd.f32 %v3964, 1e-05
    %v3968 = vrsqrt.pop %v3965
    %v3969 = vmul.f32 %v3968, %v3965
    %v3970 = vmul.f32 %v3969, %v3968
    %v3971 = vmul.f32 0.5, %v3970
    %v3972 = vsub.f32 1.5, %v3971
    %v3973 = vmul.f32 %v3968, %v3972
    %vm3974 = vweird.f32 %v3965
    %vm3975 = vweird.f32 %v3968
    %vm3976 = vmor %vm3974, %vm3975
    %v3977 = vsel %vm3976, %v3968, %v3973
    %v3978 = vrsqrt.pop %v3966
    %v3979 = vmul.f32 %v3978, %v3966
    %v3980 = vmul.f32 %v3979, %v3978
    %v3981 = vmul.f32 0.5, %v3980
    %v3982 = vsub.f32 1.5, %v3981
    %v3983 = vmul.f32 %v3978, %v3982
    %vm3984 = vweird.f32 %v3966
    %vm3985 = vweird.f32 %v3978
    %vm3986 = vmor %vm3984, %vm3985
    %v3987 = vsel %vm3986, %v3978, %v3983
    %v3988 = vrsqrt.pop %v3967
    %v3989 = vmul.f32 %v3988, %v3967
    %v3990 = vmul.f32 %v3989, %v3988
    %v3991 = vmul.f32 0.5, %v3990
    %v3992 = vsub.f32 1.5, %v3991
    %v3993 = vmul.f32 %v3988, %v3992
    %vm3994 = vweird.f32 %v3967
    %vm3995 = vweird.f32 %v3988
    %vm3996 = vmor %vm3994, %vm3995
    %v3997 = vsel %vm3996, %v3988, %v3993
    %v3998 = vmul.f32 %v3810, %v3977
    %v3999 = vmul.f32 %v3811, %v3987
    %v4000 = vmul.f32 %v3812, %v3997
    %v4001 = vmul.f32 %v3938, %v3998
    %v4002 = vmul.f32 %v3939, %v3999
    %v4003 = vmul.f32 %v3940, %v4000
    %4007 = vrot.lane.b32.xlu0 %v4001, 1
    %v4008 = vpop.permute.xlu0 %4007
    %4009 = vrot.lane.b32.xlu0 %v4002, 1
    %v4010 = vpop.permute.xlu0 %4009
    %4011 = vrot.lane.b32.xlu0 %v4003, 1
    %v4012 = vpop.permute.xlu0 %4011
    %v4016 = vsub.f32 %v3810, %v4008
    %v4017 = vsub.f32 %v3811, %v4010
    %v4018 = vsub.f32 %v3812, %v4012
    %4020 = vset.pattern.permute.xlu0 7
    %4021 = vperm.xlu0 %4020, %v3998
    %v4022 = vpop.permute.xlu0 %4021
    %4025 = vset.pattern.permute.xlu0 7
    %4026 = vperm.xlu0 %4025, %v3999
    %v4027 = vpop.permute.xlu0 %4026
    %4030 = vset.pattern.permute.xlu0 7
    %4031 = vperm.xlu0 %4030, %v4000
    %v4032 = vpop.permute.xlu0 %4031
    %v4034 = vmul.f32 %v3916, %v4022
    %v4035 = vmul.f32 %v3918, %v4027
    %v4036 = vmul.f32 %v3921, %v4032
    %4038 = vset.pattern.permute.xlu0 8
    %4039 = vperm.xlu0 %4038, %v4016
    %v4040 = vpop.permute.xlu0 %4039
    %4043 = vset.pattern.permute.xlu0 8
    %4044 = vperm.xlu0 %4043, %v4017
    %v4045 = vpop.permute.xlu0 %4044
    %4048 = vset.pattern.permute.xlu0 8
    %4049 = vperm.xlu0 %4048, %v4018
    %v4050 = vpop.permute.xlu0 %4049
    %v4052 = vadd.f32 %v4034, %v4040
    %v4053 = vadd.f32 %v4035, %v4045
    %v4054 = vadd.f32 %v4036, %v4050
    %v4055 = vmax.f32 %v4052, 0.0
    %v4056 = vmax.f32 %v4053, 0.0
    %v4057 = vmax.f32 %v4054, 0.0
    %v4058 = vpack.c.bf16 %v4056, %v4055
    %v4059 = vpack.c.bf16 %v4057, %v4057
    %v4060 = vld [vmem:[%s7] sm:$0xf]
    %v4061 = vld [vmem:[%s7 + $0x4] sm:$0xf]
    %v4062 = vld [vmem:[%s7 + $0x8] sm:$0xf]
    %v4063 = vld [vmem:[%s7 + $0xc] sm:$0xf]
    %v4064 = vld [vmem:[%s7 + $0x10] sm:$0xf]
    %v4065 = vld [vmem:[%s7 + $0x14] sm:$0xf]
    %v4066 = vld [vmem:[%s7 + $0x18] sm:$0xf]
    %v4067 = vld [vmem:[%s7 + $0x1c] sm:$0xf]
    %v4068 = vld [vmem:[%s7 + $0x20] sm:$0xf]
    %v4069 = vld [vmem:[%s7 + $0x24] sm:$0xf]
    %v4070 = vld [vmem:[%s7 + $0x28] sm:$0xf]
    %v4071 = vld [vmem:[%s7 + $0x2c] sm:$0xf]
    %v4072 = vld [vmem:[%s7 + $0x30] sm:$0xf]
    %v4073 = vld [vmem:[%s7 + $0x34] sm:$0xf]
    %v4074 = vld [vmem:[%s7 + $0x38] sm:$0xf]
    %v4090 = vunpack.c.l.b16 %v4060
    %v4091 = vunpack.c.l.b16 %v4061
    %v4092 = vunpack.c.l.b16 %v4062
    %v4093 = vunpack.c.l.b16 %v4063
    %v4094 = vunpack.c.l.b16 %v4064
    %v4095 = vunpack.c.l.b16 %v4065
    %v4096 = vunpack.c.l.b16 %v4066
    %v4097 = vunpack.c.l.b16 %v4067
    %v4098 = vunpack.c.l.b16 %v4068
    %v4099 = vunpack.c.l.b16 %v4069
    %v4100 = vunpack.c.l.b16 %v4070
    %v4101 = vunpack.c.l.b16 %v4071
    %v4102 = vunpack.c.l.b16 %v4072
    %v4103 = vunpack.c.l.b16 %v4073
    %v4104 = vunpack.c.l.b16 %v4074
    %v4105 = vpack.c.b16 %v4091, %v4090
    %v4106 = vpack.c.b16 %v4093, %v4092
    %v4107 = vpack.c.b16 %v4095, %v4094
    %v4108 = vpack.c.b16 %v4097, %v4096
    %v4109 = vpack.c.b16 %v4099, %v4098
    %v4110 = vpack.c.b16 %v4101, %v4100
    %v4111 = vpack.c.b16 %v4103, %v4102
    %v4112 = vpack.c.b16 %v4104, %v4104
    %v4121 = vsel %vm3928, %v4058, 0
    %v4124 = vsel %vm3928, %v4059, 0
    %v4127 = vsel %vm683, %v4112, 0
    %4129 = vmatpush.bf16.msra.mxu0 %v4127
    %4130 = vmatpush.bf16.msra.mxu0 %v4111
    %4131 = vmatpush.bf16.msra.mxu0 %v4110
    %4132 = vmatpush.bf16.msra.mxu0 %v4109
    %4133 = vmatpush.bf16.msra.mxu0 %v4108
    %4134 = vmatpush.bf16.msra.mxu0 %v4107
    %4135 = vmatpush.bf16.msra.mxu0 %v4106
    %4136 = vmatpush.bf16.msra.mxu0 %v4105
    %4137 = vmatmul.bf16.gmra.mxu0 %v4121
    %v4138 = vpop.f32.mrf.mxu0
    %v4139 = vadd.f32 0.0, %v4138
    %v4140 = vpop.f32.mrf.mxu0
    %v4141 = vadd.f32 0.0, %v4140
    %4142 = vmatmul.bf16.gmra.mxu0 %v4124
    %v4143 = vpop.f32.mrf.mxu0
    %v4144 = vadd.f32 0.0, %v4143
    %v4145 = vpop.f32.mrf.mxu0
    %4146 = vdwg.mxu0
    %v4147 = vmul.f32 %v4139, 0.11111111
    %v4148 = vmul.f32 %v4141, 0.11111111
    %v4149 = vmul.f32 %v4144, 0.11111111
    %vm4150 = vcmask 64512
    %4151 = vst.msk [vmem:[%s8] sm:$0xff] %vm4150, %v4147
    %4152 = vst.msk [vmem:[%s8 + $0x8] sm:$0xff] %vm4150, %v4148
    %4153 = vst.msk [vmem:[%s8 + $0x10] sm:$0xff] %vm4150, %v4149
    // Predicated region
    $region38: #{forward.1} parent=1 // pred_check
      _
    $region39: #{forward.1} parent=1 // pred_check_branch
      %4155 = sbr.rel (0) target = $region41
    $region40: #{forward.1} parent=1 // pred_region
      _
    $region41: #{forward.1} parent=1 // pred_fallthru
      _
    // Predicated region
    $region42: #{forward.1} parent=1 // pred_check
      _
    $region43: #{forward.1} parent=1 // pred_check_branch
      %4157 = sbr.rel (0) target = $region45
    $region44: #{forward.1} parent=1 // pred_region
      _
    $region45: #{forward.1} parent=1 // pred_fallthru
      _
    %4158 = vsyncpa [#allocation6], 1

</llo_original>
